<compile_context>
chip_gen: v5e
topology: v5e:2x2
jax: 0.10.0
libtpu: 0.0.40
codegen_flags: <defaults>
</compile_context>

<pallas_src>
import math

import jax
import jax.numpy as jnp
from jax import lax
from jax.experimental import pallas as pl
from jax.experimental.pallas import tpu as pltpu

_BN_EPS = 1e-5
_NUM_CLASSES = 10
_VMEM_LIMIT_BYTES = 32 * 1024 * 1024   # explicit, safe on v5e/v6e/v7x
_MAX_HW_TILE = 2048                    # keeps double-buffered tiles tiny


# =============================================================================
# Pallas kernels
# =============================================================================
def _stats_kernel(w_ref, s_ref, sum_ref, sq_ref):
    """Pass 1: accumulate per-channel sum / sum-of-squares of y = W @ s.

    w_ref:   (Ct, Cs)        bf16, resident
    s_ref:   (1, Cs, TILE)   bf16 student tile
    sum_ref: (Ct, 1)         f32 accumulator (same block all grid steps)
    sq_ref:  (Ct, 1)         f32 accumulator
    """
    @pl.when((pl.program_id(0) == 0) & (pl.program_id(1) == 0))
    def _():
        sum_ref[...] = jnp.zeros_like(sum_ref)
        sq_ref[...] = jnp.zeros_like(sq_ref)

    y = jnp.dot(w_ref[...], s_ref[0], preferred_element_type=jnp.float32)
    sum_ref[...] += jnp.sum(y, axis=1, keepdims=True)
    sq_ref[...] += jnp.sum(y * y, axis=1, keepdims=True)


def _loss_kernel(w_ref, scale_ref, shift_ref, margin_ref, s_ref, t_ref,
                 out_ref):
    """Pass 2: recompute y for this tile, apply folded BN, masked SE partial.

    w_ref:      (Ct, Cs)       bf16, resident
    scale_ref:  (Ct, 1)        f32 = gamma * rsqrt(var + eps), resident
    shift_ref:  (Ct, 1)        f32 = beta - mean * scale, resident
    margin_ref: (Ct, 1)        f32 per-channel margin, resident
    s_ref:      (1, Cs, TILE)  bf16 student tile
    t_ref:      (1, Ct, TILE)  f32 teacher tile (detached)
    out_ref:    (1, 1, 8, 128) f32 lane-dense partial-loss block
    """
    y = jnp.dot(w_ref[...], s_ref[0], preferred_element_type=jnp.float32)
    src = y * scale_ref[...] + shift_ref[...]
    tgt = jnp.maximum(t_ref[0], margin_ref[...])
    diff = src - tgt
    mask = jnp.logical_or(src > tgt, tgt > 0.0)
    part = jnp.sum(jnp.where(mask, diff * diff, 0.0))
    out_ref[...] = jnp.full(out_ref.shape, part, jnp.float32)


def _pick_hw_tile(hw):
    """Largest multiple-of-128 divisor of hw that is <= _MAX_HW_TILE, else hw
    (block == full dim is always legal, so small spatial maps just use hw)."""
    if hw % 128 != 0:
        return hw
    cand = min(_MAX_HW_TILE, hw)
    cand -= cand % 128
    while cand >= 128:
        if hw % cand == 0:
            return cand
        cand -= 128
    return hw


def connector_distill_loss(conv_w, s_feat, t_feat, gamma, beta, margin):
    """One distillation level.  conv_w: (Ct, Cs); s_feat: (N, Cs, H, W);
    t_feat: (N, Ct, H, W); gamma/beta/margin: (Ct,).  Returns scalar loss."""
    n, cs, h, w = s_feat.shape
    ct = conv_w.shape[0]
    hw = h * w
    tile = _pick_hw_tile(hw)
    nt = hw // tile
    m = float(n * hw)

    # (N, C, H, W) -> (N, C, H*W): contiguous reshape, no relayout; the grid
    # streams (n, hw-tile) blocks straight out of this layout.
    s3 = s_feat.reshape(n, cs, hw).astype(jnp.bfloat16)
    t3 = t_feat.reshape(n, ct, hw).astype(jnp.float32)
    w_bf = conv_w.astype(jnp.bfloat16)

    w_spec = pl.BlockSpec((ct, cs), lambda ni, ti: (0, 0))      # resident
    col_spec = pl.BlockSpec((ct, 1), lambda ni, ti: (0, 0))     # resident
    s_spec = pl.BlockSpec((1, cs, tile), lambda ni, ti: (ni, 0, ti))
    t_spec = pl.BlockSpec((1, ct, tile), lambda ni, ti: (ni, 0, ti))

    # ---- pass 1: per-channel sum / sumsq of y (student streamed once, bf16)
    sum_y, sq_y = pl.pallas_call(
        _stats_kernel,
        grid=(n, nt),
        in_specs=[w_spec, s_spec],
        out_specs=[col_spec, col_spec],
        out_shape=[jax.ShapeDtypeStruct((ct, 1), jnp.float32),
                   jax.ShapeDtypeStruct((ct, 1), jnp.float32)],
        compiler_params=pltpu.CompilerParams(
            dimension_semantics=("arbitrary", "arbitrary"),
            vmem_limit_bytes=_VMEM_LIMIT_BYTES),
    )(w_bf, s3)

    # Fold BN (training-mode batch statistics, biased variance) into one
    # per-channel scale/shift.  f32 accumulation + clamp guards E[y^2]-E[y]^2.
    mean = sum_y / m
    var = jnp.maximum(sq_y / m - mean * mean, 0.0)
    scale = gamma.reshape(ct, 1).astype(jnp.float32) * lax.rsqrt(var + _BN_EPS)
    shift = beta.reshape(ct, 1).astype(jnp.float32) - mean * scale

    # ---- pass 2: streaming masked-MSE loss, lane-dense per-tile partials
    partial = pl.pallas_call(
        _loss_kernel,
        grid=(n, nt),
        in_specs=[w_spec, col_spec, col_spec, col_spec, s_spec, t_spec],
        out_specs=pl.BlockSpec((1, 1, 8, 128), lambda ni, ti: (ni, ti, 0, 0)),
        out_shape=jax.ShapeDtypeStruct((n, nt, 8, 128), jnp.float32),
        compiler_params=pltpu.CompilerParams(
            dimension_semantics=("parallel", "parallel"),
            vmem_limit_bytes=_VMEM_LIMIT_BYTES),
    )(w_bf, scale, shift, margin.reshape(ct, 1).astype(jnp.float32), s3, t3)

    return jnp.sum(partial[:, :, 0, 0])


# =============================================================================
# Plain-JAX stand-in teacher / student feature extractors (fixtures / glue).
# =============================================================================
def _conv2d(x, w, stride=1, padding=1):
    return lax.conv_general_dilated(
        x, w, window_strides=(stride, stride),
        padding=[(padding, padding), (padding, padding)],
        dimension_numbers=("NCHW", "OIHW", "NCHW"))


def _batchnorm_train(x, gamma, beta, eps=_BN_EPS):
    mean = jnp.mean(x, axis=(0, 2, 3), keepdims=True)
    var = jnp.mean(jnp.square(x - mean), axis=(0, 2, 3), keepdims=True)
    g = gamma.reshape(1, -1, 1, 1)
    b = beta.reshape(1, -1, 1, 1)
    return (x - mean) * lax.rsqrt(var + eps) * g + b


def make_net(key, channels):
    """3 conv blocks (conv -> BN -> ReLU), strides (1, 2, 1), then GAP + FC."""
    c0, c1, c2 = channels
    ks = jax.random.split(key, 10)
    params = {
        "w1": jax.random.normal(ks[0], (c0, 3, 3, 3), jnp.float32) * 0.2,
        "w2": jax.random.normal(ks[1], (c1, c0, 3, 3), jnp.float32) * 0.2,
        "w3": jax.random.normal(ks[2], (c2, c1, 3, 3), jnp.float32) * 0.2,
        "bn_gamma": [jnp.abs(jax.random.normal(ks[3 + i], (channels[i],))) * 0.5 + 0.5
                     for i in range(3)],
        "bn_beta": [jax.random.normal(ks[6 + i], (channels[i],)) * 0.3
                    for i in range(3)],
        "fc_w": jax.random.normal(ks[9], (_NUM_CLASSES, c2), jnp.float32) * 0.1,
        "fc_b": jnp.zeros((_NUM_CLASSES,), jnp.float32),
    }
    return params


def extract_feature(params, x):
    """Returns (pre-ReLU features after each BN-before-ReLU, logits)."""
    feats = []
    h = _conv2d(x, params["w1"], stride=1, padding=1)
    h = _batchnorm_train(h, params["bn_gamma"][0], params["bn_beta"][0])
    feats.append(h)
    h = jax.nn.relu(h)
    h = _conv2d(h, params["w2"], stride=2, padding=1)
    h = _batchnorm_train(h, params["bn_gamma"][1], params["bn_beta"][1])
    feats.append(h)
    h = jax.nn.relu(h)
    h = _conv2d(h, params["w3"], stride=1, padding=1)
    h = _batchnorm_train(h, params["bn_gamma"][2], params["bn_beta"][2])
    feats.append(h)
    h = jax.nn.relu(h)
    pooled = jnp.mean(h, axis=(2, 3))
    out = pooled @ params["fc_w"].T + params["fc_b"]
    return feats, out


# =============================================================================
# Distiller __init__ equivalents (parameter / buffer setup, plain Python).
# =============================================================================
def get_margin_from_bn(gamma, beta):
    """Port of get_margin_from_BN (norm.cdf via math.erf)."""
    margins = []
    for s, m in zip([float(v) for v in gamma], [float(v) for v in beta]):
        s = abs(s)
        cdf = 0.5 * (1.0 + math.erf((-m / s) / math.sqrt(2.0)))
        if cdf > 0.001:
            margins.append(
                -s * math.exp(-((m / s) ** 2) / 2.0) / math.sqrt(2.0 * math.pi) / cdf + m)
        else:
            margins.append(-3.0 * s)
    return jnp.asarray(margins, jnp.float32)


def build_connectors(key, t_channels, s_channels):
    """Port of build_feature_connector: 1x1 conv weight ~ N(0, sqrt(2/(1*1*t))),
    BN weight = 1, bias = 0."""
    ks = jax.random.split(key, len(t_channels))
    connectors = []
    for k, t, s in zip(ks, t_channels, s_channels):
        std = math.sqrt(2.0 / (1 * 1 * t))
        cw = jax.random.normal(k, (t, s), jnp.float32) * std
        connectors.append((cw, jnp.ones((t,), jnp.float32), jnp.zeros((t,), jnp.float32)))
    return connectors


# =============================================================================
# Distiller.forward
# =============================================================================
def distiller_forward(t_params, s_params, connectors, margins, x):
    t_feats, _t_out = extract_feature(t_params, x)
    s_feats, s_out = extract_feature(s_params, x)
    feat_num = len(t_feats)
    loss_distill = jnp.float32(0.0)
    for i in range(feat_num):
        cw, gamma, beta = connectors[i]
        li = connector_distill_loss(cw, s_feats[i],
                                    lax.stop_gradient(t_feats[i]),
                                    gamma, beta, margins[i])
        loss_distill = loss_distill + li / 2 ** (feat_num - i - 1)
    return s_out, loss_distill


def distiller_forward_ref(t_params, s_params, connectors, margins, x):
    """Pure-JAX reference (no Pallas) for a sanity check."""
    t_feats, _ = extract_feature(t_params, x)
    s_feats, s_out = extract_feature(s_params, x)
    feat_num = len(t_feats)
    loss = jnp.float32(0.0)
    for i in range(feat_num):
        cw, gamma, beta = connectors[i]
        y = jnp.einsum("oc,nchw->nohw", cw, s_feats[i],
                       precision=lax.Precision.HIGHEST)
        y = _batchnorm_train(y, gamma, beta)
        tgt = jnp.maximum(t_feats[i], margins[i].reshape(1, -1, 1, 1))
        diff = y - tgt
        mask = jnp.logical_or(y > tgt, tgt > 0).astype(jnp.float32)
        loss = loss + jnp.sum(diff * diff * mask) / 2 ** (feat_num - i - 1)
    return s_out, loss


if __name__ == "__main__":
    key = jax.random.PRNGKey(0)
    k_x, k_t, k_s, k_c = jax.random.split(key, 4)

    t_channels = (16, 32, 32)   # teacher get_channel_num()
    s_channels = (8, 16, 32)    # student get_channel_num()

    x = jax.random.normal(k_x, (2, 3, 16, 16), jnp.float32)  # NCHW

    t_params = make_net(k_t, t_channels)
    s_params = make_net(k_s, s_channels)

    # register_buffer('margin%d', ...) equivalents from teacher BN-before-ReLU.
    margins = [get_margin_from_bn(t_params["bn_gamma"][i], t_params["bn_beta"][i])
               for i in range(len(t_channels))]
    connectors = build_connectors(k_c, t_channels, s_channels)

    fwd = jax.jit(distiller_forward)
    s_out, loss_distill = fwd(t_params, s_params, connectors, margins, x)
    jax.block_until_ready((s_out, loss_distill))

    # Sanity check against the pure-JAX reference (kernel uses bf16 MXU inputs,
    # reference uses f32 HIGHEST, hence the loose tolerance).
    s_out_ref, loss_ref = distiller_forward_ref(t_params, s_params, connectors,
                                                margins, x)
    assert s_out.shape == (2, _NUM_CLASSES)
    assert bool(jnp.isfinite(loss_distill))
    assert bool(jnp.allclose(loss_distill, loss_ref, rtol=5e-2, atol=1e-1)), \
        (float(loss_distill), float(loss_ref))

    print("KERNEL_OK")
</pallas_src>

<mosaic_0001>
module attributes {stable_mosaic.version = 11 : i64} {
  func.func @_stats_kernel(%arg0: i32, %arg1: i32, %arg2: memref<16x8xbf16, #tpu.memory_space<vmem>>, %arg3: memref<1x8x256xbf16, #tpu.memory_space<vmem>>, %arg4: memref<16x1xf32, #tpu.memory_space<vmem>>, %arg5: memref<16x1xf32, #tpu.memory_space<vmem>>) attributes {dimension_semantics = [#tpu.dimension_semantics<arbitrary>, #tpu.dimension_semantics<arbitrary>], iteration_bounds = array<i64: 2, 1>, scalar_prefetch = 0 : i64, scratch_operands = 0 : i64, tpu.core_type = #tpu.core_type<tc>, window_params = [{pipeline_mode = #tpu.pipeline_mode<synchronous>, transform_indices = @transform_0, window_bounds = array<i64: 16, 8>}, {transform_indices = @transform_1, window_bounds = array<i64: 1, 8, 256>}, {pipeline_mode = #tpu.pipeline_mode<synchronous>, transform_indices = @transform_2, window_bounds = array<i64: 16, 1>}, {pipeline_mode = #tpu.pipeline_mode<synchronous>, transform_indices = @transform_3, window_bounds = array<i64: 16, 1>}]} {
    %c0_i32 = arith.constant 0 : i32
    %0 = arith.cmpi eq, %arg0, %c0_i32 : i32
    %c0_i32_0 = arith.constant 0 : i32
    %1 = arith.cmpi eq, %arg1, %c0_i32_0 : i32
    %2 = arith.andi %0, %1 : i1
    %3 = arith.extui %2 : i1 to i32
    %c0_i32_1 = arith.constant 0 : i32
    %4 = arith.cmpi ne, %3, %c0_i32_1 : i32
    scf.if %4 {
      %cst_16 = arith.constant 0.000000e+00 : f32
      %20 = vector.broadcast %cst_16 : f32 to vector<16x1xf32>
      %c0_17 = arith.constant 0 : index
      %c0_18 = arith.constant 0 : index
      %21 = vector.load %arg4[%c0_17, %c0_18] : memref<16x1xf32, #tpu.memory_space<vmem>>, vector<16x1xf32>
      tpu.vector_store %arg4[%c0_17, %c0_18], %20 {strides = array<i32>} : memref<16x1xf32, #tpu.memory_space<vmem>>, vector<16x1xf32>,
      %cst_19 = arith.constant 0.000000e+00 : f32
      %22 = vector.broadcast %cst_19 : f32 to vector<16x1xf32>
      %c0_20 = arith.constant 0 : index
      %c0_21 = arith.constant 0 : index
      %23 = vector.load %arg5[%c0_20, %c0_21] : memref<16x1xf32, #tpu.memory_space<vmem>>, vector<16x1xf32>
      tpu.vector_store %arg5[%c0_20, %c0_21], %22 {strides = array<i32>} : memref<16x1xf32, #tpu.memory_space<vmem>>, vector<16x1xf32>,
    } else {
    }
    %c0 = arith.constant 0 : index
    %c0_2 = arith.constant 0 : index
    %5 = vector.load %arg2[%c0, %c0_2] : memref<16x8xbf16, #tpu.memory_space<vmem>>, vector<16x8xbf16>
    %c0_3 = arith.constant 0 : index
    %c0_4 = arith.constant 0 : index
    %c0_5 = arith.constant 0 : index
    %6 = vector.load %arg3[%c0_3, %c0_4, %c0_5] : memref<1x8x256xbf16, #tpu.memory_space<vmem>>, vector<1x8x256xbf16>
    %7 = vector.shape_cast %6 : vector<1x8x256xbf16> to vector<8x256xbf16>
    %cst = arith.constant dense<0.000000e+00> : vector<16x256xf32>
    %8 = tpu.matmul %5, %7, %cst {dimension_numbers = #tpu.dot_dimension_numbers<[1], [0], [0], [1], [0, 0, 1, 1], [], []>} : vector<16x8xbf16>, vector<8x256xbf16>, vector<16x256xf32> -> vector<16x256xf32>
    %c0_6 = arith.constant 0 : index
    %c0_7 = arith.constant 0 : index
    %9 = vector.load %arg4[%c0_6, %c0_7] : memref<16x1xf32, #tpu.memory_space<vmem>>, vector<16x1xf32>
    %cst_8 = arith.constant dense<0.000000e+00> : vector<16xf32>
    %10 = vector.multi_reduction <add>, %8, %cst_8 [1] : vector<16x256xf32> to vector<16xf32>
    %11 = vector.shape_cast %10 : vector<16xf32> to vector<16x1xf32>
    %12 = arith.addf %9, %11 : vector<16x1xf32>
    %c0_9 = arith.constant 0 : index
    %c0_10 = arith.constant 0 : index
    %13 = vector.load %arg4[%c0_9, %c0_10] : memref<16x1xf32, #tpu.memory_space<vmem>>, vector<16x1xf32>
    tpu.vector_store %arg4[%c0_9, %c0_10], %12 {strides = array<i32>} : memref<16x1xf32, #tpu.memory_space<vmem>>, vector<16x1xf32>,
    %c0_11 = arith.constant 0 : index
    %c0_12 = arith.constant 0 : index
    %14 = vector.load %arg5[%c0_11, %c0_12] : memref<16x1xf32, #tpu.memory_space<vmem>>, vector<16x1xf32>
    %15 = arith.mulf %8, %8 : vector<16x256xf32>
    %cst_13 = arith.constant dense<0.000000e+00> : vector<16xf32>
    %16 = vector.multi_reduction <add>, %15, %cst_13 [1] : vector<16x256xf32> to vector<16xf32>
    %17 = vector.shape_cast %16 : vector<16xf32> to vector<16x1xf32>
    %18 = arith.addf %14, %17 : vector<16x1xf32>
    %c0_14 = arith.constant 0 : index
    %c0_15 = arith.constant 0 : index
    %19 = vector.load %arg5[%c0_14, %c0_15] : memref<16x1xf32, #tpu.memory_space<vmem>>, vector<16x1xf32>
    tpu.vector_store %arg5[%c0_14, %c0_15], %18 {strides = array<i32>} : memref<16x1xf32, #tpu.memory_space<vmem>>, vector<16x1xf32>,
    return
  }
  func.func @transform_0(%arg0: i32, %arg1: i32) -> (i32, i32) {
    %c0_i32 = arith.constant 0 : i32
    %c0_i32_0 = arith.constant 0 : i32
    %c0_i32_1 = arith.constant 0 : i32
    return %c0_i32, %c0_i32_0 : i32, i32
  }
  func.func @transform_1(%arg0: i32, %arg1: i32) -> (i32, i32, i32) {
    %c0_i32 = arith.constant 0 : i32
    %c0_i32_0 = arith.constant 0 : i32
    return %arg0, %c0_i32, %arg1 : i32, i32, i32
  }
  func.func @transform_2(%arg0: i32, %arg1: i32) -> (i32, i32) {
    %c0_i32 = arith.constant 0 : i32
    %c0_i32_0 = arith.constant 0 : i32
    %c0_i32_1 = arith.constant 0 : i32
    return %c0_i32, %c0_i32_0 : i32, i32
  }
  func.func @transform_3(%arg0: i32, %arg1: i32) -> (i32, i32) {
    %c0_i32 = arith.constant 0 : i32
    %c0_i32_0 = arith.constant 0 : i32
    %c0_i32_1 = arith.constant 0 : i32
    return %c0_i32, %c0_i32_0 : i32, i32
  }
}

module attributes {stable_mosaic.version = 11 : i64} {
  func.func @_loss_kernel(%arg0: i32, %arg1: i32, %arg2: memref<16x8xbf16, #tpu.memory_space<vmem>>, %arg3: memref<16x1xf32, #tpu.memory_space<vmem>>, %arg4: memref<16x1xf32, #tpu.memory_space<vmem>>, %arg5: memref<16x1xf32, #tpu.memory_space<vmem>>, %arg6: memref<1x8x256xbf16, #tpu.memory_space<vmem>>, %arg7: memref<1x16x256xf32, #tpu.memory_space<vmem>>, %arg8: memref<1x1x8x128xf32, #tpu.memory_space<vmem>>) attributes {dimension_semantics = [#tpu.dimension_semantics<parallel>, #tpu.dimension_semantics<parallel>], iteration_bounds = array<i64: 2, 1>, scalar_prefetch = 0 : i64, scratch_operands = 0 : i64, tpu.core_type = #tpu.core_type<tc>, window_params = [{pipeline_mode = #tpu.pipeline_mode<synchronous>, transform_indices = @transform_0, window_bounds = array<i64: 16, 8>}, {pipeline_mode = #tpu.pipeline_mode<synchronous>, transform_indices = @transform_1, window_bounds = array<i64: 16, 1>}, {pipeline_mode = #tpu.pipeline_mode<synchronous>, transform_indices = @transform_2, window_bounds = array<i64: 16, 1>}, {pipeline_mode = #tpu.pipeline_mode<synchronous>, transform_indices = @transform_3, window_bounds = array<i64: 16, 1>}, {transform_indices = @transform_4, window_bounds = array<i64: 1, 8, 256>}, {transform_indices = @transform_5, window_bounds = array<i64: 1, 16, 256>}, {transform_indices = @transform_6, window_bounds = array<i64: 1, 1, 8, 128>}]} {
    %c0 = arith.constant 0 : index
    %c0_0 = arith.constant 0 : index
    %0 = vector.load %arg2[%c0, %c0_0] : memref<16x8xbf16, #tpu.memory_space<vmem>>, vector<16x8xbf16>
    %c0_1 = arith.constant 0 : index
    %c0_2 = arith.constant 0 : index
    %c0_3 = arith.constant 0 : index
    %1 = vector.load %arg6[%c0_1, %c0_2, %c0_3] : memref<1x8x256xbf16, #tpu.memory_space<vmem>>, vector<1x8x256xbf16>
    %2 = vector.shape_cast %1 : vector<1x8x256xbf16> to vector<8x256xbf16>
    %cst = arith.constant dense<0.000000e+00> : vector<16x256xf32>
    %3 = tpu.matmul %0, %2, %cst {dimension_numbers = #tpu.dot_dimension_numbers<[1], [0], [0], [1], [0, 0, 1, 1], [], []>} : vector<16x8xbf16>, vector<8x256xbf16>, vector<16x256xf32> -> vector<16x256xf32>
    %c0_4 = arith.constant 0 : index
    %c0_5 = arith.constant 0 : index
    %4 = vector.load %arg3[%c0_4, %c0_5] : memref<16x1xf32, #tpu.memory_space<vmem>>, vector<16x1xf32>
    %5 = vector.broadcast %4 : vector<16x1xf32> to vector<16x256xf32>
    %6 = arith.mulf %3, %5 : vector<16x256xf32>
    %c0_6 = arith.constant 0 : index
    %c0_7 = arith.constant 0 : index
    %7 = vector.load %arg4[%c0_6, %c0_7] : memref<16x1xf32, #tpu.memory_space<vmem>>, vector<16x1xf32>
    %8 = vector.broadcast %7 : vector<16x1xf32> to vector<16x256xf32>
    %9 = arith.addf %6, %8 : vector<16x256xf32>
    %c0_8 = arith.constant 0 : index
    %c0_9 = arith.constant 0 : index
    %c0_10 = arith.constant 0 : index
    %10 = vector.load %arg7[%c0_8, %c0_9, %c0_10] : memref<1x16x256xf32, #tpu.memory_space<vmem>>, vector<1x16x256xf32>
    %11 = vector.shape_cast %10 : vector<1x16x256xf32> to vector<16x256xf32>
    %c0_11 = arith.constant 0 : index
    %c0_12 = arith.constant 0 : index
    %12 = vector.load %arg5[%c0_11, %c0_12] : memref<16x1xf32, #tpu.memory_space<vmem>>, vector<16x1xf32>
    %13 = vector.broadcast %12 : vector<16x1xf32> to vector<16x256xf32>
    %14 = arith.maximumf %11, %13 : vector<16x256xf32>
    %15 = arith.subf %9, %14 : vector<16x256xf32>
    %16 = arith.cmpf ogt, %9, %14 : vector<16x256xf32>
    %cst_13 = arith.constant 0.000000e+00 : f32
    %17 = vector.broadcast %cst_13 : f32 to vector<16x256xf32>
    %18 = arith.cmpf ogt, %14, %17 : vector<16x256xf32>
    %19 = arith.ori %16, %18 : vector<16x256xi1>
    %20 = arith.mulf %15, %15 : vector<16x256xf32>
    %cst_14 = arith.constant 0.000000e+00 : f32
    %21 = vector.broadcast %cst_14 : f32 to vector<16x256xf32>
    %22 = arith.select %19, %20, %21 : vector<16x256xi1>, vector<16x256xf32>
    %23 = vector.shape_cast %22 : vector<16x256xf32> to vector<1x16x256xf32>
    %cst_15 = arith.constant dense<0.000000e+00> : vector<1xf32>
    %24 = vector.multi_reduction <add>, %23, %cst_15 [1, 2] : vector<1x16x256xf32> to vector<1xf32>
    %25 = vector.shape_cast %24 : vector<1xf32> to vector<1x1x1xf32>
    %26 = vector.extract %25[0, 0, 0] : f32 from vector<1x1x1xf32>
    %27 = vector.broadcast %26 : f32 to vector<1x1x8x128xf32>
    %c0_16 = arith.constant 0 : index
    %c0_17 = arith.constant 0 : index
    %c0_18 = arith.constant 0 : index
    %c0_19 = arith.constant 0 : index
    %28 = vector.load %arg8[%c0_16, %c0_17, %c0_18, %c0_19] : memref<1x1x8x128xf32, #tpu.memory_space<vmem>>, vector<1x1x8x128xf32>
    tpu.vector_store %arg8[%c0_16, %c0_17, %c0_18, %c0_19], %27 {strides = array<i32>} : memref<1x1x8x128xf32, #tpu.memory_space<vmem>>, vector<1x1x8x128xf32>,
    return
  }
  func.func @transform_0(%arg0: i32, %arg1: i32) -> (i32, i32) {
    %c0_i32 = arith.constant 0 : i32
    %c0_i32_0 = arith.constant 0 : i32
    %c0_i32_1 = arith.constant 0 : i32
    return %c0_i32, %c0_i32_0 : i32, i32
  }
  func.func @transform_1(%arg0: i32, %arg1: i32) -> (i32, i32) {
    %c0_i32 = arith.constant 0 : i32
    %c0_i32_0 = arith.constant 0 : i32
    %c0_i32_1 = arith.constant 0 : i32
    return %c0_i32, %c0_i32_0 : i32, i32
  }
  func.func @transform_2(%arg0: i32, %arg1: i32) -> (i32, i32) {
    %c0_i32 = arith.constant 0 : i32
    %c0_i32_0 = arith.constant 0 : i32
    %c0_i32_1 = arith.constant 0 : i32
    return %c0_i32, %c0_i32_0 : i32, i32
  }
  func.func @transform_3(%arg0: i32, %arg1: i32) -> (i32, i32) {
    %c0_i32 = arith.constant 0 : i32
    %c0_i32_0 = arith.constant 0 : i32
    %c0_i32_1 = arith.constant 0 : i32
    return %c0_i32, %c0_i32_0 : i32, i32
  }
  func.func @transform_4(%arg0: i32, %arg1: i32) -> (i32, i32, i32) {
    %c0_i32 = arith.constant 0 : i32
    %c0_i32_0 = arith.constant 0 : i32
    return %arg0, %c0_i32, %arg1 : i32, i32, i32
  }
  func.func @transform_5(%arg0: i32, %arg1: i32) -> (i32, i32, i32) {
    %c0_i32 = arith.constant 0 : i32
    %c0_i32_0 = arith.constant 0 : i32
    return %arg0, %c0_i32, %arg1 : i32, i32, i32
  }
  func.func @transform_6(%arg0: i32, %arg1: i32) -> (i32, i32, i32, i32) {
    %c0_i32 = arith.constant 0 : i32
    %c0_i32_0 = arith.constant 0 : i32
    %c0_i32_1 = arith.constant 0 : i32
    return %arg0, %arg1, %c0_i32, %c0_i32_0 : i32, i32, i32, i32
  }
}

module attributes {stable_mosaic.version = 11 : i64} {
  func.func @_stats_kernel(%arg0: i32, %arg1: i32, %arg2: memref<32x16xbf16, #tpu.memory_space<vmem>>, %arg3: memref<1x16x64xbf16, #tpu.memory_space<vmem>>, %arg4: memref<32x1xf32, #tpu.memory_space<vmem>>, %arg5: memref<32x1xf32, #tpu.memory_space<vmem>>) attributes {dimension_semantics = [#tpu.dimension_semantics<arbitrary>, #tpu.dimension_semantics<arbitrary>], iteration_bounds = array<i64: 2, 1>, scalar_prefetch = 0 : i64, scratch_operands = 0 : i64, tpu.core_type = #tpu.core_type<tc>, window_params = [{pipeline_mode = #tpu.pipeline_mode<synchronous>, transform_indices = @transform_0, window_bounds = array<i64: 32, 16>}, {transform_indices = @transform_1, window_bounds = array<i64: 1, 16, 64>}, {pipeline_mode = #tpu.pipeline_mode<synchronous>, transform_indices = @transform_2, window_bounds = array<i64: 32, 1>}, {pipeline_mode = #tpu.pipeline_mode<synchronous>, transform_indices = @transform_3, window_bounds = array<i64: 32, 1>}]} {
    %c0_i32 = arith.constant 0 : i32
    %0 = arith.cmpi eq, %arg0, %c0_i32 : i32
    %c0_i32_0 = arith.constant 0 : i32
    %1 = arith.cmpi eq, %arg1, %c0_i32_0 : i32
    %2 = arith.andi %0, %1 : i1
    %3 = arith.extui %2 : i1 to i32
    %c0_i32_1 = arith.constant 0 : i32
    %4 = arith.cmpi ne, %3, %c0_i32_1 : i32
    scf.if %4 {
      %cst_16 = arith.constant 0.000000e+00 : f32
      %20 = vector.broadcast %cst_16 : f32 to vector<32x1xf32>
      %c0_17 = arith.constant 0 : index
      %c0_18 = arith.constant 0 : index
      %21 = vector.load %arg4[%c0_17, %c0_18] : memref<32x1xf32, #tpu.memory_space<vmem>>, vector<32x1xf32>
      tpu.vector_store %arg4[%c0_17, %c0_18], %20 {strides = array<i32>} : memref<32x1xf32, #tpu.memory_space<vmem>>, vector<32x1xf32>,
      %cst_19 = arith.constant 0.000000e+00 : f32
      %22 = vector.broadcast %cst_19 : f32 to vector<32x1xf32>
      %c0_20 = arith.constant 0 : index
      %c0_21 = arith.constant 0 : index
      %23 = vector.load %arg5[%c0_20, %c0_21] : memref<32x1xf32, #tpu.memory_space<vmem>>, vector<32x1xf32>
      tpu.vector_store %arg5[%c0_20, %c0_21], %22 {strides = array<i32>} : memref<32x1xf32, #tpu.memory_space<vmem>>, vector<32x1xf32>,
    } else {
    }
    %c0 = arith.constant 0 : index
    %c0_2 = arith.constant 0 : index
    %5 = vector.load %arg2[%c0, %c0_2] : memref<32x16xbf16, #tpu.memory_space<vmem>>, vector<32x16xbf16>
    %c0_3 = arith.constant 0 : index
    %c0_4 = arith.constant 0 : index
    %c0_5 = arith.constant 0 : index
    %6 = vector.load %arg3[%c0_3, %c0_4, %c0_5] : memref<1x16x64xbf16, #tpu.memory_space<vmem>>, vector<1x16x64xbf16>
    %7 = vector.shape_cast %6 : vector<1x16x64xbf16> to vector<16x64xbf16>
    %cst = arith.constant dense<0.000000e+00> : vector<32x64xf32>
    %8 = tpu.matmul %5, %7, %cst {dimension_numbers = #tpu.dot_dimension_numbers<[1], [0], [0], [1], [0, 0, 1, 1], [], []>} : vector<32x16xbf16>, vector<16x64xbf16>, vector<32x64xf32> -> vector<32x64xf32>
    %c0_6 = arith.constant 0 : index
    %c0_7 = arith.constant 0 : index
    %9 = vector.load %arg4[%c0_6, %c0_7] : memref<32x1xf32, #tpu.memory_space<vmem>>, vector<32x1xf32>
    %cst_8 = arith.constant dense<0.000000e+00> : vector<32xf32>
    %10 = vector.multi_reduction <add>, %8, %cst_8 [1] : vector<32x64xf32> to vector<32xf32>
    %11 = vector.shape_cast %10 : vector<32xf32> to vector<32x1xf32>
    %12 = arith.addf %9, %11 : vector<32x1xf32>
    %c0_9 = arith.constant 0 : index
    %c0_10 = arith.constant 0 : index
    %13 = vector.load %arg4[%c0_9, %c0_10] : memref<32x1xf32, #tpu.memory_space<vmem>>, vector<32x1xf32>
    tpu.vector_store %arg4[%c0_9, %c0_10], %12 {strides = array<i32>} : memref<32x1xf32, #tpu.memory_space<vmem>>, vector<32x1xf32>,
    %c0_11 = arith.constant 0 : index
    %c0_12 = arith.constant 0 : index
    %14 = vector.load %arg5[%c0_11, %c0_12] : memref<32x1xf32, #tpu.memory_space<vmem>>, vector<32x1xf32>
    %15 = arith.mulf %8, %8 : vector<32x64xf32>
    %cst_13 = arith.constant dense<0.000000e+00> : vector<32xf32>
    %16 = vector.multi_reduction <add>, %15, %cst_13 [1] : vector<32x64xf32> to vector<32xf32>
    %17 = vector.shape_cast %16 : vector<32xf32> to vector<32x1xf32>
    %18 = arith.addf %14, %17 : vector<32x1xf32>
    %c0_14 = arith.constant 0 : index
    %c0_15 = arith.constant 0 : index
    %19 = vector.load %arg5[%c0_14, %c0_15] : memref<32x1xf32, #tpu.memory_space<vmem>>, vector<32x1xf32>
    tpu.vector_store %arg5[%c0_14, %c0_15], %18 {strides = array<i32>} : memref<32x1xf32, #tpu.memory_space<vmem>>, vector<32x1xf32>,
    return
  }
  func.func @transform_0(%arg0: i32, %arg1: i32) -> (i32, i32) {
    %c0_i32 = arith.constant 0 : i32
    %c0_i32_0 = arith.constant 0 : i32
    %c0_i32_1 = arith.constant 0 : i32
    return %c0_i32, %c0_i32_0 : i32, i32
  }
  func.func @transform_1(%arg0: i32, %arg1: i32) -> (i32, i32, i32) {
    %c0_i32 = arith.constant 0 : i32
    %c0_i32_0 = arith.constant 0 : i32
    return %arg0, %c0_i32, %arg1 : i32, i32, i32
  }
  func.func @transform_2(%arg0: i32, %arg1: i32) -> (i32, i32) {
    %c0_i32 = arith.constant 0 : i32
    %c0_i32_0 = arith.constant 0 : i32
    %c0_i32_1 = arith.constant 0 : i32
    return %c0_i32, %c0_i32_0 : i32, i32
  }
  func.func @transform_3(%arg0: i32, %arg1: i32) -> (i32, i32) {
    %c0_i32 = arith.constant 0 : i32
    %c0_i32_0 = arith.constant 0 : i32
    %c0_i32_1 = arith.constant 0 : i32
    return %c0_i32, %c0_i32_0 : i32, i32
  }
}

module attributes {stable_mosaic.version = 11 : i64} {
  func.func @_stats_kernel(%arg0: i32, %arg1: i32, %arg2: memref<32x32xbf16, #tpu.memory_space<vmem>>, %arg3: memref<1x32x64xbf16, #tpu.memory_space<vmem>>, %arg4: memref<32x1xf32, #tpu.memory_space<vmem>>, %arg5: memref<32x1xf32, #tpu.memory_space<vmem>>) attributes {dimension_semantics = [#tpu.dimension_semantics<arbitrary>, #tpu.dimension_semantics<arbitrary>], iteration_bounds = array<i64: 2, 1>, scalar_prefetch = 0 : i64, scratch_operands = 0 : i64, tpu.core_type = #tpu.core_type<tc>, window_params = [{pipeline_mode = #tpu.pipeline_mode<synchronous>, transform_indices = @transform_0, window_bounds = array<i64: 32, 32>}, {transform_indices = @transform_1, window_bounds = array<i64: 1, 32, 64>}, {pipeline_mode = #tpu.pipeline_mode<synchronous>, transform_indices = @transform_2, window_bounds = array<i64: 32, 1>}, {pipeline_mode = #tpu.pipeline_mode<synchronous>, transform_indices = @transform_3, window_bounds = array<i64: 32, 1>}]} {
    %c0_i32 = arith.constant 0 : i32
    %0 = arith.cmpi eq, %arg0, %c0_i32 : i32
    %c0_i32_0 = arith.constant 0 : i32
    %1 = arith.cmpi eq, %arg1, %c0_i32_0 : i32
    %2 = arith.andi %0, %1 : i1
    %3 = arith.extui %2 : i1 to i32
    %c0_i32_1 = arith.constant 0 : i32
    %4 = arith.cmpi ne, %3, %c0_i32_1 : i32
    scf.if %4 {
      %cst_16 = arith.constant 0.000000e+00 : f32
      %20 = vector.broadcast %cst_16 : f32 to vector<32x1xf32>
      %c0_17 = arith.constant 0 : index
      %c0_18 = arith.constant 0 : index
      %21 = vector.load %arg4[%c0_17, %c0_18] : memref<32x1xf32, #tpu.memory_space<vmem>>, vector<32x1xf32>
      tpu.vector_store %arg4[%c0_17, %c0_18], %20 {strides = array<i32>} : memref<32x1xf32, #tpu.memory_space<vmem>>, vector<32x1xf32>,
      %cst_19 = arith.constant 0.000000e+00 : f32
      %22 = vector.broadcast %cst_19 : f32 to vector<32x1xf32>
      %c0_20 = arith.constant 0 : index
      %c0_21 = arith.constant 0 : index
      %23 = vector.load %arg5[%c0_20, %c0_21] : memref<32x1xf32, #tpu.memory_space<vmem>>, vector<32x1xf32>
      tpu.vector_store %arg5[%c0_20, %c0_21], %22 {strides = array<i32>} : memref<32x1xf32, #tpu.memory_space<vmem>>, vector<32x1xf32>,
    } else {
    }
    %c0 = arith.constant 0 : index
    %c0_2 = arith.constant 0 : index
    %5 = vector.load %arg2[%c0, %c0_2] : memref<32x32xbf16, #tpu.memory_space<vmem>>, vector<32x32xbf16>
    %c0_3 = arith.constant 0 : index
    %c0_4 = arith.constant 0 : index
    %c0_5 = arith.constant 0 : index
    %6 = vector.load %arg3[%c0_3, %c0_4, %c0_5] : memref<1x32x64xbf16, #tpu.memory_space<vmem>>, vector<1x32x64xbf16>
    %7 = vector.shape_cast %6 : vector<1x32x64xbf16> to vector<32x64xbf16>
    %cst = arith.constant dense<0.000000e+00> : vector<32x64xf32>
    %8 = tpu.matmul %5, %7, %cst {dimension_numbers = #tpu.dot_dimension_numbers<[1], [0], [0], [1], [0, 0, 1, 1], [], []>} : vector<32x32xbf16>, vector<32x64xbf16>, vector<32x64xf32> -> vector<32x64xf32>
    %c0_6 = arith.constant 0 : index
    %c0_7 = arith.constant 0 : index
    %9 = vector.load %arg4[%c0_6, %c0_7] : memref<32x1xf32, #tpu.memory_space<vmem>>, vector<32x1xf32>
    %cst_8 = arith.constant dense<0.000000e+00> : vector<32xf32>
    %10 = vector.multi_reduction <add>, %8, %cst_8 [1] : vector<32x64xf32> to vector<32xf32>
    %11 = vector.shape_cast %10 : vector<32xf32> to vector<32x1xf32>
    %12 = arith.addf %9, %11 : vector<32x1xf32>
    %c0_9 = arith.constant 0 : index
    %c0_10 = arith.constant 0 : index
    %13 = vector.load %arg4[%c0_9, %c0_10] : memref<32x1xf32, #tpu.memory_space<vmem>>, vector<32x1xf32>
    tpu.vector_store %arg4[%c0_9, %c0_10], %12 {strides = array<i32>} : memref<32x1xf32, #tpu.memory_space<vmem>>, vector<32x1xf32>,
    %c0_11 = arith.constant 0 : index
    %c0_12 = arith.constant 0 : index
    %14 = vector.load %arg5[%c0_11, %c0_12] : memref<32x1xf32, #tpu.memory_space<vmem>>, vector<32x1xf32>
    %15 = arith.mulf %8, %8 : vector<32x64xf32>
    %cst_13 = arith.constant dense<0.000000e+00> : vector<32xf32>
    %16 = vector.multi_reduction <add>, %15, %cst_13 [1] : vector<32x64xf32> to vector<32xf32>
    %17 = vector.shape_cast %16 : vector<32xf32> to vector<32x1xf32>
    %18 = arith.addf %14, %17 : vector<32x1xf32>
    %c0_14 = arith.constant 0 : index
    %c0_15 = arith.constant 0 : index
    %19 = vector.load %arg5[%c0_14, %c0_15] : memref<32x1xf32, #tpu.memory_space<vmem>>, vector<32x1xf32>
    tpu.vector_store %arg5[%c0_14, %c0_15], %18 {strides = array<i32>} : memref<32x1xf32, #tpu.memory_space<vmem>>, vector<32x1xf32>,
    return
  }
  func.func @transform_0(%arg0: i32, %arg1: i32) -> (i32, i32) {
    %c0_i32 = arith.constant 0 : i32
    %c0_i32_0 = arith.constant 0 : i32
    %c0_i32_1 = arith.constant 0 : i32
    return %c0_i32, %c0_i32_0 : i32, i32
  }
  func.func @transform_1(%arg0: i32, %arg1: i32) -> (i32, i32, i32) {
    %c0_i32 = arith.constant 0 : i32
    %c0_i32_0 = arith.constant 0 : i32
    return %arg0, %c0_i32, %arg1 : i32, i32, i32
  }
  func.func @transform_2(%arg0: i32, %arg1: i32) -> (i32, i32) {
    %c0_i32 = arith.constant 0 : i32
    %c0_i32_0 = arith.constant 0 : i32
    %c0_i32_1 = arith.constant 0 : i32
    return %c0_i32, %c0_i32_0 : i32, i32
  }
  func.func @transform_3(%arg0: i32, %arg1: i32) -> (i32, i32) {
    %c0_i32 = arith.constant 0 : i32
    %c0_i32_0 = arith.constant 0 : i32
    %c0_i32_1 = arith.constant 0 : i32
    return %c0_i32, %c0_i32_0 : i32, i32
  }
}

module attributes {stable_mosaic.version = 11 : i64} {
  func.func @_loss_kernel(%arg0: i32, %arg1: i32, %arg2: memref<32x16xbf16, #tpu.memory_space<vmem>>, %arg3: memref<32x1xf32, #tpu.memory_space<vmem>>, %arg4: memref<32x1xf32, #tpu.memory_space<vmem>>, %arg5: memref<32x1xf32, #tpu.memory_space<vmem>>, %arg6: memref<1x16x64xbf16, #tpu.memory_space<vmem>>, %arg7: memref<1x32x64xf32, #tpu.memory_space<vmem>>, %arg8: memref<1x1x8x128xf32, #tpu.memory_space<vmem>>) attributes {dimension_semantics = [#tpu.dimension_semantics<parallel>, #tpu.dimension_semantics<parallel>], iteration_bounds = array<i64: 2, 1>, scalar_prefetch = 0 : i64, scratch_operands = 0 : i64, tpu.core_type = #tpu.core_type<tc>, window_params = [{pipeline_mode = #tpu.pipeline_mode<synchronous>, transform_indices = @transform_0, window_bounds = array<i64: 32, 16>}, {pipeline_mode = #tpu.pipeline_mode<synchronous>, transform_indices = @transform_1, window_bounds = array<i64: 32, 1>}, {pipeline_mode = #tpu.pipeline_mode<synchronous>, transform_indices = @transform_2, window_bounds = array<i64: 32, 1>}, {pipeline_mode = #tpu.pipeline_mode<synchronous>, transform_indices = @transform_3, window_bounds = array<i64: 32, 1>}, {transform_indices = @transform_4, window_bounds = array<i64: 1, 16, 64>}, {transform_indices = @transform_5, window_bounds = array<i64: 1, 32, 64>}, {transform_indices = @transform_6, window_bounds = array<i64: 1, 1, 8, 128>}]} {
    %c0 = arith.constant 0 : index
    %c0_0 = arith.constant 0 : index
    %0 = vector.load %arg2[%c0, %c0_0] : memref<32x16xbf16, #tpu.memory_space<vmem>>, vector<32x16xbf16>
    %c0_1 = arith.constant 0 : index
    %c0_2 = arith.constant 0 : index
    %c0_3 = arith.constant 0 : index
    %1 = vector.load %arg6[%c0_1, %c0_2, %c0_3] : memref<1x16x64xbf16, #tpu.memory_space<vmem>>, vector<1x16x64xbf16>
    %2 = vector.shape_cast %1 : vector<1x16x64xbf16> to vector<16x64xbf16>
    %cst = arith.constant dense<0.000000e+00> : vector<32x64xf32>
    %3 = tpu.matmul %0, %2, %cst {dimension_numbers = #tpu.dot_dimension_numbers<[1], [0], [0], [1], [0, 0, 1, 1], [], []>} : vector<32x16xbf16>, vector<16x64xbf16>, vector<32x64xf32> -> vector<32x64xf32>
    %c0_4 = arith.constant 0 : index
    %c0_5 = arith.constant 0 : index
    %4 = vector.load %arg3[%c0_4, %c0_5] : memref<32x1xf32, #tpu.memory_space<vmem>>, vector<32x1xf32>
    %5 = vector.broadcast %4 : vector<32x1xf32> to vector<32x64xf32>
    %6 = arith.mulf %3, %5 : vector<32x64xf32>
    %c0_6 = arith.constant 0 : index
    %c0_7 = arith.constant 0 : index
    %7 = vector.load %arg4[%c0_6, %c0_7] : memref<32x1xf32, #tpu.memory_space<vmem>>, vector<32x1xf32>
    %8 = vector.broadcast %7 : vector<32x1xf32> to vector<32x64xf32>
    %9 = arith.addf %6, %8 : vector<32x64xf32>
    %c0_8 = arith.constant 0 : index
    %c0_9 = arith.constant 0 : index
    %c0_10 = arith.constant 0 : index
    %10 = vector.load %arg7[%c0_8, %c0_9, %c0_10] : memref<1x32x64xf32, #tpu.memory_space<vmem>>, vector<1x32x64xf32>
    %11 = vector.shape_cast %10 : vector<1x32x64xf32> to vector<32x64xf32>
    %c0_11 = arith.constant 0 : index
    %c0_12 = arith.constant 0 : index
    %12 = vector.load %arg5[%c0_11, %c0_12] : memref<32x1xf32, #tpu.memory_space<vmem>>, vector<32x1xf32>
    %13 = vector.broadcast %12 : vector<32x1xf32> to vector<32x64xf32>
    %14 = arith.maximumf %11, %13 : vector<32x64xf32>
    %15 = arith.subf %9, %14 : vector<32x64xf32>
    %16 = arith.cmpf ogt, %9, %14 : vector<32x64xf32>
    %cst_13 = arith.constant 0.000000e+00 : f32
    %17 = vector.broadcast %cst_13 : f32 to vector<32x64xf32>
    %18 = arith.cmpf ogt, %14, %17 : vector<32x64xf32>
    %19 = arith.ori %16, %18 : vector<32x64xi1>
    %20 = arith.mulf %15, %15 : vector<32x64xf32>
    %cst_14 = arith.constant 0.000000e+00 : f32
    %21 = vector.broadcast %cst_14 : f32 to vector<32x64xf32>
    %22 = arith.select %19, %20, %21 : vector<32x64xi1>, vector<32x64xf32>
    %23 = vector.shape_cast %22 : vector<32x64xf32> to vector<1x32x64xf32>
    %cst_15 = arith.constant dense<0.000000e+00> : vector<1xf32>
    %24 = vector.multi_reduction <add>, %23, %cst_15 [1, 2] : vector<1x32x64xf32> to vector<1xf32>
    %25 = vector.shape_cast %24 : vector<1xf32> to vector<1x1x1xf32>
    %26 = vector.extract %25[0, 0, 0] : f32 from vector<1x1x1xf32>
    %27 = vector.broadcast %26 : f32 to vector<1x1x8x128xf32>
    %c0_16 = arith.constant 0 : index
    %c0_17 = arith.constant 0 : index
    %c0_18 = arith.constant 0 : index
    %c0_19 = arith.constant 0 : index
    %28 = vector.load %arg8[%c0_16, %c0_17, %c0_18, %c0_19] : memref<1x1x8x128xf32, #tpu.memory_space<vmem>>, vector<1x1x8x128xf32>
    tpu.vector_store %arg8[%c0_16, %c0_17, %c0_18, %c0_19], %27 {strides = array<i32>} : memref<1x1x8x128xf32, #tpu.memory_space<vmem>>, vector<1x1x8x128xf32>,
    return
  }
  func.func @transform_0(%arg0: i32, %arg1: i32) -> (i32, i32) {
    %c0_i32 = arith.constant 0 : i32
    %c0_i32_0 = arith.constant 0 : i32
    %c0_i32_1 = arith.constant 0 : i32
    return %c0_i32, %c0_i32_0 : i32, i32
  }
  func.func @transform_1(%arg0: i32, %arg1: i32) -> (i32, i32) {
    %c0_i32 = arith.constant 0 : i32
    %c0_i32_0 = arith.constant 0 : i32
    %c0_i32_1 = arith.constant 0 : i32
    return %c0_i32, %c0_i32_0 : i32, i32
  }
  func.func @transform_2(%arg0: i32, %arg1: i32) -> (i32, i32) {
    %c0_i32 = arith.constant 0 : i32
    %c0_i32_0 = arith.constant 0 : i32
    %c0_i32_1 = arith.constant 0 : i32
    return %c0_i32, %c0_i32_0 : i32, i32
  }
  func.func @transform_3(%arg0: i32, %arg1: i32) -> (i32, i32) {
    %c0_i32 = arith.constant 0 : i32
    %c0_i32_0 = arith.constant 0 : i32
    %c0_i32_1 = arith.constant 0 : i32
    return %c0_i32, %c0_i32_0 : i32, i32
  }
  func.func @transform_4(%arg0: i32, %arg1: i32) -> (i32, i32, i32) {
    %c0_i32 = arith.constant 0 : i32
    %c0_i32_0 = arith.constant 0 : i32
    return %arg0, %c0_i32, %arg1 : i32, i32, i32
  }
  func.func @transform_5(%arg0: i32, %arg1: i32) -> (i32, i32, i32) {
    %c0_i32 = arith.constant 0 : i32
    %c0_i32_0 = arith.constant 0 : i32
    return %arg0, %c0_i32, %arg1 : i32, i32, i32
  }
  func.func @transform_6(%arg0: i32, %arg1: i32) -> (i32, i32, i32, i32) {
    %c0_i32 = arith.constant 0 : i32
    %c0_i32_0 = arith.constant 0 : i32
    %c0_i32_1 = arith.constant 0 : i32
    return %arg0, %arg1, %c0_i32, %c0_i32_0 : i32, i32, i32, i32
  }
}

module attributes {stable_mosaic.version = 11 : i64} {
  func.func @_loss_kernel(%arg0: i32, %arg1: i32, %arg2: memref<32x32xbf16, #tpu.memory_space<vmem>>, %arg3: memref<32x1xf32, #tpu.memory_space<vmem>>, %arg4: memref<32x1xf32, #tpu.memory_space<vmem>>, %arg5: memref<32x1xf32, #tpu.memory_space<vmem>>, %arg6: memref<1x32x64xbf16, #tpu.memory_space<vmem>>, %arg7: memref<1x32x64xf32, #tpu.memory_space<vmem>>, %arg8: memref<1x1x8x128xf32, #tpu.memory_space<vmem>>) attributes {dimension_semantics = [#tpu.dimension_semantics<parallel>, #tpu.dimension_semantics<parallel>], iteration_bounds = array<i64: 2, 1>, scalar_prefetch = 0 : i64, scratch_operands = 0 : i64, tpu.core_type = #tpu.core_type<tc>, window_params = [{pipeline_mode = #tpu.pipeline_mode<synchronous>, transform_indices = @transform_0, window_bounds = array<i64: 32, 32>}, {pipeline_mode = #tpu.pipeline_mode<synchronous>, transform_indices = @transform_1, window_bounds = array<i64: 32, 1>}, {pipeline_mode = #tpu.pipeline_mode<synchronous>, transform_indices = @transform_2, window_bounds = array<i64: 32, 1>}, {pipeline_mode = #tpu.pipeline_mode<synchronous>, transform_indices = @transform_3, window_bounds = array<i64: 32, 1>}, {transform_indices = @transform_4, window_bounds = array<i64: 1, 32, 64>}, {transform_indices = @transform_5, window_bounds = array<i64: 1, 32, 64>}, {transform_indices = @transform_6, window_bounds = array<i64: 1, 1, 8, 128>}]} {
    %c0 = arith.constant 0 : index
    %c0_0 = arith.constant 0 : index
    %0 = vector.load %arg2[%c0, %c0_0] : memref<32x32xbf16, #tpu.memory_space<vmem>>, vector<32x32xbf16>
    %c0_1 = arith.constant 0 : index
    %c0_2 = arith.constant 0 : index
    %c0_3 = arith.constant 0 : index
    %1 = vector.load %arg6[%c0_1, %c0_2, %c0_3] : memref<1x32x64xbf16, #tpu.memory_space<vmem>>, vector<1x32x64xbf16>
    %2 = vector.shape_cast %1 : vector<1x32x64xbf16> to vector<32x64xbf16>
    %cst = arith.constant dense<0.000000e+00> : vector<32x64xf32>
    %3 = tpu.matmul %0, %2, %cst {dimension_numbers = #tpu.dot_dimension_numbers<[1], [0], [0], [1], [0, 0, 1, 1], [], []>} : vector<32x32xbf16>, vector<32x64xbf16>, vector<32x64xf32> -> vector<32x64xf32>
    %c0_4 = arith.constant 0 : index
    %c0_5 = arith.constant 0 : index
    %4 = vector.load %arg3[%c0_4, %c0_5] : memref<32x1xf32, #tpu.memory_space<vmem>>, vector<32x1xf32>
    %5 = vector.broadcast %4 : vector<32x1xf32> to vector<32x64xf32>
    %6 = arith.mulf %3, %5 : vector<32x64xf32>
    %c0_6 = arith.constant 0 : index
    %c0_7 = arith.constant 0 : index
    %7 = vector.load %arg4[%c0_6, %c0_7] : memref<32x1xf32, #tpu.memory_space<vmem>>, vector<32x1xf32>
    %8 = vector.broadcast %7 : vector<32x1xf32> to vector<32x64xf32>
    %9 = arith.addf %6, %8 : vector<32x64xf32>
    %c0_8 = arith.constant 0 : index
    %c0_9 = arith.constant 0 : index
    %c0_10 = arith.constant 0 : index
    %10 = vector.load %arg7[%c0_8, %c0_9, %c0_10] : memref<1x32x64xf32, #tpu.memory_space<vmem>>, vector<1x32x64xf32>
    %11 = vector.shape_cast %10 : vector<1x32x64xf32> to vector<32x64xf32>
    %c0_11 = arith.constant 0 : index
    %c0_12 = arith.constant 0 : index
    %12 = vector.load %arg5[%c0_11, %c0_12] : memref<32x1xf32, #tpu.memory_space<vmem>>, vector<32x1xf32>
    %13 = vector.broadcast %12 : vector<32x1xf32> to vector<32x64xf32>
    %14 = arith.maximumf %11, %13 : vector<32x64xf32>
    %15 = arith.subf %9, %14 : vector<32x64xf32>
    %16 = arith.cmpf ogt, %9, %14 : vector<32x64xf32>
    %cst_13 = arith.constant 0.000000e+00 : f32
    %17 = vector.broadcast %cst_13 : f32 to vector<32x64xf32>
    %18 = arith.cmpf ogt, %14, %17 : vector<32x64xf32>
    %19 = arith.ori %16, %18 : vector<32x64xi1>
    %20 = arith.mulf %15, %15 : vector<32x64xf32>
    %cst_14 = arith.constant 0.000000e+00 : f32
    %21 = vector.broadcast %cst_14 : f32 to vector<32x64xf32>
    %22 = arith.select %19, %20, %21 : vector<32x64xi1>, vector<32x64xf32>
    %23 = vector.shape_cast %22 : vector<32x64xf32> to vector<1x32x64xf32>
    %cst_15 = arith.constant dense<0.000000e+00> : vector<1xf32>
    %24 = vector.multi_reduction <add>, %23, %cst_15 [1, 2] : vector<1x32x64xf32> to vector<1xf32>
    %25 = vector.shape_cast %24 : vector<1xf32> to vector<1x1x1xf32>
    %26 = vector.extract %25[0, 0, 0] : f32 from vector<1x1x1xf32>
    %27 = vector.broadcast %26 : f32 to vector<1x1x8x128xf32>
    %c0_16 = arith.constant 0 : index
    %c0_17 = arith.constant 0 : index
    %c0_18 = arith.constant 0 : index
    %c0_19 = arith.constant 0 : index
    %28 = vector.load %arg8[%c0_16, %c0_17, %c0_18, %c0_19] : memref<1x1x8x128xf32, #tpu.memory_space<vmem>>, vector<1x1x8x128xf32>
    tpu.vector_store %arg8[%c0_16, %c0_17, %c0_18, %c0_19], %27 {strides = array<i32>} : memref<1x1x8x128xf32, #tpu.memory_space<vmem>>, vector<1x1x8x128xf32>,
    return
  }
  func.func @transform_0(%arg0: i32, %arg1: i32) -> (i32, i32) {
    %c0_i32 = arith.constant 0 : i32
    %c0_i32_0 = arith.constant 0 : i32
    %c0_i32_1 = arith.constant 0 : i32
    return %c0_i32, %c0_i32_0 : i32, i32
  }
  func.func @transform_1(%arg0: i32, %arg1: i32) -> (i32, i32) {
    %c0_i32 = arith.constant 0 : i32
    %c0_i32_0 = arith.constant 0 : i32
    %c0_i32_1 = arith.constant 0 : i32
    return %c0_i32, %c0_i32_0 : i32, i32
  }
  func.func @transform_2(%arg0: i32, %arg1: i32) -> (i32, i32) {
    %c0_i32 = arith.constant 0 : i32
    %c0_i32_0 = arith.constant 0 : i32
    %c0_i32_1 = arith.constant 0 : i32
    return %c0_i32, %c0_i32_0 : i32, i32
  }
  func.func @transform_3(%arg0: i32, %arg1: i32) -> (i32, i32) {
    %c0_i32 = arith.constant 0 : i32
    %c0_i32_0 = arith.constant 0 : i32
    %c0_i32_1 = arith.constant 0 : i32
    return %c0_i32, %c0_i32_0 : i32, i32
  }
  func.func @transform_4(%arg0: i32, %arg1: i32) -> (i32, i32, i32) {
    %c0_i32 = arith.constant 0 : i32
    %c0_i32_0 = arith.constant 0 : i32
    return %arg0, %c0_i32, %arg1 : i32, i32, i32
  }
  func.func @transform_5(%arg0: i32, %arg1: i32) -> (i32, i32, i32) {
    %c0_i32 = arith.constant 0 : i32
    %c0_i32_0 = arith.constant 0 : i32
    return %arg0, %c0_i32, %arg1 : i32, i32, i32
  }
  func.func @transform_6(%arg0: i32, %arg1: i32) -> (i32, i32, i32, i32) {
    %c0_i32 = arith.constant 0 : i32
    %c0_i32_0 = arith.constant 0 : i32
    %c0_i32_1 = arith.constant 0 : i32
    return %arg0, %arg1, %c0_i32, %c0_i32_0 : i32, i32, i32, i32
  }
}

</mosaic_0001>

<llo_original>
// kernel: distiller_forward.6
$region0: #{distiller_forward.6}
  #allocation0 [shape = 'u32[]', space=smem, size = 0x4, offset = 0x4, fixed_abs, tag = 'smem constant byte address 0x4 - core index']
  #allocation1 [shape = 'u32[72,128]{1,0:T(1,128)}', space=vmem, size = 0x9000, scoped, tag = 'internal scratch']
  %s0 = inlined_call_operand.vmem [shape: bf16[16,8], index: 0, kind: input, shape index: {}]
  %s1 = inlined_call_operand.vmem [shape: bf16[2,8,256], index: 1, kind: input, shape index: {}]
  %s2 = inlined_call_operand.vmem [shape: f32[16,1], index: 2, kind: output, shape index: {0}]
  %s3 = inlined_call_operand.vmem [shape: f32[16,1], index: 3, kind: output, shape index: {1}]
  %4 = xla_tuple %s2, %s3
  %s5 = sld [smem:[#allocation0]]
  $region53: #{distiller_forward.6} parent=0
    _
  %s7 = ssub.s32 1, %s5
  %s8 = scalar_select 0, %s7, %s5
  loop: start=0, step=1, limit=4
  $region2: #{distiller_forward.6} parent=0 // loop_pre_header
    _
  $region3: #{distiller_forward.6} parent=0 // loop_header
    %s10 = sphi 0, %s14
    %p11 = scmp.ge.s32.totalorder %s10, 4
    %s17 = sphi 0, %s29
    %s18 = sphi 0, %s25
    %s19 = sphi 0, %s17
    %s20 = sphi 0, %s18
    %s21 = sphi 0, %s19
    %s22 = sphi 0, %s20
    %s30 = sphi 0, %s30
    %s32 = sphi 0, %s30
    %s33 = sphi 0, %s32
    %s47 = sphi 0, %s33
    %s55 = sphi 0, %s57
    %s58 = sphi 0, %s55
    %s59 = sphi 0, %s58
    %s75 = sphi 0, %s59
    %s79 = sphi 0, %s79
    %s81 = sphi 0, %s79
    %s82 = sphi 0, %s81
    %s96 = sphi 0, %s82
    %s100 = sphi 0, %s100
    %s102 = sphi 0, %s100
    %s103 = sphi 0, %s102
    %s117 = sphi 0, %s103
  $region4: #{distiller_forward.6} parent=0 // loop_header_branch
    %13 = sbr.rel (%p11) target = $region8
  $region5: #{distiller_forward.6} parent=0 // loop_body
    %s15 = ssub.s32 %s10, 1
    %s16 = ssub.s32 %s10, 2
    %s23 = sadd.s32 1, %s18
    %p24 = scmp.ge.s32.totalorder %s23, 1
    %s25 = scalar_select %p24, 0, %s23
    %s26 = sadd.s32 1, %s17
    %s27 = scalar_select %p24, %s26, %s17
    %p28 = scmp.ge.s32.totalorder %s27, 2
    %s29 = scalar_select %p28, 0, %s27
    %s31 = sadd.s32 %s30, 1
    %p34 = scmp.eq.s32.totalorder %s10, 1
    %p35 = scmp.ne.s32.totalorder %s30, %s32
    %p36 = scmp.eq.s32.totalorder %s10, 0
    %p37 = por %p35, %p36
    %p38 = scmp.ne.s32.totalorder %s30, %s32
    %p39 = scmp.eq.s32.totalorder %s15, 1
    %p40 = por %p38, %p39
    %p41 = scmp.ne.s32.totalorder %s32, %s33
    %p42 = scmp.eq.s32.totalorder %s15, 0
    %p43 = por %p41, %p42
    %p44 = scmp.ne.s32.totalorder %s32, %s33
    %p45 = scmp.eq.s32.totalorder %s16, 1
    %p46 = por %p44, %p45
    %p48 = scmp.ne.s32.totalorder %s33, %s47
    %p49 = scmp.eq.s32.totalorder %s16, 0
    %p50 = por %p48, %p49
    %s51 = ssub.s32 %s17, %s29
    %s52 = ssub.s32 %s18, %s25
    %s53 = sor.u32 %s51, %s52
    %p54 = scmp.eq.s32.totalorder %s53, 0
    %s56 = sadd.s32 %s55, 1
    %s57 = scalar_select %p54, %s55, %s56
    %p60 = pneg %p54
    %p61 = scmp.eq.s32.totalorder %s10, 1
    %p62 = por %p60, %p61
    %p63 = scmp.ne.s32.totalorder %s55, %s58
    %p64 = scmp.eq.s32.totalorder %s10, 0
    %p65 = por %p63, %p64
    %p66 = scmp.ne.s32.totalorder %s55, %s58
    %p67 = scmp.eq.s32.totalorder %s15, 1
    %p68 = por %p66, %p67
    %p69 = scmp.ne.s32.totalorder %s58, %s59
    %p70 = scmp.eq.s32.totalorder %s15, 0
    %p71 = por %p69, %p70
    %p72 = scmp.ne.s32.totalorder %s58, %s59
    %p73 = scmp.eq.s32.totalorder %s16, 1
    %p74 = por %p72, %p73
    %p76 = scmp.ne.s32.totalorder %s59, %s75
    %p77 = scmp.eq.s32.totalorder %s16, 0
    %p78 = por %p76, %p77
    %s80 = sadd.s32 %s79, 1
    %p83 = scmp.eq.s32.totalorder %s10, 1
    %p84 = scmp.ne.s32.totalorder %s79, %s81
    %p85 = scmp.eq.s32.totalorder %s10, 0
    %p86 = por %p84, %p85
    %p87 = scmp.ne.s32.totalorder %s79, %s81
    %p88 = scmp.eq.s32.totalorder %s15, 1
    %p89 = por %p87, %p88
    %p90 = scmp.ne.s32.totalorder %s81, %s82
    %p91 = scmp.eq.s32.totalorder %s15, 0
    %p92 = por %p90, %p91
    %p93 = scmp.ne.s32.totalorder %s81, %s82
    %p94 = scmp.eq.s32.totalorder %s16, 1
    %p95 = por %p93, %p94
    %p97 = scmp.ne.s32.totalorder %s82, %s96
    %p98 = scmp.eq.s32.totalorder %s16, 0
    %p99 = por %p97, %p98
    %s101 = sadd.s32 %s100, 1
    %p104 = scmp.eq.s32.totalorder %s10, 1
    %p105 = scmp.ne.s32.totalorder %s100, %s102
    %p106 = scmp.eq.s32.totalorder %s10, 0
    %p107 = por %p105, %p106
    %p108 = scmp.ne.s32.totalorder %s100, %s102
    %p109 = scmp.eq.s32.totalorder %s15, 1
    %p110 = por %p108, %p109
    %p111 = scmp.ne.s32.totalorder %s102, %s103
    %p112 = scmp.eq.s32.totalorder %s15, 0
    %p113 = por %p111, %p112
    %p114 = scmp.ne.s32.totalorder %s102, %s103
    %p115 = scmp.eq.s32.totalorder %s16, 1
    %p116 = por %p114, %p115
    %p118 = scmp.ne.s32.totalorder %s103, %s117
    %p119 = scmp.eq.s32.totalorder %s16, 0
    %p120 = por %p118, %p119
    %p121 = scmp.le.s32.totalorder 1, %s10
    %p122 = scmp.lt.s32.totalorder %s10, 3
    %p123 = pnand %p121, %p122
    %p124 = pneg %p123
    // Predicated region
    $region9: #{distiller_forward.6} parent=5 // pred_check
      _
    $region10: #{distiller_forward.6} parent=5 // pred_check_branch
      %126 = sbr.rel (%p123) target = $region12
    $region11: #{distiller_forward.6} parent=5 // pred_region
      %s127 = ssub.s32 %s10, 1
      // Predicated region
      $region13: #{distiller_forward.6} parent=11 // pred_check
        %p128 = pneg %p43
      $region14: #{distiller_forward.6} parent=11 // pred_check_branch
        %130 = sbr.rel (%p128) target = $region16
      $region15: #{distiller_forward.6} parent=11 // pred_region
        _
      $region16: #{distiller_forward.6} parent=11 // pred_fallthru
        _
    $region12: #{distiller_forward.6} parent=5 // pred_fallthru
      _
    %p131 = scmp.lt.s32.totalorder %s10, 2
    // Predicated region
    $region17: #{distiller_forward.6} parent=5 // pred_check
      %p132 = pneg %p131
    $region18: #{distiller_forward.6} parent=5 // pred_check_branch
      %134 = sbr.rel (%p132) target = $region20
    $region19: #{distiller_forward.6} parent=5 // pred_region
      // Predicated region
      $region21: #{distiller_forward.6} parent=19 // pred_check
        %p135 = pneg %p65
      $region22: #{distiller_forward.6} parent=19 // pred_check_branch
        %137 = sbr.rel (%p135) target = $region24
      $region23: #{distiller_forward.6} parent=19 // pred_region
        %s138 = smul.u32 2, %s18
        %p139 = scmp.lt.s32.totalorder %s17, 1
        %s140 = scalar_select %p139, %s17, 1
        %p141 = scmp.lt.s32.totalorder %s138, 1
        %s142 = scalar_select %p141, %s138, 1
        %s143 = smul.addr %s140, 2
        %s144 = sadd.s32 %s142, %s143
        %s145 = smul.addr %s144, 4
        %s146 = scalar_lea.vmem %s1, %s145
        %s147 = smul.u32 2, %s18
      $region24: #{distiller_forward.6} parent=19 // pred_fallthru
        _
    $region20: #{distiller_forward.6} parent=5 // pred_fallthru
      _
    %p148 = scmp.le.s32.totalorder 1, %s10
    %p149 = scmp.lt.s32.totalorder %s10, 3
    %p150 = pnand %p148, %p149
    %p151 = pneg %p150
    // Predicated region
    $region25: #{distiller_forward.6} parent=5 // pred_check
      _
    $region26: #{distiller_forward.6} parent=5 // pred_check_branch
      %153 = sbr.rel (%p150) target = $region28
    $region27: #{distiller_forward.6} parent=5 // pred_region
      %s154 = ssub.s32 %s10, 1
      %p155 = pneg %p43
      %p156 = pneg %p40
      %s157 = smul.u32 2, %s20
      %p158 = scmp.lt.s32.totalorder %s19, 1
      %s159 = scalar_select %p158, %s19, 1
      %p160 = scmp.lt.s32.totalorder %s157, 1
      %s161 = scalar_select %p160, %s157, 1
      %s162 = smul.addr %s159, 2
      %s163 = sadd.s32 %s161, %s162
      %s164 = smul.addr %s163, 4
      %s165 = scalar_lea.vmem %s1, %s164
      %p166 = pneg %p71
      %p167 = pneg %p68
      %p168 = pneg %p92
      %p169 = pneg %p89
      %p170 = pneg %p113
      %p171 = pneg %p110
      %s172 = smul.u32 2, %s20
      %p173 = scmp.lt.s32.totalorder %s19, 1
      %s174 = scalar_select %p173, %s19, 1
      %p175 = scmp.lt.s32.totalorder %s172, 1
      %s176 = scalar_select %p175, %s172, 1
      %s177 = smul.addr %s174, 2
      %s178 = sadd.s32 %s176, %s177
      %s179 = smul.addr %s178, 4
      %s180 = scalar_lea.vmem %s1, %s179
      %s181 = smul.u32 2, %s20
      %p183 = scmp.eq.s32.totalorder %s19, 0
      %p184 = scmp.eq.s32.totalorder %s20, 0
      %p185 = pnand %p183, %p184
      %p186 = pneg %p185
      // Predicated region
      $region29: #{distiller_forward.6} parent=27 // pred_check
        _
      $region30: #{distiller_forward.6} parent=27 // pred_check_branch
        %188 = sbr.rel (%p185) target = $region32
      $region31: #{distiller_forward.6} parent=27 // pred_region
        %vm189 = vcmask 7168
        %190 = vst.msk [vmem:[%s2] sm:$0xff] %vm189, 0.0
        %191 = vst.msk [vmem:[%s2 + $0x8] sm:$0xff] %vm189, 0.0
        %192 = vst.msk [vmem:[%s3] sm:$0xff] %vm189, 0.0
        %193 = vst.msk [vmem:[%s3 + $0x8] sm:$0xff] %vm189, 0.0
      $region32: #{distiller_forward.6} parent=27 // pred_fallthru
        _
      %v194 = vld [vmem:[%s0] sm:$0xf]
      %v195 = vld [vmem:[%s0 + $0x4] sm:$0xf]
      %v196 = vld [vmem:[%s180] sm:$0xff]
      %v199 = vunpack.c.l.b16 %v194
      %v200 = vunpack.c.l.b16 %v195
      %v201 = vpack.c.b16 %v200, %v199
      %v203 = vunpack.c.l.b16 %v196
      %v204 = vunpack.c.h.b16 %v196
      %v205 = vpack.c.b16 %v203, %v203
      %v206 = vpack.c.b16 %v204, %v204
      %vm207 = vcmask 64512
      %v209 = vsel %vm207, %v201, 0
      %vm211 = vcmask 1043456
      %v213 = vsel %vm211, %v205, 0
      %v216 = vsel %vm211, %v206, 0
      %218 = vmatpush.bf16.msra.mxu0 0
      %219 = vmatpush.bf16.msra.mxu0 0
      %220 = vmatpush.bf16.msra.mxu0 0
      %221 = vmatpush.bf16.msra.mxu0 0
      %222 = vmatpush.bf16.msra.mxu0 0
      %223 = vmatpush.bf16.msra.mxu0 0
      %224 = vmatpush.bf16.msra.mxu0 0
      %225 = vmatpush.bf16.msra.mxu0 %v213
      %226 = vmatmul.bf16.gmra.mxu0 %v209
      %v227 = vpop.f32.mrf.mxu0
      %v228 = vadd.f32 0.0, %v227
      %v229 = vpop.f32.mrf.mxu0
      %v230 = vadd.f32 0.0, %v229
      %231 = vdwg.mxu0
      %232 = vmatpush.bf16.msra.mxu0 0
      %233 = vmatpush.bf16.msra.mxu0 0
      %234 = vmatpush.bf16.msra.mxu0 0
      %235 = vmatpush.bf16.msra.mxu0 0
      %236 = vmatpush.bf16.msra.mxu0 0
      %237 = vmatpush.bf16.msra.mxu0 0
      %238 = vmatpush.bf16.msra.mxu0 0
      %239 = vmatpush.bf16.msra.mxu0 %v216
      %240 = vmatmul.bf16.gmra.mxu0 %v209
      %v241 = vpop.f32.mrf.mxu0
      %v242 = vadd.f32 0.0, %v241
      %v243 = vpop.f32.mrf.mxu0
      %v244 = vadd.f32 0.0, %v243
      %245 = vdwg.mxu0
      %v246 = vld [vmem:[%s2] sm:$0xff]
      %v247 = vld [vmem:[%s2 + $0x8] sm:$0xff]
      %v248 = vadd.f32 %v228, %v242
      %249 = vadd.xlane.f32.xlu0 %v248
      %v250 = vpop.xlane.xlu0 %249
      %v251 = vadd.f32 %v230, %v244
      %252 = vadd.xlane.f32.xlu0 %v251
      %v253 = vpop.xlane.xlu0 %252
      %v254 = vadd.f32 %v246, %v250
      %v255 = vadd.f32 %v247, %v253
      %vm256 = vcmask 7168
      %257 = vst.msk [vmem:[%s2] sm:$0xff] %vm256, %v254
      %258 = vst.msk [vmem:[%s2 + $0x8] sm:$0xff] %vm256, %v255
      %v259 = vld [vmem:[%s3] sm:$0xff]
      %v260 = vld [vmem:[%s3 + $0x8] sm:$0xff]
      %v261 = vmul.f32 %v228, %v228
      %v262 = vmul.f32 %v242, %v242
      %v263 = vmul.f32 %v230, %v230
      %v264 = vmul.f32 %v244, %v244
      %v265 = vadd.f32 %v261, %v262
      %266 = vadd.xlane.f32.xlu0 %v265
      %v267 = vpop.xlane.xlu0 %266
      %v268 = vadd.f32 %v263, %v264
      %269 = vadd.xlane.f32.xlu0 %v268
      %v270 = vpop.xlane.xlu0 %269
      %v271 = vadd.f32 %v259, %v267
      %v272 = vadd.f32 %v260, %v270
      %273 = vst.msk [vmem:[%s3] sm:$0xff] %vm256, %v271
      %274 = vst.msk [vmem:[%s3 + $0x8] sm:$0xff] %vm256, %v272
      // Predicated region
      $region33: #{distiller_forward.6} parent=27 // pred_check
        %p275 = pneg %p89
      $region34: #{distiller_forward.6} parent=27 // pred_check_branch
        %277 = sbr.rel (%p275) target = $region36
      $region35: #{distiller_forward.6} parent=27 // pred_region
        _
      $region36: #{distiller_forward.6} parent=27 // pred_fallthru
        _
      // Predicated region
      $region37: #{distiller_forward.6} parent=27 // pred_check
        %p278 = pneg %p110
      $region38: #{distiller_forward.6} parent=27 // pred_check_branch
        %280 = sbr.rel (%p278) target = $region40
      $region39: #{distiller_forward.6} parent=27 // pred_region
        _
      $region40: #{distiller_forward.6} parent=27 // pred_fallthru
        _
      // Predicated region
      $region41: #{distiller_forward.6} parent=27 // pred_check
        %p281 = pneg %p89
      $region42: #{distiller_forward.6} parent=27 // pred_check_branch
        %283 = sbr.rel (%p281) target = $region44
      $region43: #{distiller_forward.6} parent=27 // pred_region
        _
      $region44: #{distiller_forward.6} parent=27 // pred_fallthru
        _
      // Predicated region
      $region45: #{distiller_forward.6} parent=27 // pred_check
        %p284 = pneg %p110
      $region46: #{distiller_forward.6} parent=27 // pred_check_branch
        %286 = sbr.rel (%p284) target = $region48
      $region47: #{distiller_forward.6} parent=27 // pred_region
        _
      $region48: #{distiller_forward.6} parent=27 // pred_fallthru
        _
    $region28: #{distiller_forward.6} parent=5 // pred_fallthru
      _
    %p287 = scmp.le.s32.totalorder 2, %s10
    // Predicated region
    $region49: #{distiller_forward.6} parent=5 // pred_check
      %p288 = pneg %p287
    $region50: #{distiller_forward.6} parent=5 // pred_check_branch
      %290 = sbr.rel (%p288) target = $region52
    $region51: #{distiller_forward.6} parent=5 // pred_region
      %s291 = ssub.s32 %s10, 2
    $region52: #{distiller_forward.6} parent=5 // pred_fallthru
      _
  $region6: #{distiller_forward.6} parent=0 // loop_footer
    %s14 = sadd.s32 1, %s10
  $region7: #{distiller_forward.6} parent=0 // loop_footer_branch
    %9 = sbr.rel target = $region3
  $region8: #{distiller_forward.6} parent=0 // loop_exit
    _

// kernel: distiller_forward.7
$region0: #{distiller_forward.7}
  #allocation0 [shape = 'u32[]', space=smem, size = 0x4, offset = 0x4, fixed_abs, tag = 'smem constant byte address 0x4 - core index']
  #allocation1 [shape = 'u32[72,128]{1,0:T(1,128)}', space=vmem, size = 0x9000, scoped, tag = 'internal scratch']
  %s0 = inlined_call_operand.vmem [shape: bf16[16,8], index: 0, kind: input, shape index: {}]
  %s1 = inlined_call_operand.vmem [shape: f32[16,1], index: 1, kind: input, shape index: {}]
  %s2 = inlined_call_operand.vmem [shape: f32[16,1], index: 2, kind: input, shape index: {}]
  %s3 = inlined_call_operand.vmem [shape: f32[16,1], index: 3, kind: input, shape index: {}]
  %s4 = inlined_call_operand.vmem [shape: bf16[2,8,256], index: 4, kind: input, shape index: {}]
  %s5 = inlined_call_operand.vmem [shape: f32[2,16,256], index: 5, kind: input, shape index: {}]
  %s6 = inlined_call_operand.vmem [shape: f32[2,1,8,128], index: 6, kind: output, shape index: {}]
  %s7 = sld [smem:[#allocation0]]
  $region57: #{distiller_forward.7} parent=0
    _
  %s9 = ssub.s32 1, %s7
  %s10 = scalar_select 0, %s9, %s7
  loop: start=0, step=1, limit=4
  $region2: #{distiller_forward.7} parent=0 // loop_pre_header
    _
  $region3: #{distiller_forward.7} parent=0 // loop_header
    %s12 = sphi 0, %s16
    %p13 = scmp.ge.s32.totalorder %s12, 4
    %s19 = sphi 0, %s31
    %s20 = sphi 0, %s27
    %s21 = sphi 0, %s19
    %s22 = sphi 0, %s20
    %s23 = sphi 0, %s21
    %s24 = sphi 0, %s22
    %s32 = sphi 0, %s32
    %s34 = sphi 0, %s32
    %s35 = sphi 0, %s34
    %s49 = sphi 0, %s35
    %s53 = sphi 0, %s53
    %s55 = sphi 0, %s53
    %s56 = sphi 0, %s55
    %s70 = sphi 0, %s56
    %s74 = sphi 0, %s74
    %s76 = sphi 0, %s74
    %s77 = sphi 0, %s76
    %s91 = sphi 0, %s77
    %s95 = sphi 0, %s95
    %s97 = sphi 0, %s95
    %s98 = sphi 0, %s97
    %s112 = sphi 0, %s98
    %s120 = sphi 0, %s122
    %s123 = sphi 0, %s120
    %s124 = sphi 0, %s123
    %s140 = sphi 0, %s124
    %s148 = sphi 0, %s150
    %s151 = sphi 0, %s148
    %s152 = sphi 0, %s151
    %s168 = sphi 0, %s152
    %s176 = sphi 0, %s178
    %s179 = sphi 0, %s176
    %s180 = sphi 0, %s179
    %s196 = sphi 0, %s180
  $region4: #{distiller_forward.7} parent=0 // loop_header_branch
    %15 = sbr.rel (%p13) target = $region8
  $region5: #{distiller_forward.7} parent=0 // loop_body
    %s17 = ssub.s32 %s12, 1
    %s18 = ssub.s32 %s12, 2
    %s25 = sadd.s32 1, %s20
    %p26 = scmp.ge.s32.totalorder %s25, 1
    %s27 = scalar_select %p26, 0, %s25
    %s28 = sadd.s32 1, %s19
    %s29 = scalar_select %p26, %s28, %s19
    %p30 = scmp.ge.s32.totalorder %s29, 2
    %s31 = scalar_select %p30, 0, %s29
    %s33 = sadd.s32 %s32, 1
    %p36 = scmp.eq.s32.totalorder %s12, 1
    %p37 = scmp.ne.s32.totalorder %s32, %s34
    %p38 = scmp.eq.s32.totalorder %s12, 0
    %p39 = por %p37, %p38
    %p40 = scmp.ne.s32.totalorder %s32, %s34
    %p41 = scmp.eq.s32.totalorder %s17, 1
    %p42 = por %p40, %p41
    %p43 = scmp.ne.s32.totalorder %s34, %s35
    %p44 = scmp.eq.s32.totalorder %s17, 0
    %p45 = por %p43, %p44
    %p46 = scmp.ne.s32.totalorder %s34, %s35
    %p47 = scmp.eq.s32.totalorder %s18, 1
    %p48 = por %p46, %p47
    %p50 = scmp.ne.s32.totalorder %s35, %s49
    %p51 = scmp.eq.s32.totalorder %s18, 0
    %p52 = por %p50, %p51
    %s54 = sadd.s32 %s53, 1
    %p57 = scmp.eq.s32.totalorder %s12, 1
    %p58 = scmp.ne.s32.totalorder %s53, %s55
    %p59 = scmp.eq.s32.totalorder %s12, 0
    %p60 = por %p58, %p59
    %p61 = scmp.ne.s32.totalorder %s53, %s55
    %p62 = scmp.eq.s32.totalorder %s17, 1
    %p63 = por %p61, %p62
    %p64 = scmp.ne.s32.totalorder %s55, %s56
    %p65 = scmp.eq.s32.totalorder %s17, 0
    %p66 = por %p64, %p65
    %p67 = scmp.ne.s32.totalorder %s55, %s56
    %p68 = scmp.eq.s32.totalorder %s18, 1
    %p69 = por %p67, %p68
    %p71 = scmp.ne.s32.totalorder %s56, %s70
    %p72 = scmp.eq.s32.totalorder %s18, 0
    %p73 = por %p71, %p72
    %s75 = sadd.s32 %s74, 1
    %p78 = scmp.eq.s32.totalorder %s12, 1
    %p79 = scmp.ne.s32.totalorder %s74, %s76
    %p80 = scmp.eq.s32.totalorder %s12, 0
    %p81 = por %p79, %p80
    %p82 = scmp.ne.s32.totalorder %s74, %s76
    %p83 = scmp.eq.s32.totalorder %s17, 1
    %p84 = por %p82, %p83
    %p85 = scmp.ne.s32.totalorder %s76, %s77
    %p86 = scmp.eq.s32.totalorder %s17, 0
    %p87 = por %p85, %p86
    %p88 = scmp.ne.s32.totalorder %s76, %s77
    %p89 = scmp.eq.s32.totalorder %s18, 1
    %p90 = por %p88, %p89
    %p92 = scmp.ne.s32.totalorder %s77, %s91
    %p93 = scmp.eq.s32.totalorder %s18, 0
    %p94 = por %p92, %p93
    %s96 = sadd.s32 %s95, 1
    %p99 = scmp.eq.s32.totalorder %s12, 1
    %p100 = scmp.ne.s32.totalorder %s95, %s97
    %p101 = scmp.eq.s32.totalorder %s12, 0
    %p102 = por %p100, %p101
    %p103 = scmp.ne.s32.totalorder %s95, %s97
    %p104 = scmp.eq.s32.totalorder %s17, 1
    %p105 = por %p103, %p104
    %p106 = scmp.ne.s32.totalorder %s97, %s98
    %p107 = scmp.eq.s32.totalorder %s17, 0
    %p108 = por %p106, %p107
    %p109 = scmp.ne.s32.totalorder %s97, %s98
    %p110 = scmp.eq.s32.totalorder %s18, 1
    %p111 = por %p109, %p110
    %p113 = scmp.ne.s32.totalorder %s98, %s112
    %p114 = scmp.eq.s32.totalorder %s18, 0
    %p115 = por %p113, %p114
    %s116 = ssub.s32 %s19, %s31
    %s117 = ssub.s32 %s20, %s27
    %s118 = sor.u32 %s116, %s117
    %p119 = scmp.eq.s32.totalorder %s118, 0
    %s121 = sadd.s32 %s120, 1
    %s122 = scalar_select %p119, %s120, %s121
    %p125 = pneg %p119
    %p126 = scmp.eq.s32.totalorder %s12, 1
    %p127 = por %p125, %p126
    %p128 = scmp.ne.s32.totalorder %s120, %s123
    %p129 = scmp.eq.s32.totalorder %s12, 0
    %p130 = por %p128, %p129
    %p131 = scmp.ne.s32.totalorder %s120, %s123
    %p132 = scmp.eq.s32.totalorder %s17, 1
    %p133 = por %p131, %p132
    %p134 = scmp.ne.s32.totalorder %s123, %s124
    %p135 = scmp.eq.s32.totalorder %s17, 0
    %p136 = por %p134, %p135
    %p137 = scmp.ne.s32.totalorder %s123, %s124
    %p138 = scmp.eq.s32.totalorder %s18, 1
    %p139 = por %p137, %p138
    %p141 = scmp.ne.s32.totalorder %s124, %s140
    %p142 = scmp.eq.s32.totalorder %s18, 0
    %p143 = por %p141, %p142
    %s144 = ssub.s32 %s19, %s31
    %s145 = ssub.s32 %s20, %s27
    %s146 = sor.u32 %s144, %s145
    %p147 = scmp.eq.s32.totalorder %s146, 0
    %s149 = sadd.s32 %s148, 1
    %s150 = scalar_select %p147, %s148, %s149
    %p153 = pneg %p147
    %p154 = scmp.eq.s32.totalorder %s12, 1
    %p155 = por %p153, %p154
    %p156 = scmp.ne.s32.totalorder %s148, %s151
    %p157 = scmp.eq.s32.totalorder %s12, 0
    %p158 = por %p156, %p157
    %p159 = scmp.ne.s32.totalorder %s148, %s151
    %p160 = scmp.eq.s32.totalorder %s17, 1
    %p161 = por %p159, %p160
    %p162 = scmp.ne.s32.totalorder %s151, %s152
    %p163 = scmp.eq.s32.totalorder %s17, 0
    %p164 = por %p162, %p163
    %p165 = scmp.ne.s32.totalorder %s151, %s152
    %p166 = scmp.eq.s32.totalorder %s18, 1
    %p167 = por %p165, %p166
    %p169 = scmp.ne.s32.totalorder %s152, %s168
    %p170 = scmp.eq.s32.totalorder %s18, 0
    %p171 = por %p169, %p170
    %s172 = ssub.s32 %s19, %s31
    %s173 = ssub.s32 %s20, %s27
    %s174 = sor.u32 %s172, %s173
    %p175 = scmp.eq.s32.totalorder %s174, 0
    %s177 = sadd.s32 %s176, 1
    %s178 = scalar_select %p175, %s176, %s177
    %p181 = pneg %p175
    %p182 = scmp.eq.s32.totalorder %s12, 1
    %p183 = por %p181, %p182
    %p184 = scmp.ne.s32.totalorder %s176, %s179
    %p185 = scmp.eq.s32.totalorder %s12, 0
    %p186 = por %p184, %p185
    %p187 = scmp.ne.s32.totalorder %s176, %s179
    %p188 = scmp.eq.s32.totalorder %s17, 1
    %p189 = por %p187, %p188
    %p190 = scmp.ne.s32.totalorder %s179, %s180
    %p191 = scmp.eq.s32.totalorder %s17, 0
    %p192 = por %p190, %p191
    %p193 = scmp.ne.s32.totalorder %s179, %s180
    %p194 = scmp.eq.s32.totalorder %s18, 1
    %p195 = por %p193, %p194
    %p197 = scmp.ne.s32.totalorder %s180, %s196
    %p198 = scmp.eq.s32.totalorder %s18, 0
    %p199 = por %p197, %p198
    %p200 = scmp.le.s32.totalorder 1, %s12
    %p201 = scmp.lt.s32.totalorder %s12, 3
    %p202 = pnand %p200, %p201
    %p203 = pneg %p202
    // Predicated region
    $region9: #{distiller_forward.7} parent=5 // pred_check
      _
    $region10: #{distiller_forward.7} parent=5 // pred_check_branch
      %205 = sbr.rel (%p202) target = $region12
    $region11: #{distiller_forward.7} parent=5 // pred_region
      %s206 = ssub.s32 %s12, 1
      // Predicated region
      $region13: #{distiller_forward.7} parent=11 // pred_check
        %p207 = pneg %p45
      $region14: #{distiller_forward.7} parent=11 // pred_check_branch
        %209 = sbr.rel (%p207) target = $region16
      $region15: #{distiller_forward.7} parent=11 // pred_region
        _
      $region16: #{distiller_forward.7} parent=11 // pred_fallthru
        _
      // Predicated region
      $region17: #{distiller_forward.7} parent=11 // pred_check
        %p210 = pneg %p66
      $region18: #{distiller_forward.7} parent=11 // pred_check_branch
        %212 = sbr.rel (%p210) target = $region20
      $region19: #{distiller_forward.7} parent=11 // pred_region
        _
      $region20: #{distiller_forward.7} parent=11 // pred_fallthru
        _
      // Predicated region
      $region21: #{distiller_forward.7} parent=11 // pred_check
        %p213 = pneg %p87
      $region22: #{distiller_forward.7} parent=11 // pred_check_branch
        %215 = sbr.rel (%p213) target = $region24
      $region23: #{distiller_forward.7} parent=11 // pred_region
        _
      $region24: #{distiller_forward.7} parent=11 // pred_fallthru
        _
      // Predicated region
      $region25: #{distiller_forward.7} parent=11 // pred_check
        %p216 = pneg %p108
      $region26: #{distiller_forward.7} parent=11 // pred_check_branch
        %218 = sbr.rel (%p216) target = $region28
      $region27: #{distiller_forward.7} parent=11 // pred_region
        _
      $region28: #{distiller_forward.7} parent=11 // pred_fallthru
        _
    $region12: #{distiller_forward.7} parent=5 // pred_fallthru
      _
    %p219 = scmp.lt.s32.totalorder %s12, 2
    // Predicated region
    $region29: #{distiller_forward.7} parent=5 // pred_check
      %p220 = pneg %p219
    $region30: #{distiller_forward.7} parent=5 // pred_check_branch
      %222 = sbr.rel (%p220) target = $region32
    $region31: #{distiller_forward.7} parent=5 // pred_region
      // Predicated region
      $region33: #{distiller_forward.7} parent=31 // pred_check
        %p223 = pneg %p130
      $region34: #{distiller_forward.7} parent=31 // pred_check_branch
        %225 = sbr.rel (%p223) target = $region36
      $region35: #{distiller_forward.7} parent=31 // pred_region
        %s226 = smul.u32 2, %s20
        %p227 = scmp.lt.s32.totalorder %s19, 1
        %s228 = scalar_select %p227, %s19, 1
        %p229 = scmp.lt.s32.totalorder %s226, 1
        %s230 = scalar_select %p229, %s226, 1
        %s231 = smul.addr %s228, 2
        %s232 = sadd.s32 %s230, %s231
        %s233 = smul.addr %s232, 4
        %s234 = scalar_lea.vmem %s4, %s233
        %s235 = smul.u32 2, %s20
      $region36: #{distiller_forward.7} parent=31 // pred_fallthru
        _
      // Predicated region
      $region37: #{distiller_forward.7} parent=31 // pred_check
        %p236 = pneg %p158
      $region38: #{distiller_forward.7} parent=31 // pred_check_branch
        %238 = sbr.rel (%p236) target = $region40
      $region39: #{distiller_forward.7} parent=31 // pred_region
        %s239 = smul.u32 2, %s20
        %p240 = scmp.lt.s32.totalorder %s19, 1
        %s241 = scalar_select %p240, %s19, 1
        %p242 = scmp.lt.s32.totalorder %s239, 1
        %s243 = scalar_select %p242, %s239, 1
        %s244 = smul.addr %s241, 4
        %s245 = sadd.s32 %s243, %s244
        %s246 = smul.addr %s245, 8
        %s247 = scalar_lea.vmem %s5, %s246
        %s248 = smul.u32 2, %s20
      $region40: #{distiller_forward.7} parent=31 // pred_fallthru
        _
    $region32: #{distiller_forward.7} parent=5 // pred_fallthru
      _
    %p249 = scmp.le.s32.totalorder 1, %s12
    %p250 = scmp.lt.s32.totalorder %s12, 3
    %p251 = pnand %p249, %p250
    %p252 = pneg %p251
    // Predicated region
    $region41: #{distiller_forward.7} parent=5 // pred_check
      _
    $region42: #{distiller_forward.7} parent=5 // pred_check_branch
      %254 = sbr.rel (%p251) target = $region44
    $region43: #{distiller_forward.7} parent=5 // pred_region
      %s255 = ssub.s32 %s12, 1
      %p256 = pneg %p45
      %p257 = pneg %p42
      %p258 = pneg %p66
      %p259 = pneg %p63
      %p260 = pneg %p87
      %p261 = pneg %p84
      %p262 = pneg %p108
      %p263 = pneg %p105
      %s264 = smul.u32 2, %s22
      %p265 = scmp.lt.s32.totalorder %s21, 1
      %s266 = scalar_select %p265, %s21, 1
      %p267 = scmp.lt.s32.totalorder %s264, 1
      %s268 = scalar_select %p267, %s264, 1
      %s269 = smul.addr %s266, 2
      %s270 = sadd.s32 %s268, %s269
      %s271 = smul.addr %s270, 4
      %s272 = scalar_lea.vmem %s4, %s271
      %p273 = pneg %p136
      %p274 = pneg %p133
      %s275 = smul.u32 2, %s22
      %p276 = scmp.lt.s32.totalorder %s21, 1
      %s277 = scalar_select %p276, %s21, 1
      %p278 = scmp.lt.s32.totalorder %s275, 1
      %s279 = scalar_select %p278, %s275, 1
      %s280 = smul.addr %s277, 4
      %s281 = sadd.s32 %s279, %s280
      %s282 = smul.addr %s281, 8
      %s283 = scalar_lea.vmem %s5, %s282
      %p284 = pneg %p164
      %p285 = pneg %p161
      %p286 = pneg %p192
      %p287 = pneg %p189
      %p288 = scmp.lt.s32.totalorder %s21, 1
      %s289 = scalar_select %p288, %s21, 1
      %p290 = scmp.lt.s32.totalorder %s22, 0
      %s291 = scalar_select %p290, %s22, 0
      %s292 = sadd.s32 %s291, %s289
      %s293 = smul.addr %s292, 8
      %s294 = scalar_lea.vmem %s6, %s293
      %s295 = smul.u32 2, %s22
      %p296 = scmp.lt.s32.totalorder %s21, 1
      %s297 = scalar_select %p296, %s21, 1
      %p298 = scmp.lt.s32.totalorder %s295, 1
      %s299 = scalar_select %p298, %s295, 1
      %s300 = smul.addr %s297, 2
      %s301 = sadd.s32 %s299, %s300
      %s302 = smul.addr %s301, 4
      %s303 = scalar_lea.vmem %s4, %s302
      %s304 = smul.u32 2, %s22
      %s305 = smul.u32 2, %s22
      %p306 = scmp.lt.s32.totalorder %s21, 1
      %s307 = scalar_select %p306, %s21, 1
      %p308 = scmp.lt.s32.totalorder %s305, 1
      %s309 = scalar_select %p308, %s305, 1
      %s310 = smul.addr %s307, 4
      %s311 = sadd.s32 %s309, %s310
      %s312 = smul.addr %s311, 8
      %s313 = scalar_lea.vmem %s5, %s312
      %s314 = smul.u32 2, %s22
      %p315 = scmp.lt.s32.totalorder %s21, 1
      %s316 = scalar_select %p315, %s21, 1
      %p317 = scmp.lt.s32.totalorder %s22, 0
      %s318 = scalar_select %p317, %s22, 0
      %s319 = sadd.s32 %s318, %s316
      %s320 = smul.addr %s319, 8
      %s321 = scalar_lea.vmem %s6, %s320
      %v323 = vld [vmem:[%s0] sm:$0xf]
      %v324 = vld [vmem:[%s0 + $0x4] sm:$0xf]
      %v325 = vld [vmem:[%s303] sm:$0xff]
      %v328 = vunpack.c.l.b16 %v323
      %v329 = vunpack.c.l.b16 %v324
      %v330 = vpack.c.b16 %v329, %v328
      %v332 = vunpack.c.l.b16 %v325
      %v333 = vunpack.c.h.b16 %v325
      %v334 = vpack.c.b16 %v332, %v332
      %v335 = vpack.c.b16 %v333, %v333
      %vm336 = vcmask 64512
      %v338 = vsel %vm336, %v330, 0
      %vm340 = vcmask 1043456
      %v342 = vsel %vm340, %v334, 0
      %v345 = vsel %vm340, %v335, 0
      %347 = vmatpush.bf16.msra.mxu0 0
      %348 = vmatpush.bf16.msra.mxu0 0
      %349 = vmatpush.bf16.msra.mxu0 0
      %350 = vmatpush.bf16.msra.mxu0 0
      %351 = vmatpush.bf16.msra.mxu0 0
      %352 = vmatpush.bf16.msra.mxu0 0
      %353 = vmatpush.bf16.msra.mxu0 0
      %354 = vmatpush.bf16.msra.mxu0 %v342
      %355 = vmatmul.bf16.gmra.mxu0 %v338
      %v356 = vpop.f32.mrf.mxu0
      %v357 = vadd.f32 0.0, %v356
      %v358 = vpop.f32.mrf.mxu0
      %v359 = vadd.f32 0.0, %v358
      %360 = vdwg.mxu0
      %361 = vmatpush.bf16.msra.mxu0 0
      %362 = vmatpush.bf16.msra.mxu0 0
      %363 = vmatpush.bf16.msra.mxu0 0
      %364 = vmatpush.bf16.msra.mxu0 0
      %365 = vmatpush.bf16.msra.mxu0 0
      %366 = vmatpush.bf16.msra.mxu0 0
      %367 = vmatpush.bf16.msra.mxu0 0
      %368 = vmatpush.bf16.msra.mxu0 %v345
      %369 = vmatmul.bf16.gmra.mxu0 %v338
      %v370 = vpop.f32.mrf.mxu0
      %v371 = vadd.f32 0.0, %v370
      %v372 = vpop.f32.mrf.mxu0
      %v373 = vadd.f32 0.0, %v372
      %374 = vdwg.mxu0
      %v375 = vld [vmem:[%s1] sm:$0xff]
      %v376 = vld [vmem:[%s1 + $0x8] sm:$0xff]
      %378 = vset.pattern.permute.xlu0 0
      %379 = vperm.xlu0 %378, %v375
      %v380 = vpop.permute.xlu0 %379
      %383 = vset.pattern.permute.xlu0 0
      %384 = vperm.xlu0 %383, %v376
      %v385 = vpop.permute.xlu0 %384
      %v387 = vmul.f32 %v357, %v380
      %v388 = vmul.f32 %v371, %v380
      %v389 = vmul.f32 %v359, %v385
      %v390 = vmul.f32 %v373, %v385
      %v391 = vld [vmem:[%s2] sm:$0xff]
      %v392 = vld [vmem:[%s2 + $0x8] sm:$0xff]
      %394 = vset.pattern.permute.xlu0 0
      %395 = vperm.xlu0 %394, %v391
      %v396 = vpop.permute.xlu0 %395
      %399 = vset.pattern.permute.xlu0 0
      %400 = vperm.xlu0 %399, %v392
      %v401 = vpop.permute.xlu0 %400
      %v403 = vadd.f32 %v387, %v396
      %v404 = vadd.f32 %v388, %v396
      %v405 = vadd.f32 %v389, %v401
      %v406 = vadd.f32 %v390, %v401
      %v407 = vld [vmem:[%s313] sm:$0xff]
      %v408 = vld [vmem:[%s313 + $0x8] sm:$0xff]
      %v409 = vld [vmem:[%s313 + $0x10] sm:$0xff]
      %v410 = vld [vmem:[%s313 + $0x18] sm:$0xff]
      %v411 = vld [vmem:[%s3] sm:$0xff]
      %v412 = vld [vmem:[%s3 + $0x8] sm:$0xff]
      %414 = vset.pattern.permute.xlu0 0
      %415 = vperm.xlu0 %414, %v411
      %v416 = vpop.permute.xlu0 %415
      %419 = vset.pattern.permute.xlu0 0
      %420 = vperm.xlu0 %419, %v412
      %v421 = vpop.permute.xlu0 %420
      %v423 = vmax.f32 %v407, %v416
      %v424 = vmax.f32 %v408, %v416
      %v425 = vmax.f32 %v409, %v421
      %v426 = vmax.f32 %v410, %v421
      %v427 = vsub.f32 %v403, %v423
      %v428 = vsub.f32 %v404, %v424
      %v429 = vsub.f32 %v405, %v425
      %v430 = vsub.f32 %v406, %v426
      %vm431 = vcmp.gt.f32.partialorder %v403, %v423
      %vm432 = vcmp.gt.f32.partialorder %v404, %v424
      %vm433 = vcmp.gt.f32.partialorder %v405, %v425
      %vm434 = vcmp.gt.f32.partialorder %v406, %v426
      %vm435 = vcmp.gt.f32.partialorder %v423, 0.0
      %vm436 = vcmp.gt.f32.partialorder %v424, 0.0
      %vm437 = vcmp.gt.f32.partialorder %v425, 0.0
      %vm438 = vcmp.gt.f32.partialorder %v426, 0.0
      %vm439 = vmor %vm431, %vm435
      %vm440 = vmor %vm432, %vm436
      %vm441 = vmor %vm433, %vm437
      %vm442 = vmor %vm434, %vm438
      %v443 = vmul.f32 %v427, %v427
      %v444 = vmul.f32 %v428, %v428
      %v445 = vmul.f32 %v429, %v429
      %v446 = vmul.f32 %v430, %v430
      %v447 = vsel %vm439, %v443, 0.0
      %v448 = vsel %vm440, %v444, 0.0
      %v449 = vsel %vm441, %v445, 0.0
      %v450 = vsel %vm442, %v446, 0.0
      %v451 = vadd.f32 %v447, %v448
      %v452 = vadd.f32 %v451, %v449
      %v453 = vadd.f32 %v452, %v450
      %454 = vadd.xlane.f32.xlu0 %v453
      %v455 = vpop.xlane.xlu0 %454
      %v456 = vrot.slane %v455, 4
      %v457 = vadd.f32 %v455, %v456
      %v458 = vrot.slane %v457, 2
      %v459 = vadd.f32 %v457, %v458
      %v460 = vrot.slane %v459, 1
      %v461 = vadd.f32 %v459, %v460
      %s462 = vtos %v461
      %v463 = vstv %s462
      %464 = vst [vmem:[%s321] sm:$0xff] %v463
      %p465 = scmp.lt.s32.totalorder %s21, 1
      %s466 = scalar_select %p465, %s21, 1
      %p467 = scmp.lt.s32.totalorder %s22, 0
      %s468 = scalar_select %p467, %s22, 0
      %s469 = sadd.s32 %s468, %s466
      %s470 = smul.addr %s469, 8
      %s471 = scalar_lea.vmem %s6, %s470
      // Predicated region
      $region45: #{distiller_forward.7} parent=43 // pred_check
        %p472 = pneg %p189
      $region46: #{distiller_forward.7} parent=43 // pred_check_branch
        %474 = sbr.rel (%p472) target = $region48
      $region47: #{distiller_forward.7} parent=43 // pred_region
        _
      $region48: #{distiller_forward.7} parent=43 // pred_fallthru
        _
    $region44: #{distiller_forward.7} parent=5 // pred_fallthru
      _
    %p475 = scmp.le.s32.totalorder 2, %s12
    // Predicated region
    $region49: #{distiller_forward.7} parent=5 // pred_check
      %p476 = pneg %p475
    $region50: #{distiller_forward.7} parent=5 // pred_check_branch
      %478 = sbr.rel (%p476) target = $region52
    $region51: #{distiller_forward.7} parent=5 // pred_region
      %s479 = ssub.s32 %s12, 2
      // Predicated region
      $region53: #{distiller_forward.7} parent=51 // pred_check
        %p480 = pneg %p195
      $region54: #{distiller_forward.7} parent=51 // pred_check_branch
        %482 = sbr.rel (%p480) target = $region56
      $region55: #{distiller_forward.7} parent=51 // pred_region
        %p483 = scmp.lt.s32.totalorder %s23, 1
        %s484 = scalar_select %p483, %s23, 1
        %p485 = scmp.lt.s32.totalorder %s24, 0
        %s486 = scalar_select %p485, %s24, 0
        %s487 = sadd.s32 %s486, %s484
        %s488 = smul.addr %s487, 8
        %s489 = scalar_lea.vmem %s6, %s488
      $region56: #{distiller_forward.7} parent=51 // pred_fallthru
        _
    $region52: #{distiller_forward.7} parent=5 // pred_fallthru
      _
  $region6: #{distiller_forward.7} parent=0 // loop_footer
    %s16 = sadd.s32 1, %s12
  $region7: #{distiller_forward.7} parent=0 // loop_footer_branch
    %11 = sbr.rel target = $region3
  $region8: #{distiller_forward.7} parent=0 // loop_exit
    _

// kernel: distiller_forward.8
$region0: #{distiller_forward.8}
  #allocation0 [shape = 'u32[]', space=smem, size = 0x4, offset = 0x4, fixed_abs, tag = 'smem constant byte address 0x4 - core index']
  #allocation1 [shape = 'u32[72,128]{1,0:T(1,128)}', space=vmem, size = 0x9000, scoped, tag = 'internal scratch']
  %s0 = inlined_call_operand.vmem [shape: bf16[32,16], index: 0, kind: input, shape index: {}]
  %s1 = inlined_call_operand.vmem [shape: bf16[2,16,64], index: 1, kind: input, shape index: {}]
  %s2 = inlined_call_operand.vmem [shape: f32[32,1], index: 2, kind: output, shape index: {0}]
  %s3 = inlined_call_operand.vmem [shape: f32[32,1], index: 3, kind: output, shape index: {1}]
  %4 = xla_tuple %s2, %s3
  %s5 = sld [smem:[#allocation0]]
  $region53: #{distiller_forward.8} parent=0
    _
  %s7 = ssub.s32 1, %s5
  %s8 = scalar_select 0, %s7, %s5
  loop: start=0, step=1, limit=4
  $region2: #{distiller_forward.8} parent=0 // loop_pre_header
    _
  $region3: #{distiller_forward.8} parent=0 // loop_header
    %s10 = sphi 0, %s14
    %p11 = scmp.ge.s32.totalorder %s10, 4
    %s17 = sphi 0, %s29
    %s18 = sphi 0, %s25
    %s19 = sphi 0, %s17
    %s20 = sphi 0, %s18
    %s21 = sphi 0, %s19
    %s22 = sphi 0, %s20
    %s30 = sphi 0, %s30
    %s32 = sphi 0, %s30
    %s33 = sphi 0, %s32
    %s47 = sphi 0, %s33
    %s55 = sphi 0, %s57
    %s58 = sphi 0, %s55
    %s59 = sphi 0, %s58
    %s75 = sphi 0, %s59
    %s79 = sphi 0, %s79
    %s81 = sphi 0, %s79
    %s82 = sphi 0, %s81
    %s96 = sphi 0, %s82
    %s100 = sphi 0, %s100
    %s102 = sphi 0, %s100
    %s103 = sphi 0, %s102
    %s117 = sphi 0, %s103
  $region4: #{distiller_forward.8} parent=0 // loop_header_branch
    %13 = sbr.rel (%p11) target = $region8
  $region5: #{distiller_forward.8} parent=0 // loop_body
    %s15 = ssub.s32 %s10, 1
    %s16 = ssub.s32 %s10, 2
    %s23 = sadd.s32 1, %s18
    %p24 = scmp.ge.s32.totalorder %s23, 1
    %s25 = scalar_select %p24, 0, %s23
    %s26 = sadd.s32 1, %s17
    %s27 = scalar_select %p24, %s26, %s17
    %p28 = scmp.ge.s32.totalorder %s27, 2
    %s29 = scalar_select %p28, 0, %s27
    %s31 = sadd.s32 %s30, 1
    %p34 = scmp.eq.s32.totalorder %s10, 1
    %p35 = scmp.ne.s32.totalorder %s30, %s32
    %p36 = scmp.eq.s32.totalorder %s10, 0
    %p37 = por %p35, %p36
    %p38 = scmp.ne.s32.totalorder %s30, %s32
    %p39 = scmp.eq.s32.totalorder %s15, 1
    %p40 = por %p38, %p39
    %p41 = scmp.ne.s32.totalorder %s32, %s33
    %p42 = scmp.eq.s32.totalorder %s15, 0
    %p43 = por %p41, %p42
    %p44 = scmp.ne.s32.totalorder %s32, %s33
    %p45 = scmp.eq.s32.totalorder %s16, 1
    %p46 = por %p44, %p45
    %p48 = scmp.ne.s32.totalorder %s33, %s47
    %p49 = scmp.eq.s32.totalorder %s16, 0
    %p50 = por %p48, %p49
    %s51 = ssub.s32 %s17, %s29
    %s52 = ssub.s32 %s18, %s25
    %s53 = sor.u32 %s51, %s52
    %p54 = scmp.eq.s32.totalorder %s53, 0
    %s56 = sadd.s32 %s55, 1
    %s57 = scalar_select %p54, %s55, %s56
    %p60 = pneg %p54
    %p61 = scmp.eq.s32.totalorder %s10, 1
    %p62 = por %p60, %p61
    %p63 = scmp.ne.s32.totalorder %s55, %s58
    %p64 = scmp.eq.s32.totalorder %s10, 0
    %p65 = por %p63, %p64
    %p66 = scmp.ne.s32.totalorder %s55, %s58
    %p67 = scmp.eq.s32.totalorder %s15, 1
    %p68 = por %p66, %p67
    %p69 = scmp.ne.s32.totalorder %s58, %s59
    %p70 = scmp.eq.s32.totalorder %s15, 0
    %p71 = por %p69, %p70
    %p72 = scmp.ne.s32.totalorder %s58, %s59
    %p73 = scmp.eq.s32.totalorder %s16, 1
    %p74 = por %p72, %p73
    %p76 = scmp.ne.s32.totalorder %s59, %s75
    %p77 = scmp.eq.s32.totalorder %s16, 0
    %p78 = por %p76, %p77
    %s80 = sadd.s32 %s79, 1
    %p83 = scmp.eq.s32.totalorder %s10, 1
    %p84 = scmp.ne.s32.totalorder %s79, %s81
    %p85 = scmp.eq.s32.totalorder %s10, 0
    %p86 = por %p84, %p85
    %p87 = scmp.ne.s32.totalorder %s79, %s81
    %p88 = scmp.eq.s32.totalorder %s15, 1
    %p89 = por %p87, %p88
    %p90 = scmp.ne.s32.totalorder %s81, %s82
    %p91 = scmp.eq.s32.totalorder %s15, 0
    %p92 = por %p90, %p91
    %p93 = scmp.ne.s32.totalorder %s81, %s82
    %p94 = scmp.eq.s32.totalorder %s16, 1
    %p95 = por %p93, %p94
    %p97 = scmp.ne.s32.totalorder %s82, %s96
    %p98 = scmp.eq.s32.totalorder %s16, 0
    %p99 = por %p97, %p98
    %s101 = sadd.s32 %s100, 1
    %p104 = scmp.eq.s32.totalorder %s10, 1
    %p105 = scmp.ne.s32.totalorder %s100, %s102
    %p106 = scmp.eq.s32.totalorder %s10, 0
    %p107 = por %p105, %p106
    %p108 = scmp.ne.s32.totalorder %s100, %s102
    %p109 = scmp.eq.s32.totalorder %s15, 1
    %p110 = por %p108, %p109
    %p111 = scmp.ne.s32.totalorder %s102, %s103
    %p112 = scmp.eq.s32.totalorder %s15, 0
    %p113 = por %p111, %p112
    %p114 = scmp.ne.s32.totalorder %s102, %s103
    %p115 = scmp.eq.s32.totalorder %s16, 1
    %p116 = por %p114, %p115
    %p118 = scmp.ne.s32.totalorder %s103, %s117
    %p119 = scmp.eq.s32.totalorder %s16, 0
    %p120 = por %p118, %p119
    %p121 = scmp.le.s32.totalorder 1, %s10
    %p122 = scmp.lt.s32.totalorder %s10, 3
    %p123 = pnand %p121, %p122
    %p124 = pneg %p123
    // Predicated region
    $region9: #{distiller_forward.8} parent=5 // pred_check
      _
    $region10: #{distiller_forward.8} parent=5 // pred_check_branch
      %126 = sbr.rel (%p123) target = $region12
    $region11: #{distiller_forward.8} parent=5 // pred_region
      %s127 = ssub.s32 %s10, 1
      // Predicated region
      $region13: #{distiller_forward.8} parent=11 // pred_check
        %p128 = pneg %p43
      $region14: #{distiller_forward.8} parent=11 // pred_check_branch
        %130 = sbr.rel (%p128) target = $region16
      $region15: #{distiller_forward.8} parent=11 // pred_region
        _
      $region16: #{distiller_forward.8} parent=11 // pred_fallthru
        _
    $region12: #{distiller_forward.8} parent=5 // pred_fallthru
      _
    %p131 = scmp.lt.s32.totalorder %s10, 2
    // Predicated region
    $region17: #{distiller_forward.8} parent=5 // pred_check
      %p132 = pneg %p131
    $region18: #{distiller_forward.8} parent=5 // pred_check_branch
      %134 = sbr.rel (%p132) target = $region20
    $region19: #{distiller_forward.8} parent=5 // pred_region
      // Predicated region
      $region21: #{distiller_forward.8} parent=19 // pred_check
        %p135 = pneg %p65
      $region22: #{distiller_forward.8} parent=19 // pred_check_branch
        %137 = sbr.rel (%p135) target = $region24
      $region23: #{distiller_forward.8} parent=19 // pred_region
        %p138 = scmp.lt.s32.totalorder %s17, 1
        %s139 = scalar_select %p138, %s17, 1
        %p140 = scmp.lt.s32.totalorder %s18, 0
        %s141 = scalar_select %p140, %s18, 0
        %s142 = smul.addr %s139, 2
        %s143 = sadd.s32 %s141, %s142
        %s144 = smul.addr %s143, 4
        %s145 = scalar_lea.vmem %s1, %s144
      $region24: #{distiller_forward.8} parent=19 // pred_fallthru
        _
    $region20: #{distiller_forward.8} parent=5 // pred_fallthru
      _
    %p146 = scmp.le.s32.totalorder 1, %s10
    %p147 = scmp.lt.s32.totalorder %s10, 3
    %p148 = pnand %p146, %p147
    %p149 = pneg %p148
    // Predicated region
    $region25: #{distiller_forward.8} parent=5 // pred_check
      _
    $region26: #{distiller_forward.8} parent=5 // pred_check_branch
      %151 = sbr.rel (%p148) target = $region28
    $region27: #{distiller_forward.8} parent=5 // pred_region
      %s152 = ssub.s32 %s10, 1
      %p153 = pneg %p43
      %p154 = pneg %p40
      %p155 = scmp.lt.s32.totalorder %s19, 1
      %s156 = scalar_select %p155, %s19, 1
      %p157 = scmp.lt.s32.totalorder %s20, 0
      %s158 = scalar_select %p157, %s20, 0
      %s159 = smul.addr %s156, 2
      %s160 = sadd.s32 %s158, %s159
      %s161 = smul.addr %s160, 4
      %s162 = scalar_lea.vmem %s1, %s161
      %p163 = pneg %p71
      %p164 = pneg %p68
      %p165 = pneg %p92
      %p166 = pneg %p89
      %p167 = pneg %p113
      %p168 = pneg %p110
      %p169 = scmp.lt.s32.totalorder %s19, 1
      %s170 = scalar_select %p169, %s19, 1
      %p171 = scmp.lt.s32.totalorder %s20, 0
      %s172 = scalar_select %p171, %s20, 0
      %s173 = smul.addr %s170, 2
      %s174 = sadd.s32 %s172, %s173
      %s175 = smul.addr %s174, 4
      %s176 = scalar_lea.vmem %s1, %s175
      %p178 = scmp.eq.s32.totalorder %s19, 0
      %p179 = scmp.eq.s32.totalorder %s20, 0
      %p180 = pnand %p178, %p179
      %p181 = pneg %p180
      // Predicated region
      $region29: #{distiller_forward.8} parent=27 // pred_check
        _
      $region30: #{distiller_forward.8} parent=27 // pred_check_branch
        %183 = sbr.rel (%p180) target = $region32
      $region31: #{distiller_forward.8} parent=27 // pred_region
        %vm184 = vcmask 7168
        %185 = vst.msk [vmem:[%s2] sm:$0xff] %vm184, 0.0
        %186 = vst.msk [vmem:[%s2 + $0x8] sm:$0xff] %vm184, 0.0
        %187 = vst.msk [vmem:[%s2 + $0x10] sm:$0xff] %vm184, 0.0
        %188 = vst.msk [vmem:[%s2 + $0x18] sm:$0xff] %vm184, 0.0
        %189 = vst.msk [vmem:[%s3] sm:$0xff] %vm184, 0.0
        %190 = vst.msk [vmem:[%s3 + $0x8] sm:$0xff] %vm184, 0.0
        %191 = vst.msk [vmem:[%s3 + $0x10] sm:$0xff] %vm184, 0.0
        %192 = vst.msk [vmem:[%s3 + $0x18] sm:$0xff] %vm184, 0.0
      $region32: #{distiller_forward.8} parent=27 // pred_fallthru
        _
      %v193 = vld [vmem:[%s0] sm:$0xf]
      %v194 = vld [vmem:[%s0 + $0x4] sm:$0xf]
      %v195 = vld [vmem:[%s0 + $0x8] sm:$0xf]
      %v196 = vld [vmem:[%s0 + $0xc] sm:$0xf]
      %v197 = vld [vmem:[%s176] sm:$0xf]
      %v198 = vld [vmem:[%s176 + $0x4] sm:$0xf]
      %v203 = vunpack.c.l.b16 %v193
      %v204 = vunpack.c.l.b16 %v194
      %v205 = vunpack.c.l.b16 %v195
      %v206 = vunpack.c.l.b16 %v196
      %v207 = vpack.c.b16 %v204, %v203
      %v208 = vpack.c.b16 %v206, %v205
      %v211 = vunpack.c.l.b16 %v197
      %v212 = vunpack.c.l.b16 %v198
      %v213 = vpack.c.b16 %v212, %v211
      %vm215 = vcmask 130048
      %v217 = vsel %vm215, %v207, 0
      %v220 = vsel %vm215, %v208, 0
      %222 = vmatpush.bf16.msra.mxu0 0
      %223 = vmatpush.bf16.msra.mxu0 0
      %224 = vmatpush.bf16.msra.mxu0 0
      %225 = vmatpush.bf16.msra.mxu0 0
      %226 = vmatpush.bf16.msra.mxu0 0
      %227 = vmatpush.bf16.msra.mxu0 0
      %228 = vmatpush.bf16.msra.mxu0 0
      %229 = vmatpush.bf16.msra.mxu0 %v213
      %230 = vmatmul.bf16.gmra.mxu0 %v217
      %v231 = vpop.f32.mrf.mxu0
      %v232 = vadd.f32 0.0, %v231
      %v233 = vpop.f32.mrf.mxu0
      %v234 = vadd.f32 0.0, %v233
      %235 = vmatmul.bf16.gmra.mxu0 %v220
      %v236 = vpop.f32.mrf.mxu0
      %v237 = vadd.f32 0.0, %v236
      %v238 = vpop.f32.mrf.mxu0
      %v239 = vadd.f32 0.0, %v238
      %240 = vdwg.mxu0
      %v241 = vld [vmem:[%s2] sm:$0xff]
      %v242 = vld [vmem:[%s2 + $0x8] sm:$0xff]
      %v243 = vld [vmem:[%s2 + $0x10] sm:$0xff]
      %v244 = vld [vmem:[%s2 + $0x18] sm:$0xff]
      %vm245 = vcmask 523264
      %v246 = vsel %vm245, %v232, 0.0
      %247 = vadd.xlane.f32.xlu0 %v246
      %v248 = vpop.xlane.xlu0 %247
      %v249 = vsel %vm245, %v234, 0.0
      %250 = vadd.xlane.f32.xlu0 %v249
      %v251 = vpop.xlane.xlu0 %250
      %v252 = vsel %vm245, %v237, 0.0
      %253 = vadd.xlane.f32.xlu0 %v252
      %v254 = vpop.xlane.xlu0 %253
      %v255 = vsel %vm245, %v239, 0.0
      %256 = vadd.xlane.f32.xlu0 %v255
      %v257 = vpop.xlane.xlu0 %256
      %v258 = vadd.f32 %v241, %v248
      %v259 = vadd.f32 %v242, %v251
      %v260 = vadd.f32 %v243, %v254
      %v261 = vadd.f32 %v244, %v257
      %vm262 = vcmask 7168
      %263 = vst.msk [vmem:[%s2] sm:$0xff] %vm262, %v258
      %264 = vst.msk [vmem:[%s2 + $0x8] sm:$0xff] %vm262, %v259
      %265 = vst.msk [vmem:[%s2 + $0x10] sm:$0xff] %vm262, %v260
      %266 = vst.msk [vmem:[%s2 + $0x18] sm:$0xff] %vm262, %v261
      %v267 = vld [vmem:[%s3] sm:$0xff]
      %v268 = vld [vmem:[%s3 + $0x8] sm:$0xff]
      %v269 = vld [vmem:[%s3 + $0x10] sm:$0xff]
      %v270 = vld [vmem:[%s3 + $0x18] sm:$0xff]
      %v271 = vmul.f32 %v232, %v232
      %v272 = vmul.f32 %v234, %v234
      %v273 = vmul.f32 %v237, %v237
      %v274 = vmul.f32 %v239, %v239
      %v275 = vsel %vm245, %v271, 0.0
      %276 = vadd.xlane.f32.xlu0 %v275
      %v277 = vpop.xlane.xlu0 %276
      %v278 = vsel %vm245, %v272, 0.0
      %279 = vadd.xlane.f32.xlu0 %v278
      %v280 = vpop.xlane.xlu0 %279
      %v281 = vsel %vm245, %v273, 0.0
      %282 = vadd.xlane.f32.xlu0 %v281
      %v283 = vpop.xlane.xlu0 %282
      %v284 = vsel %vm245, %v274, 0.0
      %285 = vadd.xlane.f32.xlu0 %v284
      %v286 = vpop.xlane.xlu0 %285
      %v287 = vadd.f32 %v267, %v277
      %v288 = vadd.f32 %v268, %v280
      %v289 = vadd.f32 %v269, %v283
      %v290 = vadd.f32 %v270, %v286
      %291 = vst.msk [vmem:[%s3] sm:$0xff] %vm262, %v287
      %292 = vst.msk [vmem:[%s3 + $0x8] sm:$0xff] %vm262, %v288
      %293 = vst.msk [vmem:[%s3 + $0x10] sm:$0xff] %vm262, %v289
      %294 = vst.msk [vmem:[%s3 + $0x18] sm:$0xff] %vm262, %v290
      // Predicated region
      $region33: #{distiller_forward.8} parent=27 // pred_check
        %p295 = pneg %p89
      $region34: #{distiller_forward.8} parent=27 // pred_check_branch
        %297 = sbr.rel (%p295) target = $region36
      $region35: #{distiller_forward.8} parent=27 // pred_region
        _
      $region36: #{distiller_forward.8} parent=27 // pred_fallthru
        _
      // Predicated region
      $region37: #{distiller_forward.8} parent=27 // pred_check
        %p298 = pneg %p110
      $region38: #{distiller_forward.8} parent=27 // pred_check_branch
        %300 = sbr.rel (%p298) target = $region40
      $region39: #{distiller_forward.8} parent=27 // pred_region
        _
      $region40: #{distiller_forward.8} parent=27 // pred_fallthru
        _
      // Predicated region
      $region41: #{distiller_forward.8} parent=27 // pred_check
        %p301 = pneg %p89
      $region42: #{distiller_forward.8} parent=27 // pred_check_branch
        %303 = sbr.rel (%p301) target = $region44
      $region43: #{distiller_forward.8} parent=27 // pred_region
        _
      $region44: #{distiller_forward.8} parent=27 // pred_fallthru
        _
      // Predicated region
      $region45: #{distiller_forward.8} parent=27 // pred_check
        %p304 = pneg %p110
      $region46: #{distiller_forward.8} parent=27 // pred_check_branch
        %306 = sbr.rel (%p304) target = $region48
      $region47: #{distiller_forward.8} parent=27 // pred_region
        _
      $region48: #{distiller_forward.8} parent=27 // pred_fallthru
        _
    $region28: #{distiller_forward.8} parent=5 // pred_fallthru
      _
    %p307 = scmp.le.s32.totalorder 2, %s10
    // Predicated region
    $region49: #{distiller_forward.8} parent=5 // pred_check
      %p308 = pneg %p307
    $region50: #{distiller_forward.8} parent=5 // pred_check_branch
      %310 = sbr.rel (%p308) target = $region52
    $region51: #{distiller_forward.8} parent=5 // pred_region
      %s311 = ssub.s32 %s10, 2
    $region52: #{distiller_forward.8} parent=5 // pred_fallthru
      _
  $region6: #{distiller_forward.8} parent=0 // loop_footer
    %s14 = sadd.s32 1, %s10
  $region7: #{distiller_forward.8} parent=0 // loop_footer_branch
    %9 = sbr.rel target = $region3
  $region8: #{distiller_forward.8} parent=0 // loop_exit
    _

// kernel: distiller_forward.10
$region0: #{distiller_forward.10}
  #allocation0 [shape = 'u32[]', space=smem, size = 0x4, offset = 0x4, fixed_abs, tag = 'smem constant byte address 0x4 - core index']
  #allocation1 [shape = 'u32[72,128]{1,0:T(1,128)}', space=vmem, size = 0x9000, scoped, tag = 'internal scratch']
  %s0 = inlined_call_operand.vmem [shape: bf16[32,32], index: 0, kind: input, shape index: {}]
  %s1 = inlined_call_operand.vmem [shape: bf16[2,32,64], index: 1, kind: input, shape index: {}]
  %s2 = inlined_call_operand.vmem [shape: f32[32,1], index: 2, kind: output, shape index: {0}]
  %s3 = inlined_call_operand.vmem [shape: f32[32,1], index: 3, kind: output, shape index: {1}]
  %4 = xla_tuple %s2, %s3
  %s5 = sld [smem:[#allocation0]]
  $region53: #{distiller_forward.10} parent=0
    _
  %s7 = ssub.s32 1, %s5
  %s8 = scalar_select 0, %s7, %s5
  loop: start=0, step=1, limit=4
  $region2: #{distiller_forward.10} parent=0 // loop_pre_header
    _
  $region3: #{distiller_forward.10} parent=0 // loop_header
    %s10 = sphi 0, %s14
    %p11 = scmp.ge.s32.totalorder %s10, 4
    %s17 = sphi 0, %s29
    %s18 = sphi 0, %s25
    %s19 = sphi 0, %s17
    %s20 = sphi 0, %s18
    %s21 = sphi 0, %s19
    %s22 = sphi 0, %s20
    %s30 = sphi 0, %s30
    %s32 = sphi 0, %s30
    %s33 = sphi 0, %s32
    %s47 = sphi 0, %s33
    %s55 = sphi 0, %s57
    %s58 = sphi 0, %s55
    %s59 = sphi 0, %s58
    %s75 = sphi 0, %s59
    %s79 = sphi 0, %s79
    %s81 = sphi 0, %s79
    %s82 = sphi 0, %s81
    %s96 = sphi 0, %s82
    %s100 = sphi 0, %s100
    %s102 = sphi 0, %s100
    %s103 = sphi 0, %s102
    %s117 = sphi 0, %s103
  $region4: #{distiller_forward.10} parent=0 // loop_header_branch
    %13 = sbr.rel (%p11) target = $region8
  $region5: #{distiller_forward.10} parent=0 // loop_body
    %s15 = ssub.s32 %s10, 1
    %s16 = ssub.s32 %s10, 2
    %s23 = sadd.s32 1, %s18
    %p24 = scmp.ge.s32.totalorder %s23, 1
    %s25 = scalar_select %p24, 0, %s23
    %s26 = sadd.s32 1, %s17
    %s27 = scalar_select %p24, %s26, %s17
    %p28 = scmp.ge.s32.totalorder %s27, 2
    %s29 = scalar_select %p28, 0, %s27
    %s31 = sadd.s32 %s30, 1
    %p34 = scmp.eq.s32.totalorder %s10, 1
    %p35 = scmp.ne.s32.totalorder %s30, %s32
    %p36 = scmp.eq.s32.totalorder %s10, 0
    %p37 = por %p35, %p36
    %p38 = scmp.ne.s32.totalorder %s30, %s32
    %p39 = scmp.eq.s32.totalorder %s15, 1
    %p40 = por %p38, %p39
    %p41 = scmp.ne.s32.totalorder %s32, %s33
    %p42 = scmp.eq.s32.totalorder %s15, 0
    %p43 = por %p41, %p42
    %p44 = scmp.ne.s32.totalorder %s32, %s33
    %p45 = scmp.eq.s32.totalorder %s16, 1
    %p46 = por %p44, %p45
    %p48 = scmp.ne.s32.totalorder %s33, %s47
    %p49 = scmp.eq.s32.totalorder %s16, 0
    %p50 = por %p48, %p49
    %s51 = ssub.s32 %s17, %s29
    %s52 = ssub.s32 %s18, %s25
    %s53 = sor.u32 %s51, %s52
    %p54 = scmp.eq.s32.totalorder %s53, 0
    %s56 = sadd.s32 %s55, 1
    %s57 = scalar_select %p54, %s55, %s56
    %p60 = pneg %p54
    %p61 = scmp.eq.s32.totalorder %s10, 1
    %p62 = por %p60, %p61
    %p63 = scmp.ne.s32.totalorder %s55, %s58
    %p64 = scmp.eq.s32.totalorder %s10, 0
    %p65 = por %p63, %p64
    %p66 = scmp.ne.s32.totalorder %s55, %s58
    %p67 = scmp.eq.s32.totalorder %s15, 1
    %p68 = por %p66, %p67
    %p69 = scmp.ne.s32.totalorder %s58, %s59
    %p70 = scmp.eq.s32.totalorder %s15, 0
    %p71 = por %p69, %p70
    %p72 = scmp.ne.s32.totalorder %s58, %s59
    %p73 = scmp.eq.s32.totalorder %s16, 1
    %p74 = por %p72, %p73
    %p76 = scmp.ne.s32.totalorder %s59, %s75
    %p77 = scmp.eq.s32.totalorder %s16, 0
    %p78 = por %p76, %p77
    %s80 = sadd.s32 %s79, 1
    %p83 = scmp.eq.s32.totalorder %s10, 1
    %p84 = scmp.ne.s32.totalorder %s79, %s81
    %p85 = scmp.eq.s32.totalorder %s10, 0
    %p86 = por %p84, %p85
    %p87 = scmp.ne.s32.totalorder %s79, %s81
    %p88 = scmp.eq.s32.totalorder %s15, 1
    %p89 = por %p87, %p88
    %p90 = scmp.ne.s32.totalorder %s81, %s82
    %p91 = scmp.eq.s32.totalorder %s15, 0
    %p92 = por %p90, %p91
    %p93 = scmp.ne.s32.totalorder %s81, %s82
    %p94 = scmp.eq.s32.totalorder %s16, 1
    %p95 = por %p93, %p94
    %p97 = scmp.ne.s32.totalorder %s82, %s96
    %p98 = scmp.eq.s32.totalorder %s16, 0
    %p99 = por %p97, %p98
    %s101 = sadd.s32 %s100, 1
    %p104 = scmp.eq.s32.totalorder %s10, 1
    %p105 = scmp.ne.s32.totalorder %s100, %s102
    %p106 = scmp.eq.s32.totalorder %s10, 0
    %p107 = por %p105, %p106
    %p108 = scmp.ne.s32.totalorder %s100, %s102
    %p109 = scmp.eq.s32.totalorder %s15, 1
    %p110 = por %p108, %p109
    %p111 = scmp.ne.s32.totalorder %s102, %s103
    %p112 = scmp.eq.s32.totalorder %s15, 0
    %p113 = por %p111, %p112
    %p114 = scmp.ne.s32.totalorder %s102, %s103
    %p115 = scmp.eq.s32.totalorder %s16, 1
    %p116 = por %p114, %p115
    %p118 = scmp.ne.s32.totalorder %s103, %s117
    %p119 = scmp.eq.s32.totalorder %s16, 0
    %p120 = por %p118, %p119
    %p121 = scmp.le.s32.totalorder 1, %s10
    %p122 = scmp.lt.s32.totalorder %s10, 3
    %p123 = pnand %p121, %p122
    %p124 = pneg %p123
    // Predicated region
    $region9: #{distiller_forward.10} parent=5 // pred_check
      _
    $region10: #{distiller_forward.10} parent=5 // pred_check_branch
      %126 = sbr.rel (%p123) target = $region12
    $region11: #{distiller_forward.10} parent=5 // pred_region
      %s127 = ssub.s32 %s10, 1
      // Predicated region
      $region13: #{distiller_forward.10} parent=11 // pred_check
        %p128 = pneg %p43
      $region14: #{distiller_forward.10} parent=11 // pred_check_branch
        %130 = sbr.rel (%p128) target = $region16
      $region15: #{distiller_forward.10} parent=11 // pred_region
        _
      $region16: #{distiller_forward.10} parent=11 // pred_fallthru
        _
    $region12: #{distiller_forward.10} parent=5 // pred_fallthru
      _
    %p131 = scmp.lt.s32.totalorder %s10, 2
    // Predicated region
    $region17: #{distiller_forward.10} parent=5 // pred_check
      %p132 = pneg %p131
    $region18: #{distiller_forward.10} parent=5 // pred_check_branch
      %134 = sbr.rel (%p132) target = $region20
    $region19: #{distiller_forward.10} parent=5 // pred_region
      // Predicated region
      $region21: #{distiller_forward.10} parent=19 // pred_check
        %p135 = pneg %p65
      $region22: #{distiller_forward.10} parent=19 // pred_check_branch
        %137 = sbr.rel (%p135) target = $region24
      $region23: #{distiller_forward.10} parent=19 // pred_region
        %p138 = scmp.lt.s32.totalorder %s17, 1
        %s139 = scalar_select %p138, %s17, 1
        %p140 = scmp.lt.s32.totalorder %s18, 0
        %s141 = scalar_select %p140, %s18, 0
        %s142 = smul.addr %s139, 4
        %s143 = sadd.s32 %s141, %s142
        %s144 = smul.addr %s143, 4
        %s145 = scalar_lea.vmem %s1, %s144
      $region24: #{distiller_forward.10} parent=19 // pred_fallthru
        _
    $region20: #{distiller_forward.10} parent=5 // pred_fallthru
      _
    %p146 = scmp.le.s32.totalorder 1, %s10
    %p147 = scmp.lt.s32.totalorder %s10, 3
    %p148 = pnand %p146, %p147
    %p149 = pneg %p148
    // Predicated region
    $region25: #{distiller_forward.10} parent=5 // pred_check
      _
    $region26: #{distiller_forward.10} parent=5 // pred_check_branch
      %151 = sbr.rel (%p148) target = $region28
    $region27: #{distiller_forward.10} parent=5 // pred_region
      %s152 = ssub.s32 %s10, 1
      %p153 = pneg %p43
      %p154 = pneg %p40
      %p155 = scmp.lt.s32.totalorder %s19, 1
      %s156 = scalar_select %p155, %s19, 1
      %p157 = scmp.lt.s32.totalorder %s20, 0
      %s158 = scalar_select %p157, %s20, 0
      %s159 = smul.addr %s156, 4
      %s160 = sadd.s32 %s158, %s159
      %s161 = smul.addr %s160, 4
      %s162 = scalar_lea.vmem %s1, %s161
      %p163 = pneg %p71
      %p164 = pneg %p68
      %p165 = pneg %p92
      %p166 = pneg %p89
      %p167 = pneg %p113
      %p168 = pneg %p110
      %p169 = scmp.lt.s32.totalorder %s19, 1
      %s170 = scalar_select %p169, %s19, 1
      %p171 = scmp.lt.s32.totalorder %s20, 0
      %s172 = scalar_select %p171, %s20, 0
      %s173 = smul.addr %s170, 4
      %s174 = sadd.s32 %s172, %s173
      %s175 = smul.addr %s174, 4
      %s176 = scalar_lea.vmem %s1, %s175
      %p178 = scmp.eq.s32.totalorder %s19, 0
      %p179 = scmp.eq.s32.totalorder %s20, 0
      %p180 = pnand %p178, %p179
      %p181 = pneg %p180
      // Predicated region
      $region29: #{distiller_forward.10} parent=27 // pred_check
        _
      $region30: #{distiller_forward.10} parent=27 // pred_check_branch
        %183 = sbr.rel (%p180) target = $region32
      $region31: #{distiller_forward.10} parent=27 // pred_region
        %vm184 = vcmask 7168
        %185 = vst.msk [vmem:[%s2] sm:$0xff] %vm184, 0.0
        %186 = vst.msk [vmem:[%s2 + $0x8] sm:$0xff] %vm184, 0.0
        %187 = vst.msk [vmem:[%s2 + $0x10] sm:$0xff] %vm184, 0.0
        %188 = vst.msk [vmem:[%s2 + $0x18] sm:$0xff] %vm184, 0.0
        %189 = vst.msk [vmem:[%s3] sm:$0xff] %vm184, 0.0
        %190 = vst.msk [vmem:[%s3 + $0x8] sm:$0xff] %vm184, 0.0
        %191 = vst.msk [vmem:[%s3 + $0x10] sm:$0xff] %vm184, 0.0
        %192 = vst.msk [vmem:[%s3 + $0x18] sm:$0xff] %vm184, 0.0
      $region32: #{distiller_forward.10} parent=27 // pred_fallthru
        _
      %v193 = vld [vmem:[%s0] sm:$0xf]
      %v194 = vld [vmem:[%s0 + $0x4] sm:$0xf]
      %v195 = vld [vmem:[%s0 + $0x8] sm:$0xf]
      %v196 = vld [vmem:[%s0 + $0xc] sm:$0xf]
      %v197 = vld [vmem:[%s176] sm:$0xf]
      %v198 = vld [vmem:[%s176 + $0x4] sm:$0xf]
      %v199 = vld [vmem:[%s176 + $0x8] sm:$0xf]
      %v200 = vld [vmem:[%s176 + $0xc] sm:$0xf]
      %v205 = vunpack.c.l.b16 %v193
      %v206 = vunpack.c.l.b16 %v194
      %v207 = vunpack.c.l.b16 %v195
      %v208 = vunpack.c.l.b16 %v196
      %v209 = vpack.c.b16 %v206, %v205
      %v210 = vpack.c.b16 %v208, %v207
      %v215 = vunpack.c.l.b16 %v197
      %v216 = vunpack.c.l.b16 %v198
      %v217 = vunpack.c.l.b16 %v199
      %v218 = vunpack.c.l.b16 %v200
      %v219 = vpack.c.b16 %v216, %v215
      %v220 = vpack.c.b16 %v218, %v217
      %vm223 = vcmask 261120
      %v225 = vsel %vm223, %v209, 0
      %v228 = vsel %vm223, %v210, 0
      %230 = vmatpush.bf16.msra.mxu0 0
      %231 = vmatpush.bf16.msra.mxu0 0
      %232 = vmatpush.bf16.msra.mxu0 0
      %233 = vmatpush.bf16.msra.mxu0 0
      %234 = vmatpush.bf16.msra.mxu0 0
      %235 = vmatpush.bf16.msra.mxu0 0
      %236 = vmatpush.bf16.msra.mxu0 %v220
      %237 = vmatpush.bf16.msra.mxu0 %v219
      %238 = vmatmul.bf16.gmra.mxu0 %v225
      %v239 = vpop.f32.mrf.mxu0
      %v240 = vadd.f32 0.0, %v239
      %v241 = vpop.f32.mrf.mxu0
      %v242 = vadd.f32 0.0, %v241
      %243 = vmatmul.bf16.gmra.mxu0 %v228
      %v244 = vpop.f32.mrf.mxu0
      %v245 = vadd.f32 0.0, %v244
      %v246 = vpop.f32.mrf.mxu0
      %v247 = vadd.f32 0.0, %v246
      %248 = vdwg.mxu0
      %v249 = vld [vmem:[%s2] sm:$0xff]
      %v250 = vld [vmem:[%s2 + $0x8] sm:$0xff]
      %v251 = vld [vmem:[%s2 + $0x10] sm:$0xff]
      %v252 = vld [vmem:[%s2 + $0x18] sm:$0xff]
      %vm253 = vcmask 523264
      %v254 = vsel %vm253, %v240, 0.0
      %255 = vadd.xlane.f32.xlu0 %v254
      %v256 = vpop.xlane.xlu0 %255
      %v257 = vsel %vm253, %v242, 0.0
      %258 = vadd.xlane.f32.xlu0 %v257
      %v259 = vpop.xlane.xlu0 %258
      %v260 = vsel %vm253, %v245, 0.0
      %261 = vadd.xlane.f32.xlu0 %v260
      %v262 = vpop.xlane.xlu0 %261
      %v263 = vsel %vm253, %v247, 0.0
      %264 = vadd.xlane.f32.xlu0 %v263
      %v265 = vpop.xlane.xlu0 %264
      %v266 = vadd.f32 %v249, %v256
      %v267 = vadd.f32 %v250, %v259
      %v268 = vadd.f32 %v251, %v262
      %v269 = vadd.f32 %v252, %v265
      %vm270 = vcmask 7168
      %271 = vst.msk [vmem:[%s2] sm:$0xff] %vm270, %v266
      %272 = vst.msk [vmem:[%s2 + $0x8] sm:$0xff] %vm270, %v267
      %273 = vst.msk [vmem:[%s2 + $0x10] sm:$0xff] %vm270, %v268
      %274 = vst.msk [vmem:[%s2 + $0x18] sm:$0xff] %vm270, %v269
      %v275 = vld [vmem:[%s3] sm:$0xff]
      %v276 = vld [vmem:[%s3 + $0x8] sm:$0xff]
      %v277 = vld [vmem:[%s3 + $0x10] sm:$0xff]
      %v278 = vld [vmem:[%s3 + $0x18] sm:$0xff]
      %v279 = vmul.f32 %v240, %v240
      %v280 = vmul.f32 %v242, %v242
      %v281 = vmul.f32 %v245, %v245
      %v282 = vmul.f32 %v247, %v247
      %v283 = vsel %vm253, %v279, 0.0
      %284 = vadd.xlane.f32.xlu0 %v283
      %v285 = vpop.xlane.xlu0 %284
      %v286 = vsel %vm253, %v280, 0.0
      %287 = vadd.xlane.f32.xlu0 %v286
      %v288 = vpop.xlane.xlu0 %287
      %v289 = vsel %vm253, %v281, 0.0
      %290 = vadd.xlane.f32.xlu0 %v289
      %v291 = vpop.xlane.xlu0 %290
      %v292 = vsel %vm253, %v282, 0.0
      %293 = vadd.xlane.f32.xlu0 %v292
      %v294 = vpop.xlane.xlu0 %293
      %v295 = vadd.f32 %v275, %v285
      %v296 = vadd.f32 %v276, %v288
      %v297 = vadd.f32 %v277, %v291
      %v298 = vadd.f32 %v278, %v294
      %299 = vst.msk [vmem:[%s3] sm:$0xff] %vm270, %v295
      %300 = vst.msk [vmem:[%s3 + $0x8] sm:$0xff] %vm270, %v296
      %301 = vst.msk [vmem:[%s3 + $0x10] sm:$0xff] %vm270, %v297
      %302 = vst.msk [vmem:[%s3 + $0x18] sm:$0xff] %vm270, %v298
      // Predicated region
      $region33: #{distiller_forward.10} parent=27 // pred_check
        %p303 = pneg %p89
      $region34: #{distiller_forward.10} parent=27 // pred_check_branch
        %305 = sbr.rel (%p303) target = $region36
      $region35: #{distiller_forward.10} parent=27 // pred_region
        _
      $region36: #{distiller_forward.10} parent=27 // pred_fallthru
        _
      // Predicated region
      $region37: #{distiller_forward.10} parent=27 // pred_check
        %p306 = pneg %p110
      $region38: #{distiller_forward.10} parent=27 // pred_check_branch
        %308 = sbr.rel (%p306) target = $region40
      $region39: #{distiller_forward.10} parent=27 // pred_region
        _
      $region40: #{distiller_forward.10} parent=27 // pred_fallthru
        _
      // Predicated region
      $region41: #{distiller_forward.10} parent=27 // pred_check
        %p309 = pneg %p89
      $region42: #{distiller_forward.10} parent=27 // pred_check_branch
        %311 = sbr.rel (%p309) target = $region44
      $region43: #{distiller_forward.10} parent=27 // pred_region
        _
      $region44: #{distiller_forward.10} parent=27 // pred_fallthru
        _
      // Predicated region
      $region45: #{distiller_forward.10} parent=27 // pred_check
        %p312 = pneg %p110
      $region46: #{distiller_forward.10} parent=27 // pred_check_branch
        %314 = sbr.rel (%p312) target = $region48
      $region47: #{distiller_forward.10} parent=27 // pred_region
        _
      $region48: #{distiller_forward.10} parent=27 // pred_fallthru
        _
    $region28: #{distiller_forward.10} parent=5 // pred_fallthru
      _
    %p315 = scmp.le.s32.totalorder 2, %s10
    // Predicated region
    $region49: #{distiller_forward.10} parent=5 // pred_check
      %p316 = pneg %p315
    $region50: #{distiller_forward.10} parent=5 // pred_check_branch
      %318 = sbr.rel (%p316) target = $region52
    $region51: #{distiller_forward.10} parent=5 // pred_region
      %s319 = ssub.s32 %s10, 2
    $region52: #{distiller_forward.10} parent=5 // pred_fallthru
      _
  $region6: #{distiller_forward.10} parent=0 // loop_footer
    %s14 = sadd.s32 1, %s10
  $region7: #{distiller_forward.10} parent=0 // loop_footer_branch
    %9 = sbr.rel target = $region3
  $region8: #{distiller_forward.10} parent=0 // loop_exit
    _

// kernel: distiller_forward.9
$region0: #{distiller_forward.9}
  #allocation0 [shape = 'u32[]', space=smem, size = 0x4, offset = 0x4, fixed_abs, tag = 'smem constant byte address 0x4 - core index']
  #allocation1 [shape = 'u32[72,128]{1,0:T(1,128)}', space=vmem, size = 0x9000, scoped, tag = 'internal scratch']
  %s0 = inlined_call_operand.vmem [shape: bf16[32,16], index: 0, kind: input, shape index: {}]
  %s1 = inlined_call_operand.vmem [shape: f32[32,1], index: 1, kind: input, shape index: {}]
  %s2 = inlined_call_operand.vmem [shape: f32[32,1], index: 2, kind: input, shape index: {}]
  %s3 = inlined_call_operand.vmem [shape: f32[32,1], index: 3, kind: input, shape index: {}]
  %s4 = inlined_call_operand.vmem [shape: bf16[2,16,64], index: 4, kind: input, shape index: {}]
  %s5 = inlined_call_operand.vmem [shape: f32[2,32,64], index: 5, kind: input, shape index: {}]
  %s6 = inlined_call_operand.vmem [shape: f32[2,1,8,128], index: 6, kind: output, shape index: {}]
  %s7 = sld [smem:[#allocation0]]
  $region57: #{distiller_forward.9} parent=0
    _
  %s9 = ssub.s32 1, %s7
  %s10 = scalar_select 0, %s9, %s7
  loop: start=0, step=1, limit=4
  $region2: #{distiller_forward.9} parent=0 // loop_pre_header
    _
  $region3: #{distiller_forward.9} parent=0 // loop_header
    %s12 = sphi 0, %s16
    %p13 = scmp.ge.s32.totalorder %s12, 4
    %s19 = sphi 0, %s31
    %s20 = sphi 0, %s27
    %s21 = sphi 0, %s19
    %s22 = sphi 0, %s20
    %s23 = sphi 0, %s21
    %s24 = sphi 0, %s22
    %s32 = sphi 0, %s32
    %s34 = sphi 0, %s32
    %s35 = sphi 0, %s34
    %s49 = sphi 0, %s35
    %s53 = sphi 0, %s53
    %s55 = sphi 0, %s53
    %s56 = sphi 0, %s55
    %s70 = sphi 0, %s56
    %s74 = sphi 0, %s74
    %s76 = sphi 0, %s74
    %s77 = sphi 0, %s76
    %s91 = sphi 0, %s77
    %s95 = sphi 0, %s95
    %s97 = sphi 0, %s95
    %s98 = sphi 0, %s97
    %s112 = sphi 0, %s98
    %s120 = sphi 0, %s122
    %s123 = sphi 0, %s120
    %s124 = sphi 0, %s123
    %s140 = sphi 0, %s124
    %s148 = sphi 0, %s150
    %s151 = sphi 0, %s148
    %s152 = sphi 0, %s151
    %s168 = sphi 0, %s152
    %s176 = sphi 0, %s178
    %s179 = sphi 0, %s176
    %s180 = sphi 0, %s179
    %s196 = sphi 0, %s180
  $region4: #{distiller_forward.9} parent=0 // loop_header_branch
    %15 = sbr.rel (%p13) target = $region8
  $region5: #{distiller_forward.9} parent=0 // loop_body
    %s17 = ssub.s32 %s12, 1
    %s18 = ssub.s32 %s12, 2
    %s25 = sadd.s32 1, %s20
    %p26 = scmp.ge.s32.totalorder %s25, 1
    %s27 = scalar_select %p26, 0, %s25
    %s28 = sadd.s32 1, %s19
    %s29 = scalar_select %p26, %s28, %s19
    %p30 = scmp.ge.s32.totalorder %s29, 2
    %s31 = scalar_select %p30, 0, %s29
    %s33 = sadd.s32 %s32, 1
    %p36 = scmp.eq.s32.totalorder %s12, 1
    %p37 = scmp.ne.s32.totalorder %s32, %s34
    %p38 = scmp.eq.s32.totalorder %s12, 0
    %p39 = por %p37, %p38
    %p40 = scmp.ne.s32.totalorder %s32, %s34
    %p41 = scmp.eq.s32.totalorder %s17, 1
    %p42 = por %p40, %p41
    %p43 = scmp.ne.s32.totalorder %s34, %s35
    %p44 = scmp.eq.s32.totalorder %s17, 0
    %p45 = por %p43, %p44
    %p46 = scmp.ne.s32.totalorder %s34, %s35
    %p47 = scmp.eq.s32.totalorder %s18, 1
    %p48 = por %p46, %p47
    %p50 = scmp.ne.s32.totalorder %s35, %s49
    %p51 = scmp.eq.s32.totalorder %s18, 0
    %p52 = por %p50, %p51
    %s54 = sadd.s32 %s53, 1
    %p57 = scmp.eq.s32.totalorder %s12, 1
    %p58 = scmp.ne.s32.totalorder %s53, %s55
    %p59 = scmp.eq.s32.totalorder %s12, 0
    %p60 = por %p58, %p59
    %p61 = scmp.ne.s32.totalorder %s53, %s55
    %p62 = scmp.eq.s32.totalorder %s17, 1
    %p63 = por %p61, %p62
    %p64 = scmp.ne.s32.totalorder %s55, %s56
    %p65 = scmp.eq.s32.totalorder %s17, 0
    %p66 = por %p64, %p65
    %p67 = scmp.ne.s32.totalorder %s55, %s56
    %p68 = scmp.eq.s32.totalorder %s18, 1
    %p69 = por %p67, %p68
    %p71 = scmp.ne.s32.totalorder %s56, %s70
    %p72 = scmp.eq.s32.totalorder %s18, 0
    %p73 = por %p71, %p72
    %s75 = sadd.s32 %s74, 1
    %p78 = scmp.eq.s32.totalorder %s12, 1
    %p79 = scmp.ne.s32.totalorder %s74, %s76
    %p80 = scmp.eq.s32.totalorder %s12, 0
    %p81 = por %p79, %p80
    %p82 = scmp.ne.s32.totalorder %s74, %s76
    %p83 = scmp.eq.s32.totalorder %s17, 1
    %p84 = por %p82, %p83
    %p85 = scmp.ne.s32.totalorder %s76, %s77
    %p86 = scmp.eq.s32.totalorder %s17, 0
    %p87 = por %p85, %p86
    %p88 = scmp.ne.s32.totalorder %s76, %s77
    %p89 = scmp.eq.s32.totalorder %s18, 1
    %p90 = por %p88, %p89
    %p92 = scmp.ne.s32.totalorder %s77, %s91
    %p93 = scmp.eq.s32.totalorder %s18, 0
    %p94 = por %p92, %p93
    %s96 = sadd.s32 %s95, 1
    %p99 = scmp.eq.s32.totalorder %s12, 1
    %p100 = scmp.ne.s32.totalorder %s95, %s97
    %p101 = scmp.eq.s32.totalorder %s12, 0
    %p102 = por %p100, %p101
    %p103 = scmp.ne.s32.totalorder %s95, %s97
    %p104 = scmp.eq.s32.totalorder %s17, 1
    %p105 = por %p103, %p104
    %p106 = scmp.ne.s32.totalorder %s97, %s98
    %p107 = scmp.eq.s32.totalorder %s17, 0
    %p108 = por %p106, %p107
    %p109 = scmp.ne.s32.totalorder %s97, %s98
    %p110 = scmp.eq.s32.totalorder %s18, 1
    %p111 = por %p109, %p110
    %p113 = scmp.ne.s32.totalorder %s98, %s112
    %p114 = scmp.eq.s32.totalorder %s18, 0
    %p115 = por %p113, %p114
    %s116 = ssub.s32 %s19, %s31
    %s117 = ssub.s32 %s20, %s27
    %s118 = sor.u32 %s116, %s117
    %p119 = scmp.eq.s32.totalorder %s118, 0
    %s121 = sadd.s32 %s120, 1
    %s122 = scalar_select %p119, %s120, %s121
    %p125 = pneg %p119
    %p126 = scmp.eq.s32.totalorder %s12, 1
    %p127 = por %p125, %p126
    %p128 = scmp.ne.s32.totalorder %s120, %s123
    %p129 = scmp.eq.s32.totalorder %s12, 0
    %p130 = por %p128, %p129
    %p131 = scmp.ne.s32.totalorder %s120, %s123
    %p132 = scmp.eq.s32.totalorder %s17, 1
    %p133 = por %p131, %p132
    %p134 = scmp.ne.s32.totalorder %s123, %s124
    %p135 = scmp.eq.s32.totalorder %s17, 0
    %p136 = por %p134, %p135
    %p137 = scmp.ne.s32.totalorder %s123, %s124
    %p138 = scmp.eq.s32.totalorder %s18, 1
    %p139 = por %p137, %p138
    %p141 = scmp.ne.s32.totalorder %s124, %s140
    %p142 = scmp.eq.s32.totalorder %s18, 0
    %p143 = por %p141, %p142
    %s144 = ssub.s32 %s19, %s31
    %s145 = ssub.s32 %s20, %s27
    %s146 = sor.u32 %s144, %s145
    %p147 = scmp.eq.s32.totalorder %s146, 0
    %s149 = sadd.s32 %s148, 1
    %s150 = scalar_select %p147, %s148, %s149
    %p153 = pneg %p147
    %p154 = scmp.eq.s32.totalorder %s12, 1
    %p155 = por %p153, %p154
    %p156 = scmp.ne.s32.totalorder %s148, %s151
    %p157 = scmp.eq.s32.totalorder %s12, 0
    %p158 = por %p156, %p157
    %p159 = scmp.ne.s32.totalorder %s148, %s151
    %p160 = scmp.eq.s32.totalorder %s17, 1
    %p161 = por %p159, %p160
    %p162 = scmp.ne.s32.totalorder %s151, %s152
    %p163 = scmp.eq.s32.totalorder %s17, 0
    %p164 = por %p162, %p163
    %p165 = scmp.ne.s32.totalorder %s151, %s152
    %p166 = scmp.eq.s32.totalorder %s18, 1
    %p167 = por %p165, %p166
    %p169 = scmp.ne.s32.totalorder %s152, %s168
    %p170 = scmp.eq.s32.totalorder %s18, 0
    %p171 = por %p169, %p170
    %s172 = ssub.s32 %s19, %s31
    %s173 = ssub.s32 %s20, %s27
    %s174 = sor.u32 %s172, %s173
    %p175 = scmp.eq.s32.totalorder %s174, 0
    %s177 = sadd.s32 %s176, 1
    %s178 = scalar_select %p175, %s176, %s177
    %p181 = pneg %p175
    %p182 = scmp.eq.s32.totalorder %s12, 1
    %p183 = por %p181, %p182
    %p184 = scmp.ne.s32.totalorder %s176, %s179
    %p185 = scmp.eq.s32.totalorder %s12, 0
    %p186 = por %p184, %p185
    %p187 = scmp.ne.s32.totalorder %s176, %s179
    %p188 = scmp.eq.s32.totalorder %s17, 1
    %p189 = por %p187, %p188
    %p190 = scmp.ne.s32.totalorder %s179, %s180
    %p191 = scmp.eq.s32.totalorder %s17, 0
    %p192 = por %p190, %p191
    %p193 = scmp.ne.s32.totalorder %s179, %s180
    %p194 = scmp.eq.s32.totalorder %s18, 1
    %p195 = por %p193, %p194
    %p197 = scmp.ne.s32.totalorder %s180, %s196
    %p198 = scmp.eq.s32.totalorder %s18, 0
    %p199 = por %p197, %p198
    %p200 = scmp.le.s32.totalorder 1, %s12
    %p201 = scmp.lt.s32.totalorder %s12, 3
    %p202 = pnand %p200, %p201
    %p203 = pneg %p202
    // Predicated region
    $region9: #{distiller_forward.9} parent=5 // pred_check
      _
    $region10: #{distiller_forward.9} parent=5 // pred_check_branch
      %205 = sbr.rel (%p202) target = $region12
    $region11: #{distiller_forward.9} parent=5 // pred_region
      %s206 = ssub.s32 %s12, 1
      // Predicated region
      $region13: #{distiller_forward.9} parent=11 // pred_check
        %p207 = pneg %p45
      $region14: #{distiller_forward.9} parent=11 // pred_check_branch
        %209 = sbr.rel (%p207) target = $region16
      $region15: #{distiller_forward.9} parent=11 // pred_region
        _
      $region16: #{distiller_forward.9} parent=11 // pred_fallthru
        _
      // Predicated region
      $region17: #{distiller_forward.9} parent=11 // pred_check
        %p210 = pneg %p66
      $region18: #{distiller_forward.9} parent=11 // pred_check_branch
        %212 = sbr.rel (%p210) target = $region20
      $region19: #{distiller_forward.9} parent=11 // pred_region
        _
      $region20: #{distiller_forward.9} parent=11 // pred_fallthru
        _
      // Predicated region
      $region21: #{distiller_forward.9} parent=11 // pred_check
        %p213 = pneg %p87
      $region22: #{distiller_forward.9} parent=11 // pred_check_branch
        %215 = sbr.rel (%p213) target = $region24
      $region23: #{distiller_forward.9} parent=11 // pred_region
        _
      $region24: #{distiller_forward.9} parent=11 // pred_fallthru
        _
      // Predicated region
      $region25: #{distiller_forward.9} parent=11 // pred_check
        %p216 = pneg %p108
      $region26: #{distiller_forward.9} parent=11 // pred_check_branch
        %218 = sbr.rel (%p216) target = $region28
      $region27: #{distiller_forward.9} parent=11 // pred_region
        _
      $region28: #{distiller_forward.9} parent=11 // pred_fallthru
        _
    $region12: #{distiller_forward.9} parent=5 // pred_fallthru
      _
    %p219 = scmp.lt.s32.totalorder %s12, 2
    // Predicated region
    $region29: #{distiller_forward.9} parent=5 // pred_check
      %p220 = pneg %p219
    $region30: #{distiller_forward.9} parent=5 // pred_check_branch
      %222 = sbr.rel (%p220) target = $region32
    $region31: #{distiller_forward.9} parent=5 // pred_region
      // Predicated region
      $region33: #{distiller_forward.9} parent=31 // pred_check
        %p223 = pneg %p130
      $region34: #{distiller_forward.9} parent=31 // pred_check_branch
        %225 = sbr.rel (%p223) target = $region36
      $region35: #{distiller_forward.9} parent=31 // pred_region
        %p226 = scmp.lt.s32.totalorder %s19, 1
        %s227 = scalar_select %p226, %s19, 1
        %p228 = scmp.lt.s32.totalorder %s20, 0
        %s229 = scalar_select %p228, %s20, 0
        %s230 = smul.addr %s227, 2
        %s231 = sadd.s32 %s229, %s230
        %s232 = smul.addr %s231, 4
        %s233 = scalar_lea.vmem %s4, %s232
      $region36: #{distiller_forward.9} parent=31 // pred_fallthru
        _
      // Predicated region
      $region37: #{distiller_forward.9} parent=31 // pred_check
        %p234 = pneg %p158
      $region38: #{distiller_forward.9} parent=31 // pred_check_branch
        %236 = sbr.rel (%p234) target = $region40
      $region39: #{distiller_forward.9} parent=31 // pred_region
        %p237 = scmp.lt.s32.totalorder %s19, 1
        %s238 = scalar_select %p237, %s19, 1
        %p239 = scmp.lt.s32.totalorder %s20, 0
        %s240 = scalar_select %p239, %s20, 0
        %s241 = smul.addr %s238, 4
        %s242 = sadd.s32 %s240, %s241
        %s243 = smul.addr %s242, 8
        %s244 = scalar_lea.vmem %s5, %s243
      $region40: #{distiller_forward.9} parent=31 // pred_fallthru
        _
    $region32: #{distiller_forward.9} parent=5 // pred_fallthru
      _
    %p245 = scmp.le.s32.totalorder 1, %s12
    %p246 = scmp.lt.s32.totalorder %s12, 3
    %p247 = pnand %p245, %p246
    %p248 = pneg %p247
    // Predicated region
    $region41: #{distiller_forward.9} parent=5 // pred_check
      _
    $region42: #{distiller_forward.9} parent=5 // pred_check_branch
      %250 = sbr.rel (%p247) target = $region44
    $region43: #{distiller_forward.9} parent=5 // pred_region
      %s251 = ssub.s32 %s12, 1
      %p252 = pneg %p45
      %p253 = pneg %p42
      %p254 = pneg %p66
      %p255 = pneg %p63
      %p256 = pneg %p87
      %p257 = pneg %p84
      %p258 = pneg %p108
      %p259 = pneg %p105
      %p260 = scmp.lt.s32.totalorder %s21, 1
      %s261 = scalar_select %p260, %s21, 1
      %p262 = scmp.lt.s32.totalorder %s22, 0
      %s263 = scalar_select %p262, %s22, 0
      %s264 = smul.addr %s261, 2
      %s265 = sadd.s32 %s263, %s264
      %s266 = smul.addr %s265, 4
      %s267 = scalar_lea.vmem %s4, %s266
      %p268 = pneg %p136
      %p269 = pneg %p133
      %p270 = scmp.lt.s32.totalorder %s21, 1
      %s271 = scalar_select %p270, %s21, 1
      %p272 = scmp.lt.s32.totalorder %s22, 0
      %s273 = scalar_select %p272, %s22, 0
      %s274 = smul.addr %s271, 4
      %s275 = sadd.s32 %s273, %s274
      %s276 = smul.addr %s275, 8
      %s277 = scalar_lea.vmem %s5, %s276
      %p278 = pneg %p164
      %p279 = pneg %p161
      %p280 = pneg %p192
      %p281 = pneg %p189
      %p282 = scmp.lt.s32.totalorder %s21, 1
      %s283 = scalar_select %p282, %s21, 1
      %p284 = scmp.lt.s32.totalorder %s22, 0
      %s285 = scalar_select %p284, %s22, 0
      %s286 = sadd.s32 %s285, %s283
      %s287 = smul.addr %s286, 8
      %s288 = scalar_lea.vmem %s6, %s287
      %p289 = scmp.lt.s32.totalorder %s21, 1
      %s290 = scalar_select %p289, %s21, 1
      %p291 = scmp.lt.s32.totalorder %s22, 0
      %s292 = scalar_select %p291, %s22, 0
      %s293 = smul.addr %s290, 2
      %s294 = sadd.s32 %s292, %s293
      %s295 = smul.addr %s294, 4
      %s296 = scalar_lea.vmem %s4, %s295
      %p297 = scmp.lt.s32.totalorder %s21, 1
      %s298 = scalar_select %p297, %s21, 1
      %p299 = scmp.lt.s32.totalorder %s22, 0
      %s300 = scalar_select %p299, %s22, 0
      %s301 = smul.addr %s298, 4
      %s302 = sadd.s32 %s300, %s301
      %s303 = smul.addr %s302, 8
      %s304 = scalar_lea.vmem %s5, %s303
      %p305 = scmp.lt.s32.totalorder %s21, 1
      %s306 = scalar_select %p305, %s21, 1
      %p307 = scmp.lt.s32.totalorder %s22, 0
      %s308 = scalar_select %p307, %s22, 0
      %s309 = sadd.s32 %s308, %s306
      %s310 = smul.addr %s309, 8
      %s311 = scalar_lea.vmem %s6, %s310
      %v313 = vld [vmem:[%s0] sm:$0xf]
      %v314 = vld [vmem:[%s0 + $0x4] sm:$0xf]
      %v315 = vld [vmem:[%s0 + $0x8] sm:$0xf]
      %v316 = vld [vmem:[%s0 + $0xc] sm:$0xf]
      %v317 = vld [vmem:[%s296] sm:$0xf]
      %v318 = vld [vmem:[%s296 + $0x4] sm:$0xf]
      %v323 = vunpack.c.l.b16 %v313
      %v324 = vunpack.c.l.b16 %v314
      %v325 = vunpack.c.l.b16 %v315
      %v326 = vunpack.c.l.b16 %v316
      %v327 = vpack.c.b16 %v324, %v323
      %v328 = vpack.c.b16 %v326, %v325
      %v331 = vunpack.c.l.b16 %v317
      %v332 = vunpack.c.l.b16 %v318
      %v333 = vpack.c.b16 %v332, %v331
      %vm335 = vcmask 130048
      %v337 = vsel %vm335, %v327, 0
      %v340 = vsel %vm335, %v328, 0
      %342 = vmatpush.bf16.msra.mxu0 0
      %343 = vmatpush.bf16.msra.mxu0 0
      %344 = vmatpush.bf16.msra.mxu0 0
      %345 = vmatpush.bf16.msra.mxu0 0
      %346 = vmatpush.bf16.msra.mxu0 0
      %347 = vmatpush.bf16.msra.mxu0 0
      %348 = vmatpush.bf16.msra.mxu0 0
      %349 = vmatpush.bf16.msra.mxu0 %v333
      %350 = vmatmul.bf16.gmra.mxu0 %v337
      %v351 = vpop.f32.mrf.mxu0
      %v352 = vadd.f32 0.0, %v351
      %v353 = vpop.f32.mrf.mxu0
      %v354 = vadd.f32 0.0, %v353
      %355 = vmatmul.bf16.gmra.mxu0 %v340
      %v356 = vpop.f32.mrf.mxu0
      %v357 = vadd.f32 0.0, %v356
      %v358 = vpop.f32.mrf.mxu0
      %v359 = vadd.f32 0.0, %v358
      %360 = vdwg.mxu0
      %v361 = vld [vmem:[%s1] sm:$0xff]
      %v362 = vld [vmem:[%s1 + $0x8] sm:$0xff]
      %v363 = vld [vmem:[%s1 + $0x10] sm:$0xff]
      %v364 = vld [vmem:[%s1 + $0x18] sm:$0xff]
      %366 = vset.pattern.permute.xlu0 0
      %367 = vperm.xlu0 %366, %v361
      %v368 = vpop.permute.xlu0 %367
      %371 = vset.pattern.permute.xlu0 0
      %372 = vperm.xlu0 %371, %v362
      %v373 = vpop.permute.xlu0 %372
      %376 = vset.pattern.permute.xlu0 0
      %377 = vperm.xlu0 %376, %v363
      %v378 = vpop.permute.xlu0 %377
      %381 = vset.pattern.permute.xlu0 0
      %382 = vperm.xlu0 %381, %v364
      %v383 = vpop.permute.xlu0 %382
      %v385 = vmul.f32 %v352, %v368
      %v386 = vmul.f32 %v354, %v373
      %v387 = vmul.f32 %v357, %v378
      %v388 = vmul.f32 %v359, %v383
      %v389 = vld [vmem:[%s2] sm:$0xff]
      %v390 = vld [vmem:[%s2 + $0x8] sm:$0xff]
      %v391 = vld [vmem:[%s2 + $0x10] sm:$0xff]
      %v392 = vld [vmem:[%s2 + $0x18] sm:$0xff]
      %394 = vset.pattern.permute.xlu0 0
      %395 = vperm.xlu0 %394, %v389
      %v396 = vpop.permute.xlu0 %395
      %399 = vset.pattern.permute.xlu0 0
      %400 = vperm.xlu0 %399, %v390
      %v401 = vpop.permute.xlu0 %400
      %404 = vset.pattern.permute.xlu0 0
      %405 = vperm.xlu0 %404, %v391
      %v406 = vpop.permute.xlu0 %405
      %409 = vset.pattern.permute.xlu0 0
      %410 = vperm.xlu0 %409, %v392
      %v411 = vpop.permute.xlu0 %410
      %v413 = vadd.f32 %v385, %v396
      %v414 = vadd.f32 %v386, %v401
      %v415 = vadd.f32 %v387, %v406
      %v416 = vadd.f32 %v388, %v411
      %v417 = vld [vmem:[%s304] sm:$0xff]
      %v418 = vld [vmem:[%s304 + $0x8] sm:$0xff]
      %v419 = vld [vmem:[%s304 + $0x10] sm:$0xff]
      %v420 = vld [vmem:[%s304 + $0x18] sm:$0xff]
      %v421 = vld [vmem:[%s3] sm:$0xff]
      %v422 = vld [vmem:[%s3 + $0x8] sm:$0xff]
      %v423 = vld [vmem:[%s3 + $0x10] sm:$0xff]
      %v424 = vld [vmem:[%s3 + $0x18] sm:$0xff]
      %426 = vset.pattern.permute.xlu0 0
      %427 = vperm.xlu0 %426, %v421
      %v428 = vpop.permute.xlu0 %427
      %431 = vset.pattern.permute.xlu0 0
      %432 = vperm.xlu0 %431, %v422
      %v433 = vpop.permute.xlu0 %432
      %436 = vset.pattern.permute.xlu0 0
      %437 = vperm.xlu0 %436, %v423
      %v438 = vpop.permute.xlu0 %437
      %441 = vset.pattern.permute.xlu0 0
      %442 = vperm.xlu0 %441, %v424
      %v443 = vpop.permute.xlu0 %442
      %v445 = vmax.f32 %v417, %v428
      %v446 = vmax.f32 %v418, %v433
      %v447 = vmax.f32 %v419, %v438
      %v448 = vmax.f32 %v420, %v443
      %v449 = vsub.f32 %v413, %v445
      %v450 = vsub.f32 %v414, %v446
      %v451 = vsub.f32 %v415, %v447
      %v452 = vsub.f32 %v416, %v448
      %vm453 = vcmp.gt.f32.partialorder %v413, %v445
      %vm454 = vcmp.gt.f32.partialorder %v414, %v446
      %vm455 = vcmp.gt.f32.partialorder %v415, %v447
      %vm456 = vcmp.gt.f32.partialorder %v416, %v448
      %vm457 = vcmp.gt.f32.partialorder %v445, 0.0
      %vm458 = vcmp.gt.f32.partialorder %v446, 0.0
      %vm459 = vcmp.gt.f32.partialorder %v447, 0.0
      %vm460 = vcmp.gt.f32.partialorder %v448, 0.0
      %vm461 = vmor %vm453, %vm457
      %vm462 = vmor %vm454, %vm458
      %vm463 = vmor %vm455, %vm459
      %vm464 = vmor %vm456, %vm460
      %v465 = vmul.f32 %v449, %v449
      %v466 = vmul.f32 %v450, %v450
      %v467 = vmul.f32 %v451, %v451
      %v468 = vmul.f32 %v452, %v452
      %v469 = vsel %vm461, %v465, 0.0
      %v470 = vsel %vm462, %v466, 0.0
      %v471 = vsel %vm463, %v467, 0.0
      %v472 = vsel %vm464, %v468, 0.0
      %vm473 = vcmask 523264
      %v474 = vsel %vm473, %v469, 0.0
      %v475 = vsel %vm473, %v470, 0.0
      %v476 = vadd.f32 %v474, %v475
      %v477 = vsel %vm473, %v471, 0.0
      %v478 = vadd.f32 %v476, %v477
      %v479 = vsel %vm473, %v472, 0.0
      %v480 = vadd.f32 %v478, %v479
      %481 = vadd.xlane.f32.xlu0 %v480
      %v482 = vpop.xlane.xlu0 %481
      %v483 = vrot.slane %v482, 4
      %v484 = vadd.f32 %v482, %v483
      %v485 = vrot.slane %v484, 2
      %v486 = vadd.f32 %v484, %v485
      %v487 = vrot.slane %v486, 1
      %v488 = vadd.f32 %v486, %v487
      %s489 = vtos %v488
      %v490 = vstv %s489
      %491 = vst [vmem:[%s311] sm:$0xff] %v490
      %p492 = scmp.lt.s32.totalorder %s21, 1
      %s493 = scalar_select %p492, %s21, 1
      %p494 = scmp.lt.s32.totalorder %s22, 0
      %s495 = scalar_select %p494, %s22, 0
      %s496 = sadd.s32 %s495, %s493
      %s497 = smul.addr %s496, 8
      %s498 = scalar_lea.vmem %s6, %s497
      // Predicated region
      $region45: #{distiller_forward.9} parent=43 // pred_check
        %p499 = pneg %p189
      $region46: #{distiller_forward.9} parent=43 // pred_check_branch
        %501 = sbr.rel (%p499) target = $region48
      $region47: #{distiller_forward.9} parent=43 // pred_region
        _
      $region48: #{distiller_forward.9} parent=43 // pred_fallthru
        _
    $region44: #{distiller_forward.9} parent=5 // pred_fallthru
      _
    %p502 = scmp.le.s32.totalorder 2, %s12
    // Predicated region
    $region49: #{distiller_forward.9} parent=5 // pred_check
      %p503 = pneg %p502
    $region50: #{distiller_forward.9} parent=5 // pred_check_branch
      %505 = sbr.rel (%p503) target = $region52
    $region51: #{distiller_forward.9} parent=5 // pred_region
      %s506 = ssub.s32 %s12, 2
      // Predicated region
      $region53: #{distiller_forward.9} parent=51 // pred_check
        %p507 = pneg %p195
      $region54: #{distiller_forward.9} parent=51 // pred_check_branch
        %509 = sbr.rel (%p507) target = $region56
      $region55: #{distiller_forward.9} parent=51 // pred_region
        %p510 = scmp.lt.s32.totalorder %s23, 1
        %s511 = scalar_select %p510, %s23, 1
        %p512 = scmp.lt.s32.totalorder %s24, 0
        %s513 = scalar_select %p512, %s24, 0
        %s514 = sadd.s32 %s513, %s511
        %s515 = smul.addr %s514, 8
        %s516 = scalar_lea.vmem %s6, %s515
      $region56: #{distiller_forward.9} parent=51 // pred_fallthru
        _
    $region52: #{distiller_forward.9} parent=5 // pred_fallthru
      _
  $region6: #{distiller_forward.9} parent=0 // loop_footer
    %s16 = sadd.s32 1, %s12
  $region7: #{distiller_forward.9} parent=0 // loop_footer_branch
    %11 = sbr.rel target = $region3
  $region8: #{distiller_forward.9} parent=0 // loop_exit
    _

// kernel: distiller_forward.11
$region0: #{distiller_forward.11}
  #allocation0 [shape = 'u32[]', space=smem, size = 0x4, offset = 0x4, fixed_abs, tag = 'smem constant byte address 0x4 - core index']
  #allocation1 [shape = 'u32[72,128]{1,0:T(1,128)}', space=vmem, size = 0x9000, scoped, tag = 'internal scratch']
  %s0 = inlined_call_operand.vmem [shape: bf16[32,32], index: 0, kind: input, shape index: {}]
  %s1 = inlined_call_operand.vmem [shape: f32[32,1], index: 1, kind: input, shape index: {}]
  %s2 = inlined_call_operand.vmem [shape: f32[32,1], index: 2, kind: input, shape index: {}]
  %s3 = inlined_call_operand.vmem [shape: f32[32,1], index: 3, kind: input, shape index: {}]
  %s4 = inlined_call_operand.vmem [shape: bf16[2,32,64], index: 4, kind: input, shape index: {}]
  %s5 = inlined_call_operand.vmem [shape: f32[2,32,64], index: 5, kind: input, shape index: {}]
  %s6 = inlined_call_operand.vmem [shape: f32[2,1,8,128], index: 6, kind: output, shape index: {}]
  %s7 = sld [smem:[#allocation0]]
  $region57: #{distiller_forward.11} parent=0
    _
  %s9 = ssub.s32 1, %s7
  %s10 = scalar_select 0, %s9, %s7
  loop: start=0, step=1, limit=4
  $region2: #{distiller_forward.11} parent=0 // loop_pre_header
    _
  $region3: #{distiller_forward.11} parent=0 // loop_header
    %s12 = sphi 0, %s16
    %p13 = scmp.ge.s32.totalorder %s12, 4
    %s19 = sphi 0, %s31
    %s20 = sphi 0, %s27
    %s21 = sphi 0, %s19
    %s22 = sphi 0, %s20
    %s23 = sphi 0, %s21
    %s24 = sphi 0, %s22
    %s32 = sphi 0, %s32
    %s34 = sphi 0, %s32
    %s35 = sphi 0, %s34
    %s49 = sphi 0, %s35
    %s53 = sphi 0, %s53
    %s55 = sphi 0, %s53
    %s56 = sphi 0, %s55
    %s70 = sphi 0, %s56
    %s74 = sphi 0, %s74
    %s76 = sphi 0, %s74
    %s77 = sphi 0, %s76
    %s91 = sphi 0, %s77
    %s95 = sphi 0, %s95
    %s97 = sphi 0, %s95
    %s98 = sphi 0, %s97
    %s112 = sphi 0, %s98
    %s120 = sphi 0, %s122
    %s123 = sphi 0, %s120
    %s124 = sphi 0, %s123
    %s140 = sphi 0, %s124
    %s148 = sphi 0, %s150
    %s151 = sphi 0, %s148
    %s152 = sphi 0, %s151
    %s168 = sphi 0, %s152
    %s176 = sphi 0, %s178
    %s179 = sphi 0, %s176
    %s180 = sphi 0, %s179
    %s196 = sphi 0, %s180
  $region4: #{distiller_forward.11} parent=0 // loop_header_branch
    %15 = sbr.rel (%p13) target = $region8
  $region5: #{distiller_forward.11} parent=0 // loop_body
    %s17 = ssub.s32 %s12, 1
    %s18 = ssub.s32 %s12, 2
    %s25 = sadd.s32 1, %s20
    %p26 = scmp.ge.s32.totalorder %s25, 1
    %s27 = scalar_select %p26, 0, %s25
    %s28 = sadd.s32 1, %s19
    %s29 = scalar_select %p26, %s28, %s19
    %p30 = scmp.ge.s32.totalorder %s29, 2
    %s31 = scalar_select %p30, 0, %s29
    %s33 = sadd.s32 %s32, 1
    %p36 = scmp.eq.s32.totalorder %s12, 1
    %p37 = scmp.ne.s32.totalorder %s32, %s34
    %p38 = scmp.eq.s32.totalorder %s12, 0
    %p39 = por %p37, %p38
    %p40 = scmp.ne.s32.totalorder %s32, %s34
    %p41 = scmp.eq.s32.totalorder %s17, 1
    %p42 = por %p40, %p41
    %p43 = scmp.ne.s32.totalorder %s34, %s35
    %p44 = scmp.eq.s32.totalorder %s17, 0
    %p45 = por %p43, %p44
    %p46 = scmp.ne.s32.totalorder %s34, %s35
    %p47 = scmp.eq.s32.totalorder %s18, 1
    %p48 = por %p46, %p47
    %p50 = scmp.ne.s32.totalorder %s35, %s49
    %p51 = scmp.eq.s32.totalorder %s18, 0
    %p52 = por %p50, %p51
    %s54 = sadd.s32 %s53, 1
    %p57 = scmp.eq.s32.totalorder %s12, 1
    %p58 = scmp.ne.s32.totalorder %s53, %s55
    %p59 = scmp.eq.s32.totalorder %s12, 0
    %p60 = por %p58, %p59
    %p61 = scmp.ne.s32.totalorder %s53, %s55
    %p62 = scmp.eq.s32.totalorder %s17, 1
    %p63 = por %p61, %p62
    %p64 = scmp.ne.s32.totalorder %s55, %s56
    %p65 = scmp.eq.s32.totalorder %s17, 0
    %p66 = por %p64, %p65
    %p67 = scmp.ne.s32.totalorder %s55, %s56
    %p68 = scmp.eq.s32.totalorder %s18, 1
    %p69 = por %p67, %p68
    %p71 = scmp.ne.s32.totalorder %s56, %s70
    %p72 = scmp.eq.s32.totalorder %s18, 0
    %p73 = por %p71, %p72
    %s75 = sadd.s32 %s74, 1
    %p78 = scmp.eq.s32.totalorder %s12, 1
    %p79 = scmp.ne.s32.totalorder %s74, %s76
    %p80 = scmp.eq.s32.totalorder %s12, 0
    %p81 = por %p79, %p80
    %p82 = scmp.ne.s32.totalorder %s74, %s76
    %p83 = scmp.eq.s32.totalorder %s17, 1
    %p84 = por %p82, %p83
    %p85 = scmp.ne.s32.totalorder %s76, %s77
    %p86 = scmp.eq.s32.totalorder %s17, 0
    %p87 = por %p85, %p86
    %p88 = scmp.ne.s32.totalorder %s76, %s77
    %p89 = scmp.eq.s32.totalorder %s18, 1
    %p90 = por %p88, %p89
    %p92 = scmp.ne.s32.totalorder %s77, %s91
    %p93 = scmp.eq.s32.totalorder %s18, 0
    %p94 = por %p92, %p93
    %s96 = sadd.s32 %s95, 1
    %p99 = scmp.eq.s32.totalorder %s12, 1
    %p100 = scmp.ne.s32.totalorder %s95, %s97
    %p101 = scmp.eq.s32.totalorder %s12, 0
    %p102 = por %p100, %p101
    %p103 = scmp.ne.s32.totalorder %s95, %s97
    %p104 = scmp.eq.s32.totalorder %s17, 1
    %p105 = por %p103, %p104
    %p106 = scmp.ne.s32.totalorder %s97, %s98
    %p107 = scmp.eq.s32.totalorder %s17, 0
    %p108 = por %p106, %p107
    %p109 = scmp.ne.s32.totalorder %s97, %s98
    %p110 = scmp.eq.s32.totalorder %s18, 1
    %p111 = por %p109, %p110
    %p113 = scmp.ne.s32.totalorder %s98, %s112
    %p114 = scmp.eq.s32.totalorder %s18, 0
    %p115 = por %p113, %p114
    %s116 = ssub.s32 %s19, %s31
    %s117 = ssub.s32 %s20, %s27
    %s118 = sor.u32 %s116, %s117
    %p119 = scmp.eq.s32.totalorder %s118, 0
    %s121 = sadd.s32 %s120, 1
    %s122 = scalar_select %p119, %s120, %s121
    %p125 = pneg %p119
    %p126 = scmp.eq.s32.totalorder %s12, 1
    %p127 = por %p125, %p126
    %p128 = scmp.ne.s32.totalorder %s120, %s123
    %p129 = scmp.eq.s32.totalorder %s12, 0
    %p130 = por %p128, %p129
    %p131 = scmp.ne.s32.totalorder %s120, %s123
    %p132 = scmp.eq.s32.totalorder %s17, 1
    %p133 = por %p131, %p132
    %p134 = scmp.ne.s32.totalorder %s123, %s124
    %p135 = scmp.eq.s32.totalorder %s17, 0
    %p136 = por %p134, %p135
    %p137 = scmp.ne.s32.totalorder %s123, %s124
    %p138 = scmp.eq.s32.totalorder %s18, 1
    %p139 = por %p137, %p138
    %p141 = scmp.ne.s32.totalorder %s124, %s140
    %p142 = scmp.eq.s32.totalorder %s18, 0
    %p143 = por %p141, %p142
    %s144 = ssub.s32 %s19, %s31
    %s145 = ssub.s32 %s20, %s27
    %s146 = sor.u32 %s144, %s145
    %p147 = scmp.eq.s32.totalorder %s146, 0
    %s149 = sadd.s32 %s148, 1
    %s150 = scalar_select %p147, %s148, %s149
    %p153 = pneg %p147
    %p154 = scmp.eq.s32.totalorder %s12, 1
    %p155 = por %p153, %p154
    %p156 = scmp.ne.s32.totalorder %s148, %s151
    %p157 = scmp.eq.s32.totalorder %s12, 0
    %p158 = por %p156, %p157
    %p159 = scmp.ne.s32.totalorder %s148, %s151
    %p160 = scmp.eq.s32.totalorder %s17, 1
    %p161 = por %p159, %p160
    %p162 = scmp.ne.s32.totalorder %s151, %s152
    %p163 = scmp.eq.s32.totalorder %s17, 0
    %p164 = por %p162, %p163
    %p165 = scmp.ne.s32.totalorder %s151, %s152
    %p166 = scmp.eq.s32.totalorder %s18, 1
    %p167 = por %p165, %p166
    %p169 = scmp.ne.s32.totalorder %s152, %s168
    %p170 = scmp.eq.s32.totalorder %s18, 0
    %p171 = por %p169, %p170
    %s172 = ssub.s32 %s19, %s31
    %s173 = ssub.s32 %s20, %s27
    %s174 = sor.u32 %s172, %s173
    %p175 = scmp.eq.s32.totalorder %s174, 0
    %s177 = sadd.s32 %s176, 1
    %s178 = scalar_select %p175, %s176, %s177
    %p181 = pneg %p175
    %p182 = scmp.eq.s32.totalorder %s12, 1
    %p183 = por %p181, %p182
    %p184 = scmp.ne.s32.totalorder %s176, %s179
    %p185 = scmp.eq.s32.totalorder %s12, 0
    %p186 = por %p184, %p185
    %p187 = scmp.ne.s32.totalorder %s176, %s179
    %p188 = scmp.eq.s32.totalorder %s17, 1
    %p189 = por %p187, %p188
    %p190 = scmp.ne.s32.totalorder %s179, %s180
    %p191 = scmp.eq.s32.totalorder %s17, 0
    %p192 = por %p190, %p191
    %p193 = scmp.ne.s32.totalorder %s179, %s180
    %p194 = scmp.eq.s32.totalorder %s18, 1
    %p195 = por %p193, %p194
    %p197 = scmp.ne.s32.totalorder %s180, %s196
    %p198 = scmp.eq.s32.totalorder %s18, 0
    %p199 = por %p197, %p198
    %p200 = scmp.le.s32.totalorder 1, %s12
    %p201 = scmp.lt.s32.totalorder %s12, 3
    %p202 = pnand %p200, %p201
    %p203 = pneg %p202
    // Predicated region
    $region9: #{distiller_forward.11} parent=5 // pred_check
      _
    $region10: #{distiller_forward.11} parent=5 // pred_check_branch
      %205 = sbr.rel (%p202) target = $region12
    $region11: #{distiller_forward.11} parent=5 // pred_region
      %s206 = ssub.s32 %s12, 1
      // Predicated region
      $region13: #{distiller_forward.11} parent=11 // pred_check
        %p207 = pneg %p45
      $region14: #{distiller_forward.11} parent=11 // pred_check_branch
        %209 = sbr.rel (%p207) target = $region16
      $region15: #{distiller_forward.11} parent=11 // pred_region
        _
      $region16: #{distiller_forward.11} parent=11 // pred_fallthru
        _
      // Predicated region
      $region17: #{distiller_forward.11} parent=11 // pred_check
        %p210 = pneg %p66
      $region18: #{distiller_forward.11} parent=11 // pred_check_branch
        %212 = sbr.rel (%p210) target = $region20
      $region19: #{distiller_forward.11} parent=11 // pred_region
        _
      $region20: #{distiller_forward.11} parent=11 // pred_fallthru
        _
      // Predicated region
      $region21: #{distiller_forward.11} parent=11 // pred_check
        %p213 = pneg %p87
      $region22: #{distiller_forward.11} parent=11 // pred_check_branch
        %215 = sbr.rel (%p213) target = $region24
      $region23: #{distiller_forward.11} parent=11 // pred_region
        _
      $region24: #{distiller_forward.11} parent=11 // pred_fallthru
        _
      // Predicated region
      $region25: #{distiller_forward.11} parent=11 // pred_check
        %p216 = pneg %p108
      $region26: #{distiller_forward.11} parent=11 // pred_check_branch
        %218 = sbr.rel (%p216) target = $region28
      $region27: #{distiller_forward.11} parent=11 // pred_region
        _
      $region28: #{distiller_forward.11} parent=11 // pred_fallthru
        _
    $region12: #{distiller_forward.11} parent=5 // pred_fallthru
      _
    %p219 = scmp.lt.s32.totalorder %s12, 2
    // Predicated region
    $region29: #{distiller_forward.11} parent=5 // pred_check
      %p220 = pneg %p219
    $region30: #{distiller_forward.11} parent=5 // pred_check_branch
      %222 = sbr.rel (%p220) target = $region32
    $region31: #{distiller_forward.11} parent=5 // pred_region
      // Predicated region
      $region33: #{distiller_forward.11} parent=31 // pred_check
        %p223 = pneg %p130
      $region34: #{distiller_forward.11} parent=31 // pred_check_branch
        %225 = sbr.rel (%p223) target = $region36
      $region35: #{distiller_forward.11} parent=31 // pred_region
        %p226 = scmp.lt.s32.totalorder %s19, 1
        %s227 = scalar_select %p226, %s19, 1
        %p228 = scmp.lt.s32.totalorder %s20, 0
        %s229 = scalar_select %p228, %s20, 0
        %s230 = smul.addr %s227, 4
        %s231 = sadd.s32 %s229, %s230
        %s232 = smul.addr %s231, 4
        %s233 = scalar_lea.vmem %s4, %s232
      $region36: #{distiller_forward.11} parent=31 // pred_fallthru
        _
      // Predicated region
      $region37: #{distiller_forward.11} parent=31 // pred_check
        %p234 = pneg %p158
      $region38: #{distiller_forward.11} parent=31 // pred_check_branch
        %236 = sbr.rel (%p234) target = $region40
      $region39: #{distiller_forward.11} parent=31 // pred_region
        %p237 = scmp.lt.s32.totalorder %s19, 1
        %s238 = scalar_select %p237, %s19, 1
        %p239 = scmp.lt.s32.totalorder %s20, 0
        %s240 = scalar_select %p239, %s20, 0
        %s241 = smul.addr %s238, 4
        %s242 = sadd.s32 %s240, %s241
        %s243 = smul.addr %s242, 8
        %s244 = scalar_lea.vmem %s5, %s243
      $region40: #{distiller_forward.11} parent=31 // pred_fallthru
        _
    $region32: #{distiller_forward.11} parent=5 // pred_fallthru
      _
    %p245 = scmp.le.s32.totalorder 1, %s12
    %p246 = scmp.lt.s32.totalorder %s12, 3
    %p247 = pnand %p245, %p246
    %p248 = pneg %p247
    // Predicated region
    $region41: #{distiller_forward.11} parent=5 // pred_check
      _
    $region42: #{distiller_forward.11} parent=5 // pred_check_branch
      %250 = sbr.rel (%p247) target = $region44
    $region43: #{distiller_forward.11} parent=5 // pred_region
      %s251 = ssub.s32 %s12, 1
      %p252 = pneg %p45
      %p253 = pneg %p42
      %p254 = pneg %p66
      %p255 = pneg %p63
      %p256 = pneg %p87
      %p257 = pneg %p84
      %p258 = pneg %p108
      %p259 = pneg %p105
      %p260 = scmp.lt.s32.totalorder %s21, 1
      %s261 = scalar_select %p260, %s21, 1
      %p262 = scmp.lt.s32.totalorder %s22, 0
      %s263 = scalar_select %p262, %s22, 0
      %s264 = smul.addr %s261, 4
      %s265 = sadd.s32 %s263, %s264
      %s266 = smul.addr %s265, 4
      %s267 = scalar_lea.vmem %s4, %s266
      %p268 = pneg %p136
      %p269 = pneg %p133
      %p270 = scmp.lt.s32.totalorder %s21, 1
      %s271 = scalar_select %p270, %s21, 1
      %p272 = scmp.lt.s32.totalorder %s22, 0
      %s273 = scalar_select %p272, %s22, 0
      %s274 = smul.addr %s271, 4
      %s275 = sadd.s32 %s273, %s274
      %s276 = smul.addr %s275, 8
      %s277 = scalar_lea.vmem %s5, %s276
      %p278 = pneg %p164
      %p279 = pneg %p161
      %p280 = pneg %p192
      %p281 = pneg %p189
      %p282 = scmp.lt.s32.totalorder %s21, 1
      %s283 = scalar_select %p282, %s21, 1
      %p284 = scmp.lt.s32.totalorder %s22, 0
      %s285 = scalar_select %p284, %s22, 0
      %s286 = sadd.s32 %s285, %s283
      %s287 = smul.addr %s286, 8
      %s288 = scalar_lea.vmem %s6, %s287
      %p289 = scmp.lt.s32.totalorder %s21, 1
      %s290 = scalar_select %p289, %s21, 1
      %p291 = scmp.lt.s32.totalorder %s22, 0
      %s292 = scalar_select %p291, %s22, 0
      %s293 = smul.addr %s290, 4
      %s294 = sadd.s32 %s292, %s293
      %s295 = smul.addr %s294, 4
      %s296 = scalar_lea.vmem %s4, %s295
      %p297 = scmp.lt.s32.totalorder %s21, 1
      %s298 = scalar_select %p297, %s21, 1
      %p299 = scmp.lt.s32.totalorder %s22, 0
      %s300 = scalar_select %p299, %s22, 0
      %s301 = smul.addr %s298, 4
      %s302 = sadd.s32 %s300, %s301
      %s303 = smul.addr %s302, 8
      %s304 = scalar_lea.vmem %s5, %s303
      %p305 = scmp.lt.s32.totalorder %s21, 1
      %s306 = scalar_select %p305, %s21, 1
      %p307 = scmp.lt.s32.totalorder %s22, 0
      %s308 = scalar_select %p307, %s22, 0
      %s309 = sadd.s32 %s308, %s306
      %s310 = smul.addr %s309, 8
      %s311 = scalar_lea.vmem %s6, %s310
      %v313 = vld [vmem:[%s0] sm:$0xf]
      %v314 = vld [vmem:[%s0 + $0x4] sm:$0xf]
      %v315 = vld [vmem:[%s0 + $0x8] sm:$0xf]
      %v316 = vld [vmem:[%s0 + $0xc] sm:$0xf]
      %v317 = vld [vmem:[%s296] sm:$0xf]
      %v318 = vld [vmem:[%s296 + $0x4] sm:$0xf]
      %v319 = vld [vmem:[%s296 + $0x8] sm:$0xf]
      %v320 = vld [vmem:[%s296 + $0xc] sm:$0xf]
      %v325 = vunpack.c.l.b16 %v313
      %v326 = vunpack.c.l.b16 %v314
      %v327 = vunpack.c.l.b16 %v315
      %v328 = vunpack.c.l.b16 %v316
      %v329 = vpack.c.b16 %v326, %v325
      %v330 = vpack.c.b16 %v328, %v327
      %v335 = vunpack.c.l.b16 %v317
      %v336 = vunpack.c.l.b16 %v318
      %v337 = vunpack.c.l.b16 %v319
      %v338 = vunpack.c.l.b16 %v320
      %v339 = vpack.c.b16 %v336, %v335
      %v340 = vpack.c.b16 %v338, %v337
      %vm343 = vcmask 261120
      %v345 = vsel %vm343, %v329, 0
      %v348 = vsel %vm343, %v330, 0
      %350 = vmatpush.bf16.msra.mxu0 0
      %351 = vmatpush.bf16.msra.mxu0 0
      %352 = vmatpush.bf16.msra.mxu0 0
      %353 = vmatpush.bf16.msra.mxu0 0
      %354 = vmatpush.bf16.msra.mxu0 0
      %355 = vmatpush.bf16.msra.mxu0 0
      %356 = vmatpush.bf16.msra.mxu0 %v340
      %357 = vmatpush.bf16.msra.mxu0 %v339
      %358 = vmatmul.bf16.gmra.mxu0 %v345
      %v359 = vpop.f32.mrf.mxu0
      %v360 = vadd.f32 0.0, %v359
      %v361 = vpop.f32.mrf.mxu0
      %v362 = vadd.f32 0.0, %v361
      %363 = vmatmul.bf16.gmra.mxu0 %v348
      %v364 = vpop.f32.mrf.mxu0
      %v365 = vadd.f32 0.0, %v364
      %v366 = vpop.f32.mrf.mxu0
      %v367 = vadd.f32 0.0, %v366
      %368 = vdwg.mxu0
      %v369 = vld [vmem:[%s1] sm:$0xff]
      %v370 = vld [vmem:[%s1 + $0x8] sm:$0xff]
      %v371 = vld [vmem:[%s1 + $0x10] sm:$0xff]
      %v372 = vld [vmem:[%s1 + $0x18] sm:$0xff]
      %374 = vset.pattern.permute.xlu0 0
      %375 = vperm.xlu0 %374, %v369
      %v376 = vpop.permute.xlu0 %375
      %379 = vset.pattern.permute.xlu0 0
      %380 = vperm.xlu0 %379, %v370
      %v381 = vpop.permute.xlu0 %380
      %384 = vset.pattern.permute.xlu0 0
      %385 = vperm.xlu0 %384, %v371
      %v386 = vpop.permute.xlu0 %385
      %389 = vset.pattern.permute.xlu0 0
      %390 = vperm.xlu0 %389, %v372
      %v391 = vpop.permute.xlu0 %390
      %v393 = vmul.f32 %v360, %v376
      %v394 = vmul.f32 %v362, %v381
      %v395 = vmul.f32 %v365, %v386
      %v396 = vmul.f32 %v367, %v391
      %v397 = vld [vmem:[%s2] sm:$0xff]
      %v398 = vld [vmem:[%s2 + $0x8] sm:$0xff]
      %v399 = vld [vmem:[%s2 + $0x10] sm:$0xff]
      %v400 = vld [vmem:[%s2 + $0x18] sm:$0xff]
      %402 = vset.pattern.permute.xlu0 0
      %403 = vperm.xlu0 %402, %v397
      %v404 = vpop.permute.xlu0 %403
      %407 = vset.pattern.permute.xlu0 0
      %408 = vperm.xlu0 %407, %v398
      %v409 = vpop.permute.xlu0 %408
      %412 = vset.pattern.permute.xlu0 0
      %413 = vperm.xlu0 %412, %v399
      %v414 = vpop.permute.xlu0 %413
      %417 = vset.pattern.permute.xlu0 0
      %418 = vperm.xlu0 %417, %v400
      %v419 = vpop.permute.xlu0 %418
      %v421 = vadd.f32 %v393, %v404
      %v422 = vadd.f32 %v394, %v409
      %v423 = vadd.f32 %v395, %v414
      %v424 = vadd.f32 %v396, %v419
      %v425 = vld [vmem:[%s304] sm:$0xff]
      %v426 = vld [vmem:[%s304 + $0x8] sm:$0xff]
      %v427 = vld [vmem:[%s304 + $0x10] sm:$0xff]
      %v428 = vld [vmem:[%s304 + $0x18] sm:$0xff]
      %v429 = vld [vmem:[%s3] sm:$0xff]
      %v430 = vld [vmem:[%s3 + $0x8] sm:$0xff]
      %v431 = vld [vmem:[%s3 + $0x10] sm:$0xff]
      %v432 = vld [vmem:[%s3 + $0x18] sm:$0xff]
      %434 = vset.pattern.permute.xlu0 0
      %435 = vperm.xlu0 %434, %v429
      %v436 = vpop.permute.xlu0 %435
      %439 = vset.pattern.permute.xlu0 0
      %440 = vperm.xlu0 %439, %v430
      %v441 = vpop.permute.xlu0 %440
      %444 = vset.pattern.permute.xlu0 0
      %445 = vperm.xlu0 %444, %v431
      %v446 = vpop.permute.xlu0 %445
      %449 = vset.pattern.permute.xlu0 0
      %450 = vperm.xlu0 %449, %v432
      %v451 = vpop.permute.xlu0 %450
      %v453 = vmax.f32 %v425, %v436
      %v454 = vmax.f32 %v426, %v441
      %v455 = vmax.f32 %v427, %v446
      %v456 = vmax.f32 %v428, %v451
      %v457 = vsub.f32 %v421, %v453
      %v458 = vsub.f32 %v422, %v454
      %v459 = vsub.f32 %v423, %v455
      %v460 = vsub.f32 %v424, %v456
      %vm461 = vcmp.gt.f32.partialorder %v421, %v453
      %vm462 = vcmp.gt.f32.partialorder %v422, %v454
      %vm463 = vcmp.gt.f32.partialorder %v423, %v455
      %vm464 = vcmp.gt.f32.partialorder %v424, %v456
      %vm465 = vcmp.gt.f32.partialorder %v453, 0.0
      %vm466 = vcmp.gt.f32.partialorder %v454, 0.0
      %vm467 = vcmp.gt.f32.partialorder %v455, 0.0
      %vm468 = vcmp.gt.f32.partialorder %v456, 0.0
      %vm469 = vmor %vm461, %vm465
      %vm470 = vmor %vm462, %vm466
      %vm471 = vmor %vm463, %vm467
      %vm472 = vmor %vm464, %vm468
      %v473 = vmul.f32 %v457, %v457
      %v474 = vmul.f32 %v458, %v458
      %v475 = vmul.f32 %v459, %v459
      %v476 = vmul.f32 %v460, %v460
      %v477 = vsel %vm469, %v473, 0.0
      %v478 = vsel %vm470, %v474, 0.0
      %v479 = vsel %vm471, %v475, 0.0
      %v480 = vsel %vm472, %v476, 0.0
      %vm481 = vcmask 523264
      %v482 = vsel %vm481, %v477, 0.0
      %v483 = vsel %vm481, %v478, 0.0
      %v484 = vadd.f32 %v482, %v483
      %v485 = vsel %vm481, %v479, 0.0
      %v486 = vadd.f32 %v484, %v485
      %v487 = vsel %vm481, %v480, 0.0
      %v488 = vadd.f32 %v486, %v487
      %489 = vadd.xlane.f32.xlu0 %v488
      %v490 = vpop.xlane.xlu0 %489
      %v491 = vrot.slane %v490, 4
      %v492 = vadd.f32 %v490, %v491
      %v493 = vrot.slane %v492, 2
      %v494 = vadd.f32 %v492, %v493
      %v495 = vrot.slane %v494, 1
      %v496 = vadd.f32 %v494, %v495
      %s497 = vtos %v496
      %v498 = vstv %s497
      %499 = vst [vmem:[%s311] sm:$0xff] %v498
      %p500 = scmp.lt.s32.totalorder %s21, 1
      %s501 = scalar_select %p500, %s21, 1
      %p502 = scmp.lt.s32.totalorder %s22, 0
      %s503 = scalar_select %p502, %s22, 0
      %s504 = sadd.s32 %s503, %s501
      %s505 = smul.addr %s504, 8
      %s506 = scalar_lea.vmem %s6, %s505
      // Predicated region
      $region45: #{distiller_forward.11} parent=43 // pred_check
        %p507 = pneg %p189
      $region46: #{distiller_forward.11} parent=43 // pred_check_branch
        %509 = sbr.rel (%p507) target = $region48
      $region47: #{distiller_forward.11} parent=43 // pred_region
        _
      $region48: #{distiller_forward.11} parent=43 // pred_fallthru
        _
    $region44: #{distiller_forward.11} parent=5 // pred_fallthru
      _
    %p510 = scmp.le.s32.totalorder 2, %s12
    // Predicated region
    $region49: #{distiller_forward.11} parent=5 // pred_check
      %p511 = pneg %p510
    $region50: #{distiller_forward.11} parent=5 // pred_check_branch
      %513 = sbr.rel (%p511) target = $region52
    $region51: #{distiller_forward.11} parent=5 // pred_region
      %s514 = ssub.s32 %s12, 2
      // Predicated region
      $region53: #{distiller_forward.11} parent=51 // pred_check
        %p515 = pneg %p195
      $region54: #{distiller_forward.11} parent=51 // pred_check_branch
        %517 = sbr.rel (%p515) target = $region56
      $region55: #{distiller_forward.11} parent=51 // pred_region
        %p518 = scmp.lt.s32.totalorder %s23, 1
        %s519 = scalar_select %p518, %s23, 1
        %p520 = scmp.lt.s32.totalorder %s24, 0
        %s521 = scalar_select %p520, %s24, 0
        %s522 = sadd.s32 %s521, %s519
        %s523 = smul.addr %s522, 8
        %s524 = scalar_lea.vmem %s6, %s523
      $region56: #{distiller_forward.11} parent=51 // pred_fallthru
        _
    $region52: #{distiller_forward.11} parent=5 // pred_fallthru
      _
  $region6: #{distiller_forward.11} parent=0 // loop_footer
    %s16 = sadd.s32 1, %s12
  $region7: #{distiller_forward.11} parent=0 // loop_footer_branch
    %11 = sbr.rel target = $region3
  $region8: #{distiller_forward.11} parent=0 // loop_exit
    _

</llo_original>
